<compile_context>
chip_gen: v5e
topology: v5e:2x2
jax: 0.10.0
libtpu: 0.0.40
codegen_flags: <defaults>
</compile_context>

<pallas_src>
import functools

import jax
import jax.numpy as jnp
from jax.experimental import pallas as pl
from jax.experimental.pallas import tpu as pltpu

EPS = 1e-5
LANE = 128

# Matmul-operand dtype. jnp.bfloat16 roughly doubles MXU throughput on v6e/v7x (keep the f32
# accumulator via preferred_element_type); kept f32 here to meet the strict 1e-3 check vs the
# f32 reference.  Elementwise BN/ReLU math stays f32 regardless (required on v5e).
MXU_DTYPE = jnp.float32


def _round_up(x, m):
    return ((x + m - 1) // m) * m


def _same_pad_left(k):
    return (k - 1) // 2          # PyTorch padding='same': extra pad goes on the right


# ----------------------------- kernels ------------------------------------------------------


def _conv_im2col(x_ref, w_ref, b_ref, K, left):
    """'same' Conv1d for one batch row as ONE MXU matmul.

    x_ref: (1, L, Cp)  w_ref: (K*Cp, Fp)  b_ref: (1, Fp)  ->  (L, Fp) float32
    """
    x = x_ref[0]                                   # (L, Cp)
    L, Cp = x.shape
    right = K - 1 - left
    parts = []
    if left:
        parts.append(jnp.zeros((left, Cp), x.dtype))
    parts.append(x)
    if right:
        parts.append(jnp.zeros((right, Cp), x.dtype))
    xp = parts[0] if len(parts) == 1 else jnp.concatenate(parts, axis=0)   # (L+K-1, Cp)
    if K > 1:
        slab = jnp.concatenate([xp[k:k + L, :] for k in range(K)], axis=-1)  # (L, K*Cp)
    else:
        slab = xp
    return jnp.dot(slab.astype(MXU_DTYPE), w_ref[...].astype(MXU_DTYPE),
                   preferred_element_type=jnp.float32) + b_ref[...]


def _bn_scale_shift(stats_ref, g_ref, be_ref, cnt):
    """Fold per-batch partial sums into BN scale/shift (training-mode biased variance)."""
    s = jnp.sum(stats_ref[...], axis=0)            # (2, Fp): [sum, sum_sq] over all batches
    mean = s[0:1, :] / cnt                         # (1, Fp)
    var = jnp.maximum(s[1:2, :] / cnt - mean * mean, 0.0)
    scale = g_ref[...] * jax.lax.rsqrt(var + EPS)
    shift = be_ref[...] - mean * scale
    return scale, shift


def _conv_stats_kernel(x_ref, w_ref, b_ref, stats_ref, *, K, left):
    """conv -> per-batch-row [sum, sum_sq] over length (streamed, nothing kept live)."""
    conv = _conv_im2col(x_ref, w_ref, b_ref, K, left)          # (L, Fp)
    stats_ref[0] = jnp.concatenate(
        [jnp.sum(conv, axis=0, keepdims=True),
         jnp.sum(conv * conv, axis=0, keepdims=True)], axis=0)


def _conv_bn_apply_kernel(x_ref, w_ref, b_ref, stats_ref, g_ref, be_ref, o_ref,
                          *, K, left, cnt, relu):
    """conv (recomputed) -> BN affine -> optional ReLU."""
    conv = _conv_im2col(x_ref, w_ref, b_ref, K, left)
    scale, shift = _bn_scale_shift(stats_ref, g_ref, be_ref, cnt)
    y = conv * scale + shift
    if relu:
        y = jnp.maximum(y, 0.0)
    o_ref[0] = y.astype(o_ref.dtype)


def _conv_bn_shortcut_kernel(x_ref, xin_ref, w_ref, b_ref, stats_ref, g_ref, be_ref,
                             wsc_ref, bsc_ref, o_ref, *, K, left, cnt):
    """conv3 -> bn3 fused with 1x1 shortcut conv + residual add + ReLU."""
    conv = _conv_im2col(x_ref, w_ref, b_ref, K, left)
    scale, shift = _bn_scale_shift(stats_ref, g_ref, be_ref, cnt)
    sc = jnp.dot(xin_ref[0].astype(MXU_DTYPE), wsc_ref[...].astype(MXU_DTYPE),
                 preferred_element_type=jnp.float32) + bsc_ref[...]
    o_ref[0] = jnp.maximum(conv * scale + shift + sc, 0.0).astype(o_ref.dtype)


# ----------------------------- wrappers (glue) -----------------------------------------------


def _pad_last(a, target):
    pad = target - a.shape[-1]
    if pad == 0:
        return a
    return jnp.pad(a, [(0, 0)] * (a.ndim - 1) + [(0, pad)])


def _prep_conv_w(w, c_pad, f_pad):
    """(K, C_in, F) -> zero-padded, im2col-flattened (K*c_pad, f_pad)."""
    K, C, F = w.shape
    wp = jnp.pad(w, ((0, 0), (0, c_pad - C), (0, f_pad - F)))
    return wp.reshape(K * c_pad, f_pad)


def _full_spec(shape):
    return pl.BlockSpec(shape, lambda n: (0,) * len(shape))


def _conv_bn_stage(x_nlc, w, b, g, be, *, relu, shortcut=None):
    """One Conv1d('same') + BatchNorm1d(train) (+ fused shortcut/add) + optional ReLU stage."""
    N, L, Cp = x_nlc.shape
    K, _, F = w.shape
    Fp = _round_up(F, LANE)
    left = _same_pad_left(K)
    cnt = float(N * L)

    w2 = _prep_conv_w(w, Cp, Fp)                    # (K*Cp, Fp)
    b2, g2, be2 = _pad_last(b, Fp), _pad_last(g, Fp), _pad_last(be, Fp)

    row_x = pl.BlockSpec((1, L, Cp), lambda n: (n, 0, 0))
    row_o = pl.BlockSpec((1, L, Fp), lambda n: (n, 0, 0))
    row_st = pl.BlockSpec((1, 2, Fp), lambda n: (n, 0, 0))
    cparams = pltpu.CompilerParams(dimension_semantics=("parallel",))

    # Pass 1: per-batch partial BN statistics (accumulated in-kernel, nothing kept live).
    stats = pl.pallas_call(
        functools.partial(_conv_stats_kernel, K=K, left=left),
        out_shape=jax.ShapeDtypeStruct((N, 2, Fp), jnp.float32),
        grid=(N,),
        in_specs=[row_x, _full_spec((K * Cp, Fp)), _full_spec((1, Fp))],
        out_specs=row_st,
        compiler_params=cparams,
    )(x_nlc, w2, b2)

    # Pass 2: conv + BN affine (+ shortcut + add) + ReLU, lane-dense (Fp=128k) output blocks.
    if shortcut is None:
        kern = functools.partial(_conv_bn_apply_kernel, K=K, left=left, cnt=cnt, relu=relu)
        in_specs = [row_x, _full_spec((K * Cp, Fp)), _full_spec((1, Fp)),
                    _full_spec((N, 2, Fp)), _full_spec((1, Fp)), _full_spec((1, Fp))]
        args = (x_nlc, w2, b2, stats, g2, be2)
    else:
        x_in, wsc, bsc = shortcut
        Cin_p = x_in.shape[2]
        wsc2 = jnp.pad(wsc, ((0, Cin_p - wsc.shape[0]), (0, Fp - wsc.shape[1])))
        bsc2 = _pad_last(bsc, Fp)
        kern = functools.partial(_conv_bn_shortcut_kernel, K=K, left=left, cnt=cnt)
        in_specs = [row_x, pl.BlockSpec((1, L, Cin_p), lambda n: (n, 0, 0)),
                    _full_spec((K * Cp, Fp)), _full_spec((1, Fp)),
                    _full_spec((N, 2, Fp)), _full_spec((1, Fp)), _full_spec((1, Fp)),
                    _full_spec((Cin_p, Fp)), _full_spec((1, Fp))]
        args = (x_nlc, x_in, w2, b2, stats, g2, be2, wsc2, bsc2)

    return pl.pallas_call(
        kern,
        out_shape=jax.ShapeDtypeStruct((N, L, Fp), jnp.float32),
        grid=(N,),
        in_specs=in_specs,
        out_specs=row_o,
        compiler_params=cparams,
    )(*args)


def residual_block_forward(x_ncl, p):
    """Pallas implementation of ResidualBlock.forward (BatchNorm in training mode)."""
    N, C, L = x_ncl.shape
    f_out = p["w3"].shape[2]
    Cp = _round_up(C, LANE)

    # Boundary-only glue: NCL -> NLC and pad channels to the 128-lane width.
    x = _pad_last(jnp.transpose(x_ncl, (0, 2, 1)), Cp)          # (N, L, Cp)

    h = _conv_bn_stage(x, p["w1"], p["b1"], p["g1"], p["be1"], relu=True)
    h = _conv_bn_stage(h, p["w2"], p["b2"], p["g2"], p["be2"], relu=True)
    out = _conv_bn_stage(h, p["w3"], p["b3"], p["g3"], p["be3"], relu=False,
                         shortcut=(x, p["wsc"], p["bsc"]))

    return jnp.transpose(out[:, :, :f_out], (0, 2, 1))           # NLC -> NCL


# ----------------------------- params & pure-JAX reference ----------------------------------


def init_params(key, in_channels, filters, kernels):
    f0, f1, f2 = filters
    k1, k2, k3 = kernels
    ks = jax.random.split(key, 14)

    def conv_w(k, shape, fan_in):
        return jax.random.normal(k, shape, jnp.float32) / jnp.sqrt(float(fan_in))

    def vec(k, f, base=0.0, scl=0.1):
        return base + scl * jax.random.normal(k, (1, f), jnp.float32)

    return {
        "w1": conv_w(ks[0], (k1, in_channels, f0), k1 * in_channels),
        "b1": vec(ks[1], f0), "g1": vec(ks[2], f0, base=1.0), "be1": vec(ks[3], f0),
        "w2": conv_w(ks[4], (k2, f0, f1), k2 * f0),
        "b2": vec(ks[5], f1), "g2": vec(ks[6], f1, base=1.0), "be2": vec(ks[7], f1),
        "w3": conv_w(ks[8], (k3, f1, f2), k3 * f1),
        "b3": vec(ks[9], f2), "g3": vec(ks[10], f2, base=1.0), "be3": vec(ks[11], f2),
        "wsc": conv_w(ks[12], (in_channels, f2), in_channels),   # 1x1 conv
        "bsc": vec(ks[13], f2),
    }


def reference_forward(x_ncl, p):
    x = jnp.transpose(x_ncl, (0, 2, 1))

    def conv(xi, w, b):
        K = w.shape[0]
        left = _same_pad_left(K)
        y = jax.lax.conv_general_dilated(xi, w, window_strides=(1,),
                                         padding=[(left, K - 1 - left)],
                                         dimension_numbers=("NWC", "WIO", "NWC"))
        return y + b

    def bn(xi, g, be):
        mean = jnp.mean(xi, axis=(0, 1), keepdims=True)
        var = jnp.mean((xi - mean) ** 2, axis=(0, 1), keepdims=True)
        return (xi - mean) * jax.lax.rsqrt(var + EPS) * g + be

    h = jax.nn.relu(bn(conv(x, p["w1"], p["b1"]), p["g1"], p["be1"]))
    h = jax.nn.relu(bn(conv(h, p["w2"], p["b2"]), p["g2"], p["be2"]))
    h = bn(conv(h, p["w3"], p["b3"]), p["g3"], p["be3"])
    sc = conv(x, p["wsc"][None], p["bsc"])
    return jnp.transpose(jax.nn.relu(h + sc), (0, 2, 1))


# ----------------------------- main ----------------------------------------------------------

if __name__ == "__main__":
    batch, in_channels, seq_len = 2, 4, 16
    filters, kernels = [16, 16, 16], [8, 5, 3]

    key = jax.random.PRNGKey(0)
    kx, kp = jax.random.split(key)
    x = jax.random.normal(kx, (batch, in_channels, seq_len), jnp.float32)   # PyTorch NCL input
    params = init_params(kp, in_channels, filters, kernels)

    out = jax.block_until_ready(jax.jit(residual_block_forward)(x, params))
    ref = jax.block_until_ready(reference_forward(x, params))

    assert out.shape == (batch, filters[2], seq_len), out.shape
    max_err = float(jnp.max(jnp.abs(out - ref)))
    if max_err > 1e-3:
        raise AssertionError(f"Pallas output mismatch vs reference, max abs err = {max_err}")

    print("KERNEL_OK")
</pallas_src>

<mosaic_0001>
module attributes {stable_mosaic.version = 11 : i64} {
  func.func @_conv_stats_kernel(%arg0: i32, %arg1: memref<1x16x128xf32, #tpu.memory_space<vmem>>, %arg2: memref<1024x128xf32, #tpu.memory_space<vmem>>, %arg3: memref<1x128xf32, #tpu.memory_space<vmem>>, %arg4: memref<1x2x128xf32, #tpu.memory_space<vmem>>) attributes {dimension_semantics = [#tpu.dimension_semantics<parallel>], iteration_bounds = array<i64: 2>, scalar_prefetch = 0 : i64, scratch_operands = 0 : i64, tpu.core_type = #tpu.core_type<tc>, window_params = [{transform_indices = @transform_0, window_bounds = array<i64: 1, 16, 128>}, {pipeline_mode = #tpu.pipeline_mode<synchronous>, transform_indices = @transform_1, window_bounds = array<i64: 1024, 128>}, {pipeline_mode = #tpu.pipeline_mode<synchronous>, transform_indices = @transform_2, window_bounds = array<i64: 1, 128>}, {transform_indices = @transform_3, window_bounds = array<i64: 1, 2, 128>}]} {
    %c0 = arith.constant 0 : index
    %c0_0 = arith.constant 0 : index
    %c0_1 = arith.constant 0 : index
    %0 = vector.load %arg1[%c0, %c0_0, %c0_1] : memref<1x16x128xf32, #tpu.memory_space<vmem>>, vector<1x16x128xf32>
    %1 = vector.shape_cast %0 : vector<1x16x128xf32> to vector<16x128xf32>
    %cst = arith.constant 0.000000e+00 : f32
    %2 = vector.broadcast %cst : f32 to vector<3x128xf32>
    %cst_2 = arith.constant 0.000000e+00 : f32
    %3 = vector.broadcast %cst_2 : f32 to vector<4x128xf32>
    %4 = tpu.concatenate %2, %1, %3 in 0 : vector<3x128xf32>, vector<16x128xf32>, vector<4x128xf32> -> vector<23x128xf32>
    %5 = vector.extract_strided_slice %4 {offsets = [0, 0], sizes = [16, 128], strides = [1, 1]} : vector<23x128xf32> to vector<16x128xf32>
    %6 = vector.extract_strided_slice %4 {offsets = [1, 0], sizes = [16, 128], strides = [1, 1]} : vector<23x128xf32> to vector<16x128xf32>
    %7 = vector.extract_strided_slice %4 {offsets = [2, 0], sizes = [16, 128], strides = [1, 1]} : vector<23x128xf32> to vector<16x128xf32>
    %8 = vector.extract_strided_slice %4 {offsets = [3, 0], sizes = [16, 128], strides = [1, 1]} : vector<23x128xf32> to vector<16x128xf32>
    %9 = vector.extract_strided_slice %4 {offsets = [4, 0], sizes = [16, 128], strides = [1, 1]} : vector<23x128xf32> to vector<16x128xf32>
    %10 = vector.extract_strided_slice %4 {offsets = [5, 0], sizes = [16, 128], strides = [1, 1]} : vector<23x128xf32> to vector<16x128xf32>
    %11 = vector.extract_strided_slice %4 {offsets = [6, 0], sizes = [16, 128], strides = [1, 1]} : vector<23x128xf32> to vector<16x128xf32>
    %12 = vector.extract_strided_slice %4 {offsets = [7, 0], sizes = [16, 128], strides = [1, 1]} : vector<23x128xf32> to vector<16x128xf32>
    %13 = tpu.concatenate %5, %6, %7, %8, %9, %10, %11, %12 in 1 : vector<16x128xf32>, vector<16x128xf32>, vector<16x128xf32>, vector<16x128xf32>, vector<16x128xf32>, vector<16x128xf32>, vector<16x128xf32>, vector<16x128xf32> -> vector<16x1024xf32>
    %c0_3 = arith.constant 0 : index
    %c0_4 = arith.constant 0 : index
    %14 = vector.load %arg2[%c0_3, %c0_4] : memref<1024x128xf32, #tpu.memory_space<vmem>>, vector<1024x128xf32>
    %cst_5 = arith.constant dense<0.000000e+00> : vector<16x128xf32>
    %15 = tpu.matmul %13, %14, %cst_5 {dimension_numbers = #tpu.dot_dimension_numbers<[1], [0], [0], [1], [0, 0, 1, 1], [], []>} : vector<16x1024xf32>, vector<1024x128xf32>, vector<16x128xf32> -> vector<16x128xf32>
    %c0_6 = arith.constant 0 : index
    %c0_7 = arith.constant 0 : index
    %16 = vector.load %arg3[%c0_6, %c0_7] : memref<1x128xf32, #tpu.memory_space<vmem>>, vector<1x128xf32>
    %17 = vector.broadcast %16 : vector<1x128xf32> to vector<16x128xf32>
    %18 = arith.addf %15, %17 : vector<16x128xf32>
    %cst_8 = arith.constant dense<0.000000e+00> : vector<128xf32>
    %19 = vector.multi_reduction <add>, %18, %cst_8 [0] : vector<16x128xf32> to vector<128xf32>
    %20 = vector.shape_cast %19 : vector<128xf32> to vector<1x128xf32>
    %21 = arith.mulf %18, %18 : vector<16x128xf32>
    %cst_9 = arith.constant dense<0.000000e+00> : vector<128xf32>
    %22 = vector.multi_reduction <add>, %21, %cst_9 [0] : vector<16x128xf32> to vector<128xf32>
    %23 = vector.shape_cast %22 : vector<128xf32> to vector<1x128xf32>
    %24 = tpu.concatenate %20, %23 in 0 : vector<1x128xf32>, vector<1x128xf32> -> vector<2x128xf32>
    %c0_10 = arith.constant 0 : index
    %c0_11 = arith.constant 0 : index
    %c0_12 = arith.constant 0 : index
    %25 = vector.load %arg4[%c0_10, %c0_11, %c0_12] : memref<1x2x128xf32, #tpu.memory_space<vmem>>, vector<1x2x128xf32>
    %26 = vector.shape_cast %25 : vector<1x2x128xf32> to vector<2x128xf32>
    %27 = vector.shape_cast %24 : vector<2x128xf32> to vector<1x2x128xf32>
    tpu.vector_store %arg4[%c0_10, %c0_11, %c0_12], %27 {strides = array<i32>} : memref<1x2x128xf32, #tpu.memory_space<vmem>>, vector<1x2x128xf32>,
    return
  }
  func.func @transform_0(%arg0: i32) -> (i32, i32, i32) {
    %c0_i32 = arith.constant 0 : i32
    %c0_i32_0 = arith.constant 0 : i32
    %c0_i32_1 = arith.constant 0 : i32
    return %arg0, %c0_i32, %c0_i32_0 : i32, i32, i32
  }
  func.func @transform_1(%arg0: i32) -> (i32, i32) {
    %c0_i32 = arith.constant 0 : i32
    %c0_i32_0 = arith.constant 0 : i32
    %c0_i32_1 = arith.constant 0 : i32
    return %c0_i32, %c0_i32_0 : i32, i32
  }
  func.func @transform_2(%arg0: i32) -> (i32, i32) {
    %c0_i32 = arith.constant 0 : i32
    %c0_i32_0 = arith.constant 0 : i32
    %c0_i32_1 = arith.constant 0 : i32
    return %c0_i32, %c0_i32_0 : i32, i32
  }
  func.func @transform_3(%arg0: i32) -> (i32, i32, i32) {
    %c0_i32 = arith.constant 0 : i32
    %c0_i32_0 = arith.constant 0 : i32
    %c0_i32_1 = arith.constant 0 : i32
    return %arg0, %c0_i32, %c0_i32_0 : i32, i32, i32
  }
}

module attributes {stable_mosaic.version = 11 : i64} {
  func.func @_conv_bn_apply_kernel(%arg0: i32, %arg1: memref<1x16x128xf32, #tpu.memory_space<vmem>>, %arg2: memref<1024x128xf32, #tpu.memory_space<vmem>>, %arg3: memref<1x128xf32, #tpu.memory_space<vmem>>, %arg4: memref<2x2x128xf32, #tpu.memory_space<vmem>>, %arg5: memref<1x128xf32, #tpu.memory_space<vmem>>, %arg6: memref<1x128xf32, #tpu.memory_space<vmem>>, %arg7: memref<1x16x128xf32, #tpu.memory_space<vmem>>) attributes {dimension_semantics = [#tpu.dimension_semantics<parallel>], iteration_bounds = array<i64: 2>, scalar_prefetch = 0 : i64, scratch_operands = 0 : i64, tpu.core_type = #tpu.core_type<tc>, window_params = [{transform_indices = @transform_0, window_bounds = array<i64: 1, 16, 128>}, {pipeline_mode = #tpu.pipeline_mode<synchronous>, transform_indices = @transform_1, window_bounds = array<i64: 1024, 128>}, {pipeline_mode = #tpu.pipeline_mode<synchronous>, transform_indices = @transform_2, window_bounds = array<i64: 1, 128>}, {pipeline_mode = #tpu.pipeline_mode<synchronous>, transform_indices = @transform_3, window_bounds = array<i64: 2, 2, 128>}, {pipeline_mode = #tpu.pipeline_mode<synchronous>, transform_indices = @transform_4, window_bounds = array<i64: 1, 128>}, {pipeline_mode = #tpu.pipeline_mode<synchronous>, transform_indices = @transform_5, window_bounds = array<i64: 1, 128>}, {transform_indices = @transform_6, window_bounds = array<i64: 1, 16, 128>}]} {
    %c0 = arith.constant 0 : index
    %c0_0 = arith.constant 0 : index
    %c0_1 = arith.constant 0 : index
    %0 = vector.load %arg1[%c0, %c0_0, %c0_1] : memref<1x16x128xf32, #tpu.memory_space<vmem>>, vector<1x16x128xf32>
    %1 = vector.shape_cast %0 : vector<1x16x128xf32> to vector<16x128xf32>
    %cst = arith.constant 0.000000e+00 : f32
    %2 = vector.broadcast %cst : f32 to vector<3x128xf32>
    %cst_2 = arith.constant 0.000000e+00 : f32
    %3 = vector.broadcast %cst_2 : f32 to vector<4x128xf32>
    %4 = tpu.concatenate %2, %1, %3 in 0 : vector<3x128xf32>, vector<16x128xf32>, vector<4x128xf32> -> vector<23x128xf32>
    %5 = vector.extract_strided_slice %4 {offsets = [0, 0], sizes = [16, 128], strides = [1, 1]} : vector<23x128xf32> to vector<16x128xf32>
    %6 = vector.extract_strided_slice %4 {offsets = [1, 0], sizes = [16, 128], strides = [1, 1]} : vector<23x128xf32> to vector<16x128xf32>
    %7 = vector.extract_strided_slice %4 {offsets = [2, 0], sizes = [16, 128], strides = [1, 1]} : vector<23x128xf32> to vector<16x128xf32>
    %8 = vector.extract_strided_slice %4 {offsets = [3, 0], sizes = [16, 128], strides = [1, 1]} : vector<23x128xf32> to vector<16x128xf32>
    %9 = vector.extract_strided_slice %4 {offsets = [4, 0], sizes = [16, 128], strides = [1, 1]} : vector<23x128xf32> to vector<16x128xf32>
    %10 = vector.extract_strided_slice %4 {offsets = [5, 0], sizes = [16, 128], strides = [1, 1]} : vector<23x128xf32> to vector<16x128xf32>
    %11 = vector.extract_strided_slice %4 {offsets = [6, 0], sizes = [16, 128], strides = [1, 1]} : vector<23x128xf32> to vector<16x128xf32>
    %12 = vector.extract_strided_slice %4 {offsets = [7, 0], sizes = [16, 128], strides = [1, 1]} : vector<23x128xf32> to vector<16x128xf32>
    %13 = tpu.concatenate %5, %6, %7, %8, %9, %10, %11, %12 in 1 : vector<16x128xf32>, vector<16x128xf32>, vector<16x128xf32>, vector<16x128xf32>, vector<16x128xf32>, vector<16x128xf32>, vector<16x128xf32>, vector<16x128xf32> -> vector<16x1024xf32>
    %c0_3 = arith.constant 0 : index
    %c0_4 = arith.constant 0 : index
    %14 = vector.load %arg2[%c0_3, %c0_4] : memref<1024x128xf32, #tpu.memory_space<vmem>>, vector<1024x128xf32>
    %cst_5 = arith.constant dense<0.000000e+00> : vector<16x128xf32>
    %15 = tpu.matmul %13, %14, %cst_5 {dimension_numbers = #tpu.dot_dimension_numbers<[1], [0], [0], [1], [0, 0, 1, 1], [], []>} : vector<16x1024xf32>, vector<1024x128xf32>, vector<16x128xf32> -> vector<16x128xf32>
    %c0_6 = arith.constant 0 : index
    %c0_7 = arith.constant 0 : index
    %16 = vector.load %arg3[%c0_6, %c0_7] : memref<1x128xf32, #tpu.memory_space<vmem>>, vector<1x128xf32>
    %17 = vector.broadcast %16 : vector<1x128xf32> to vector<16x128xf32>
    %18 = arith.addf %15, %17 : vector<16x128xf32>
    %c0_8 = arith.constant 0 : index
    %c0_9 = arith.constant 0 : index
    %c0_10 = arith.constant 0 : index
    %19 = vector.load %arg4[%c0_8, %c0_9, %c0_10] : memref<2x2x128xf32, #tpu.memory_space<vmem>>, vector<2x2x128xf32>
    %cst_11 = arith.constant dense<0.000000e+00> : vector<2x128xf32>
    %20 = vector.multi_reduction <add>, %19, %cst_11 [0] : vector<2x2x128xf32> to vector<2x128xf32>
    %21 = vector.extract_strided_slice %20 {offsets = [0, 0], sizes = [1, 128], strides = [1, 1]} : vector<2x128xf32> to vector<1x128xf32>
    %cst_12 = arith.constant 3.200000e+01 : f32
    %22 = vector.broadcast %cst_12 : f32 to vector<1x128xf32>
    %23 = arith.divf %21, %22 : vector<1x128xf32>
    %24 = vector.extract_strided_slice %20 {offsets = [1, 0], sizes = [1, 128], strides = [1, 1]} : vector<2x128xf32> to vector<1x128xf32>
    %cst_13 = arith.constant 3.200000e+01 : f32
    %25 = vector.broadcast %cst_13 : f32 to vector<1x128xf32>
    %26 = arith.divf %24, %25 : vector<1x128xf32>
    %27 = arith.mulf %23, %23 : vector<1x128xf32>
    %28 = arith.subf %26, %27 : vector<1x128xf32>
    %cst_14 = arith.constant 0.000000e+00 : f32
    %29 = vector.broadcast %cst_14 : f32 to vector<1x128xf32>
    %30 = arith.maximumf %28, %29 : vector<1x128xf32>
    %c0_15 = arith.constant 0 : index
    %c0_16 = arith.constant 0 : index
    %31 = vector.load %arg5[%c0_15, %c0_16] : memref<1x128xf32, #tpu.memory_space<vmem>>, vector<1x128xf32>
    %cst_17 = arith.constant 9.99999974E-6 : f32
    %32 = vector.broadcast %cst_17 : f32 to vector<1x128xf32>
    %33 = arith.addf %30, %32 : vector<1x128xf32>
    %34 = math.rsqrt %33 : vector<1x128xf32>
    %35 = arith.mulf %31, %34 : vector<1x128xf32>
    %c0_18 = arith.constant 0 : index
    %c0_19 = arith.constant 0 : index
    %36 = vector.load %arg6[%c0_18, %c0_19] : memref<1x128xf32, #tpu.memory_space<vmem>>, vector<1x128xf32>
    %37 = arith.mulf %23, %35 : vector<1x128xf32>
    %38 = arith.subf %36, %37 : vector<1x128xf32>
    %39 = vector.broadcast %35 : vector<1x128xf32> to vector<16x128xf32>
    %40 = arith.mulf %18, %39 : vector<16x128xf32>
    %41 = vector.broadcast %38 : vector<1x128xf32> to vector<16x128xf32>
    %42 = arith.addf %40, %41 : vector<16x128xf32>
    %cst_20 = arith.constant 0.000000e+00 : f32
    %43 = vector.broadcast %cst_20 : f32 to vector<16x128xf32>
    %44 = arith.maximumf %42, %43 : vector<16x128xf32>
    %c0_21 = arith.constant 0 : index
    %c0_22 = arith.constant 0 : index
    %c0_23 = arith.constant 0 : index
    %45 = vector.load %arg7[%c0_21, %c0_22, %c0_23] : memref<1x16x128xf32, #tpu.memory_space<vmem>>, vector<1x16x128xf32>
    %46 = vector.shape_cast %45 : vector<1x16x128xf32> to vector<16x128xf32>
    %47 = vector.shape_cast %44 : vector<16x128xf32> to vector<1x16x128xf32>
    tpu.vector_store %arg7[%c0_21, %c0_22, %c0_23], %47 {strides = array<i32>} : memref<1x16x128xf32, #tpu.memory_space<vmem>>, vector<1x16x128xf32>,
    return
  }
  func.func @transform_0(%arg0: i32) -> (i32, i32, i32) {
    %c0_i32 = arith.constant 0 : i32
    %c0_i32_0 = arith.constant 0 : i32
    %c0_i32_1 = arith.constant 0 : i32
    return %arg0, %c0_i32, %c0_i32_0 : i32, i32, i32
  }
  func.func @transform_1(%arg0: i32) -> (i32, i32) {
    %c0_i32 = arith.constant 0 : i32
    %c0_i32_0 = arith.constant 0 : i32
    %c0_i32_1 = arith.constant 0 : i32
    return %c0_i32, %c0_i32_0 : i32, i32
  }
  func.func @transform_2(%arg0: i32) -> (i32, i32) {
    %c0_i32 = arith.constant 0 : i32
    %c0_i32_0 = arith.constant 0 : i32
    %c0_i32_1 = arith.constant 0 : i32
    return %c0_i32, %c0_i32_0 : i32, i32
  }
  func.func @transform_3(%arg0: i32) -> (i32, i32, i32) {
    %c0_i32 = arith.constant 0 : i32
    %c0_i32_0 = arith.constant 0 : i32
    %c0_i32_1 = arith.constant 0 : i32
    %c0_i32_2 = arith.constant 0 : i32
    return %c0_i32, %c0_i32_0, %c0_i32_1 : i32, i32, i32
  }
  func.func @transform_4(%arg0: i32) -> (i32, i32) {
    %c0_i32 = arith.constant 0 : i32
    %c0_i32_0 = arith.constant 0 : i32
    %c0_i32_1 = arith.constant 0 : i32
    return %c0_i32, %c0_i32_0 : i32, i32
  }
  func.func @transform_5(%arg0: i32) -> (i32, i32) {
    %c0_i32 = arith.constant 0 : i32
    %c0_i32_0 = arith.constant 0 : i32
    %c0_i32_1 = arith.constant 0 : i32
    return %c0_i32, %c0_i32_0 : i32, i32
  }
  func.func @transform_6(%arg0: i32) -> (i32, i32, i32) {
    %c0_i32 = arith.constant 0 : i32
    %c0_i32_0 = arith.constant 0 : i32
    %c0_i32_1 = arith.constant 0 : i32
    return %arg0, %c0_i32, %c0_i32_0 : i32, i32, i32
  }
}

module attributes {stable_mosaic.version = 11 : i64} {
  func.func @_conv_bn_apply_kernel(%arg0: i32, %arg1: memref<1x16x128xf32, #tpu.memory_space<vmem>>, %arg2: memref<640x128xf32, #tpu.memory_space<vmem>>, %arg3: memref<1x128xf32, #tpu.memory_space<vmem>>, %arg4: memref<2x2x128xf32, #tpu.memory_space<vmem>>, %arg5: memref<1x128xf32, #tpu.memory_space<vmem>>, %arg6: memref<1x128xf32, #tpu.memory_space<vmem>>, %arg7: memref<1x16x128xf32, #tpu.memory_space<vmem>>) attributes {dimension_semantics = [#tpu.dimension_semantics<parallel>], iteration_bounds = array<i64: 2>, scalar_prefetch = 0 : i64, scratch_operands = 0 : i64, tpu.core_type = #tpu.core_type<tc>, window_params = [{transform_indices = @transform_0, window_bounds = array<i64: 1, 16, 128>}, {pipeline_mode = #tpu.pipeline_mode<synchronous>, transform_indices = @transform_1, window_bounds = array<i64: 640, 128>}, {pipeline_mode = #tpu.pipeline_mode<synchronous>, transform_indices = @transform_2, window_bounds = array<i64: 1, 128>}, {pipeline_mode = #tpu.pipeline_mode<synchronous>, transform_indices = @transform_3, window_bounds = array<i64: 2, 2, 128>}, {pipeline_mode = #tpu.pipeline_mode<synchronous>, transform_indices = @transform_4, window_bounds = array<i64: 1, 128>}, {pipeline_mode = #tpu.pipeline_mode<synchronous>, transform_indices = @transform_5, window_bounds = array<i64: 1, 128>}, {transform_indices = @transform_6, window_bounds = array<i64: 1, 16, 128>}]} {
    %c0 = arith.constant 0 : index
    %c0_0 = arith.constant 0 : index
    %c0_1 = arith.constant 0 : index
    %0 = vector.load %arg1[%c0, %c0_0, %c0_1] : memref<1x16x128xf32, #tpu.memory_space<vmem>>, vector<1x16x128xf32>
    %1 = vector.shape_cast %0 : vector<1x16x128xf32> to vector<16x128xf32>
    %cst = arith.constant 0.000000e+00 : f32
    %2 = vector.broadcast %cst : f32 to vector<2x128xf32>
    %cst_2 = arith.constant 0.000000e+00 : f32
    %3 = vector.broadcast %cst_2 : f32 to vector<2x128xf32>
    %4 = tpu.concatenate %2, %1, %3 in 0 : vector<2x128xf32>, vector<16x128xf32>, vector<2x128xf32> -> vector<20x128xf32>
    %5 = vector.extract_strided_slice %4 {offsets = [0, 0], sizes = [16, 128], strides = [1, 1]} : vector<20x128xf32> to vector<16x128xf32>
    %6 = vector.extract_strided_slice %4 {offsets = [1, 0], sizes = [16, 128], strides = [1, 1]} : vector<20x128xf32> to vector<16x128xf32>
    %7 = vector.extract_strided_slice %4 {offsets = [2, 0], sizes = [16, 128], strides = [1, 1]} : vector<20x128xf32> to vector<16x128xf32>
    %8 = vector.extract_strided_slice %4 {offsets = [3, 0], sizes = [16, 128], strides = [1, 1]} : vector<20x128xf32> to vector<16x128xf32>
    %9 = vector.extract_strided_slice %4 {offsets = [4, 0], sizes = [16, 128], strides = [1, 1]} : vector<20x128xf32> to vector<16x128xf32>
    %10 = tpu.concatenate %5, %6, %7, %8, %9 in 1 : vector<16x128xf32>, vector<16x128xf32>, vector<16x128xf32>, vector<16x128xf32>, vector<16x128xf32> -> vector<16x640xf32>
    %c0_3 = arith.constant 0 : index
    %c0_4 = arith.constant 0 : index
    %11 = vector.load %arg2[%c0_3, %c0_4] : memref<640x128xf32, #tpu.memory_space<vmem>>, vector<640x128xf32>
    %cst_5 = arith.constant dense<0.000000e+00> : vector<16x128xf32>
    %12 = tpu.matmul %10, %11, %cst_5 {dimension_numbers = #tpu.dot_dimension_numbers<[1], [0], [0], [1], [0, 0, 1, 1], [], []>} : vector<16x640xf32>, vector<640x128xf32>, vector<16x128xf32> -> vector<16x128xf32>
    %c0_6 = arith.constant 0 : index
    %c0_7 = arith.constant 0 : index
    %13 = vector.load %arg3[%c0_6, %c0_7] : memref<1x128xf32, #tpu.memory_space<vmem>>, vector<1x128xf32>
    %14 = vector.broadcast %13 : vector<1x128xf32> to vector<16x128xf32>
    %15 = arith.addf %12, %14 : vector<16x128xf32>
    %c0_8 = arith.constant 0 : index
    %c0_9 = arith.constant 0 : index
    %c0_10 = arith.constant 0 : index
    %16 = vector.load %arg4[%c0_8, %c0_9, %c0_10] : memref<2x2x128xf32, #tpu.memory_space<vmem>>, vector<2x2x128xf32>
    %cst_11 = arith.constant dense<0.000000e+00> : vector<2x128xf32>
    %17 = vector.multi_reduction <add>, %16, %cst_11 [0] : vector<2x2x128xf32> to vector<2x128xf32>
    %18 = vector.extract_strided_slice %17 {offsets = [0, 0], sizes = [1, 128], strides = [1, 1]} : vector<2x128xf32> to vector<1x128xf32>
    %cst_12 = arith.constant 3.200000e+01 : f32
    %19 = vector.broadcast %cst_12 : f32 to vector<1x128xf32>
    %20 = arith.divf %18, %19 : vector<1x128xf32>
    %21 = vector.extract_strided_slice %17 {offsets = [1, 0], sizes = [1, 128], strides = [1, 1]} : vector<2x128xf32> to vector<1x128xf32>
    %cst_13 = arith.constant 3.200000e+01 : f32
    %22 = vector.broadcast %cst_13 : f32 to vector<1x128xf32>
    %23 = arith.divf %21, %22 : vector<1x128xf32>
    %24 = arith.mulf %20, %20 : vector<1x128xf32>
    %25 = arith.subf %23, %24 : vector<1x128xf32>
    %cst_14 = arith.constant 0.000000e+00 : f32
    %26 = vector.broadcast %cst_14 : f32 to vector<1x128xf32>
    %27 = arith.maximumf %25, %26 : vector<1x128xf32>
    %c0_15 = arith.constant 0 : index
    %c0_16 = arith.constant 0 : index
    %28 = vector.load %arg5[%c0_15, %c0_16] : memref<1x128xf32, #tpu.memory_space<vmem>>, vector<1x128xf32>
    %cst_17 = arith.constant 9.99999974E-6 : f32
    %29 = vector.broadcast %cst_17 : f32 to vector<1x128xf32>
    %30 = arith.addf %27, %29 : vector<1x128xf32>
    %31 = math.rsqrt %30 : vector<1x128xf32>
    %32 = arith.mulf %28, %31 : vector<1x128xf32>
    %c0_18 = arith.constant 0 : index
    %c0_19 = arith.constant 0 : index
    %33 = vector.load %arg6[%c0_18, %c0_19] : memref<1x128xf32, #tpu.memory_space<vmem>>, vector<1x128xf32>
    %34 = arith.mulf %20, %32 : vector<1x128xf32>
    %35 = arith.subf %33, %34 : vector<1x128xf32>
    %36 = vector.broadcast %32 : vector<1x128xf32> to vector<16x128xf32>
    %37 = arith.mulf %15, %36 : vector<16x128xf32>
    %38 = vector.broadcast %35 : vector<1x128xf32> to vector<16x128xf32>
    %39 = arith.addf %37, %38 : vector<16x128xf32>
    %cst_20 = arith.constant 0.000000e+00 : f32
    %40 = vector.broadcast %cst_20 : f32 to vector<16x128xf32>
    %41 = arith.maximumf %39, %40 : vector<16x128xf32>
    %c0_21 = arith.constant 0 : index
    %c0_22 = arith.constant 0 : index
    %c0_23 = arith.constant 0 : index
    %42 = vector.load %arg7[%c0_21, %c0_22, %c0_23] : memref<1x16x128xf32, #tpu.memory_space<vmem>>, vector<1x16x128xf32>
    %43 = vector.shape_cast %42 : vector<1x16x128xf32> to vector<16x128xf32>
    %44 = vector.shape_cast %41 : vector<16x128xf32> to vector<1x16x128xf32>
    tpu.vector_store %arg7[%c0_21, %c0_22, %c0_23], %44 {strides = array<i32>} : memref<1x16x128xf32, #tpu.memory_space<vmem>>, vector<1x16x128xf32>,
    return
  }
  func.func @transform_0(%arg0: i32) -> (i32, i32, i32) {
    %c0_i32 = arith.constant 0 : i32
    %c0_i32_0 = arith.constant 0 : i32
    %c0_i32_1 = arith.constant 0 : i32
    return %arg0, %c0_i32, %c0_i32_0 : i32, i32, i32
  }
  func.func @transform_1(%arg0: i32) -> (i32, i32) {
    %c0_i32 = arith.constant 0 : i32
    %c0_i32_0 = arith.constant 0 : i32
    %c0_i32_1 = arith.constant 0 : i32
    return %c0_i32, %c0_i32_0 : i32, i32
  }
  func.func @transform_2(%arg0: i32) -> (i32, i32) {
    %c0_i32 = arith.constant 0 : i32
    %c0_i32_0 = arith.constant 0 : i32
    %c0_i32_1 = arith.constant 0 : i32
    return %c0_i32, %c0_i32_0 : i32, i32
  }
  func.func @transform_3(%arg0: i32) -> (i32, i32, i32) {
    %c0_i32 = arith.constant 0 : i32
    %c0_i32_0 = arith.constant 0 : i32
    %c0_i32_1 = arith.constant 0 : i32
    %c0_i32_2 = arith.constant 0 : i32
    return %c0_i32, %c0_i32_0, %c0_i32_1 : i32, i32, i32
  }
  func.func @transform_4(%arg0: i32) -> (i32, i32) {
    %c0_i32 = arith.constant 0 : i32
    %c0_i32_0 = arith.constant 0 : i32
    %c0_i32_1 = arith.constant 0 : i32
    return %c0_i32, %c0_i32_0 : i32, i32
  }
  func.func @transform_5(%arg0: i32) -> (i32, i32) {
    %c0_i32 = arith.constant 0 : i32
    %c0_i32_0 = arith.constant 0 : i32
    %c0_i32_1 = arith.constant 0 : i32
    return %c0_i32, %c0_i32_0 : i32, i32
  }
  func.func @transform_6(%arg0: i32) -> (i32, i32, i32) {
    %c0_i32 = arith.constant 0 : i32
    %c0_i32_0 = arith.constant 0 : i32
    %c0_i32_1 = arith.constant 0 : i32
    return %arg0, %c0_i32, %c0_i32_0 : i32, i32, i32
  }
}

module attributes {stable_mosaic.version = 11 : i64} {
  func.func @_conv_stats_kernel(%arg0: i32, %arg1: memref<1x16x128xf32, #tpu.memory_space<vmem>>, %arg2: memref<640x128xf32, #tpu.memory_space<vmem>>, %arg3: memref<1x128xf32, #tpu.memory_space<vmem>>, %arg4: memref<1x2x128xf32, #tpu.memory_space<vmem>>) attributes {dimension_semantics = [#tpu.dimension_semantics<parallel>], iteration_bounds = array<i64: 2>, scalar_prefetch = 0 : i64, scratch_operands = 0 : i64, tpu.core_type = #tpu.core_type<tc>, window_params = [{transform_indices = @transform_0, window_bounds = array<i64: 1, 16, 128>}, {pipeline_mode = #tpu.pipeline_mode<synchronous>, transform_indices = @transform_1, window_bounds = array<i64: 640, 128>}, {pipeline_mode = #tpu.pipeline_mode<synchronous>, transform_indices = @transform_2, window_bounds = array<i64: 1, 128>}, {transform_indices = @transform_3, window_bounds = array<i64: 1, 2, 128>}]} {
    %c0 = arith.constant 0 : index
    %c0_0 = arith.constant 0 : index
    %c0_1 = arith.constant 0 : index
    %0 = vector.load %arg1[%c0, %c0_0, %c0_1] : memref<1x16x128xf32, #tpu.memory_space<vmem>>, vector<1x16x128xf32>
    %1 = vector.shape_cast %0 : vector<1x16x128xf32> to vector<16x128xf32>
    %cst = arith.constant 0.000000e+00 : f32
    %2 = vector.broadcast %cst : f32 to vector<2x128xf32>
    %cst_2 = arith.constant 0.000000e+00 : f32
    %3 = vector.broadcast %cst_2 : f32 to vector<2x128xf32>
    %4 = tpu.concatenate %2, %1, %3 in 0 : vector<2x128xf32>, vector<16x128xf32>, vector<2x128xf32> -> vector<20x128xf32>
    %5 = vector.extract_strided_slice %4 {offsets = [0, 0], sizes = [16, 128], strides = [1, 1]} : vector<20x128xf32> to vector<16x128xf32>
    %6 = vector.extract_strided_slice %4 {offsets = [1, 0], sizes = [16, 128], strides = [1, 1]} : vector<20x128xf32> to vector<16x128xf32>
    %7 = vector.extract_strided_slice %4 {offsets = [2, 0], sizes = [16, 128], strides = [1, 1]} : vector<20x128xf32> to vector<16x128xf32>
    %8 = vector.extract_strided_slice %4 {offsets = [3, 0], sizes = [16, 128], strides = [1, 1]} : vector<20x128xf32> to vector<16x128xf32>
    %9 = vector.extract_strided_slice %4 {offsets = [4, 0], sizes = [16, 128], strides = [1, 1]} : vector<20x128xf32> to vector<16x128xf32>
    %10 = tpu.concatenate %5, %6, %7, %8, %9 in 1 : vector<16x128xf32>, vector<16x128xf32>, vector<16x128xf32>, vector<16x128xf32>, vector<16x128xf32> -> vector<16x640xf32>
    %c0_3 = arith.constant 0 : index
    %c0_4 = arith.constant 0 : index
    %11 = vector.load %arg2[%c0_3, %c0_4] : memref<640x128xf32, #tpu.memory_space<vmem>>, vector<640x128xf32>
    %cst_5 = arith.constant dense<0.000000e+00> : vector<16x128xf32>
    %12 = tpu.matmul %10, %11, %cst_5 {dimension_numbers = #tpu.dot_dimension_numbers<[1], [0], [0], [1], [0, 0, 1, 1], [], []>} : vector<16x640xf32>, vector<640x128xf32>, vector<16x128xf32> -> vector<16x128xf32>
    %c0_6 = arith.constant 0 : index
    %c0_7 = arith.constant 0 : index
    %13 = vector.load %arg3[%c0_6, %c0_7] : memref<1x128xf32, #tpu.memory_space<vmem>>, vector<1x128xf32>
    %14 = vector.broadcast %13 : vector<1x128xf32> to vector<16x128xf32>
    %15 = arith.addf %12, %14 : vector<16x128xf32>
    %cst_8 = arith.constant dense<0.000000e+00> : vector<128xf32>
    %16 = vector.multi_reduction <add>, %15, %cst_8 [0] : vector<16x128xf32> to vector<128xf32>
    %17 = vector.shape_cast %16 : vector<128xf32> to vector<1x128xf32>
    %18 = arith.mulf %15, %15 : vector<16x128xf32>
    %cst_9 = arith.constant dense<0.000000e+00> : vector<128xf32>
    %19 = vector.multi_reduction <add>, %18, %cst_9 [0] : vector<16x128xf32> to vector<128xf32>
    %20 = vector.shape_cast %19 : vector<128xf32> to vector<1x128xf32>
    %21 = tpu.concatenate %17, %20 in 0 : vector<1x128xf32>, vector<1x128xf32> -> vector<2x128xf32>
    %c0_10 = arith.constant 0 : index
    %c0_11 = arith.constant 0 : index
    %c0_12 = arith.constant 0 : index
    %22 = vector.load %arg4[%c0_10, %c0_11, %c0_12] : memref<1x2x128xf32, #tpu.memory_space<vmem>>, vector<1x2x128xf32>
    %23 = vector.shape_cast %22 : vector<1x2x128xf32> to vector<2x128xf32>
    %24 = vector.shape_cast %21 : vector<2x128xf32> to vector<1x2x128xf32>
    tpu.vector_store %arg4[%c0_10, %c0_11, %c0_12], %24 {strides = array<i32>} : memref<1x2x128xf32, #tpu.memory_space<vmem>>, vector<1x2x128xf32>,
    return
  }
  func.func @transform_0(%arg0: i32) -> (i32, i32, i32) {
    %c0_i32 = arith.constant 0 : i32
    %c0_i32_0 = arith.constant 0 : i32
    %c0_i32_1 = arith.constant 0 : i32
    return %arg0, %c0_i32, %c0_i32_0 : i32, i32, i32
  }
  func.func @transform_1(%arg0: i32) -> (i32, i32) {
    %c0_i32 = arith.constant 0 : i32
    %c0_i32_0 = arith.constant 0 : i32
    %c0_i32_1 = arith.constant 0 : i32
    return %c0_i32, %c0_i32_0 : i32, i32
  }
  func.func @transform_2(%arg0: i32) -> (i32, i32) {
    %c0_i32 = arith.constant 0 : i32
    %c0_i32_0 = arith.constant 0 : i32
    %c0_i32_1 = arith.constant 0 : i32
    return %c0_i32, %c0_i32_0 : i32, i32
  }
  func.func @transform_3(%arg0: i32) -> (i32, i32, i32) {
    %c0_i32 = arith.constant 0 : i32
    %c0_i32_0 = arith.constant 0 : i32
    %c0_i32_1 = arith.constant 0 : i32
    return %arg0, %c0_i32, %c0_i32_0 : i32, i32, i32
  }
}

module attributes {stable_mosaic.version = 11 : i64} {
  func.func @_conv_stats_kernel(%arg0: i32, %arg1: memref<1x16x128xf32, #tpu.memory_space<vmem>>, %arg2: memref<384x128xf32, #tpu.memory_space<vmem>>, %arg3: memref<1x128xf32, #tpu.memory_space<vmem>>, %arg4: memref<1x2x128xf32, #tpu.memory_space<vmem>>) attributes {dimension_semantics = [#tpu.dimension_semantics<parallel>], iteration_bounds = array<i64: 2>, scalar_prefetch = 0 : i64, scratch_operands = 0 : i64, tpu.core_type = #tpu.core_type<tc>, window_params = [{transform_indices = @transform_0, window_bounds = array<i64: 1, 16, 128>}, {pipeline_mode = #tpu.pipeline_mode<synchronous>, transform_indices = @transform_1, window_bounds = array<i64: 384, 128>}, {pipeline_mode = #tpu.pipeline_mode<synchronous>, transform_indices = @transform_2, window_bounds = array<i64: 1, 128>}, {transform_indices = @transform_3, window_bounds = array<i64: 1, 2, 128>}]} {
    %c0 = arith.constant 0 : index
    %c0_0 = arith.constant 0 : index
    %c0_1 = arith.constant 0 : index
    %0 = vector.load %arg1[%c0, %c0_0, %c0_1] : memref<1x16x128xf32, #tpu.memory_space<vmem>>, vector<1x16x128xf32>
    %1 = vector.shape_cast %0 : vector<1x16x128xf32> to vector<16x128xf32>
    %cst = arith.constant 0.000000e+00 : f32
    %2 = vector.broadcast %cst : f32 to vector<1x128xf32>
    %cst_2 = arith.constant 0.000000e+00 : f32
    %3 = vector.broadcast %cst_2 : f32 to vector<1x128xf32>
    %4 = tpu.concatenate %2, %1, %3 in 0 : vector<1x128xf32>, vector<16x128xf32>, vector<1x128xf32> -> vector<18x128xf32>
    %5 = vector.extract_strided_slice %4 {offsets = [0, 0], sizes = [16, 128], strides = [1, 1]} : vector<18x128xf32> to vector<16x128xf32>
    %6 = vector.extract_strided_slice %4 {offsets = [1, 0], sizes = [16, 128], strides = [1, 1]} : vector<18x128xf32> to vector<16x128xf32>
    %7 = vector.extract_strided_slice %4 {offsets = [2, 0], sizes = [16, 128], strides = [1, 1]} : vector<18x128xf32> to vector<16x128xf32>
    %8 = tpu.concatenate %5, %6, %7 in 1 : vector<16x128xf32>, vector<16x128xf32>, vector<16x128xf32> -> vector<16x384xf32>
    %c0_3 = arith.constant 0 : index
    %c0_4 = arith.constant 0 : index
    %9 = vector.load %arg2[%c0_3, %c0_4] : memref<384x128xf32, #tpu.memory_space<vmem>>, vector<384x128xf32>
    %cst_5 = arith.constant dense<0.000000e+00> : vector<16x128xf32>
    %10 = tpu.matmul %8, %9, %cst_5 {dimension_numbers = #tpu.dot_dimension_numbers<[1], [0], [0], [1], [0, 0, 1, 1], [], []>} : vector<16x384xf32>, vector<384x128xf32>, vector<16x128xf32> -> vector<16x128xf32>
    %c0_6 = arith.constant 0 : index
    %c0_7 = arith.constant 0 : index
    %11 = vector.load %arg3[%c0_6, %c0_7] : memref<1x128xf32, #tpu.memory_space<vmem>>, vector<1x128xf32>
    %12 = vector.broadcast %11 : vector<1x128xf32> to vector<16x128xf32>
    %13 = arith.addf %10, %12 : vector<16x128xf32>
    %cst_8 = arith.constant dense<0.000000e+00> : vector<128xf32>
    %14 = vector.multi_reduction <add>, %13, %cst_8 [0] : vector<16x128xf32> to vector<128xf32>
    %15 = vector.shape_cast %14 : vector<128xf32> to vector<1x128xf32>
    %16 = arith.mulf %13, %13 : vector<16x128xf32>
    %cst_9 = arith.constant dense<0.000000e+00> : vector<128xf32>
    %17 = vector.multi_reduction <add>, %16, %cst_9 [0] : vector<16x128xf32> to vector<128xf32>
    %18 = vector.shape_cast %17 : vector<128xf32> to vector<1x128xf32>
    %19 = tpu.concatenate %15, %18 in 0 : vector<1x128xf32>, vector<1x128xf32> -> vector<2x128xf32>
    %c0_10 = arith.constant 0 : index
    %c0_11 = arith.constant 0 : index
    %c0_12 = arith.constant 0 : index
    %20 = vector.load %arg4[%c0_10, %c0_11, %c0_12] : memref<1x2x128xf32, #tpu.memory_space<vmem>>, vector<1x2x128xf32>
    %21 = vector.shape_cast %20 : vector<1x2x128xf32> to vector<2x128xf32>
    %22 = vector.shape_cast %19 : vector<2x128xf32> to vector<1x2x128xf32>
    tpu.vector_store %arg4[%c0_10, %c0_11, %c0_12], %22 {strides = array<i32>} : memref<1x2x128xf32, #tpu.memory_space<vmem>>, vector<1x2x128xf32>,
    return
  }
  func.func @transform_0(%arg0: i32) -> (i32, i32, i32) {
    %c0_i32 = arith.constant 0 : i32
    %c0_i32_0 = arith.constant 0 : i32
    %c0_i32_1 = arith.constant 0 : i32
    return %arg0, %c0_i32, %c0_i32_0 : i32, i32, i32
  }
  func.func @transform_1(%arg0: i32) -> (i32, i32) {
    %c0_i32 = arith.constant 0 : i32
    %c0_i32_0 = arith.constant 0 : i32
    %c0_i32_1 = arith.constant 0 : i32
    return %c0_i32, %c0_i32_0 : i32, i32
  }
  func.func @transform_2(%arg0: i32) -> (i32, i32) {
    %c0_i32 = arith.constant 0 : i32
    %c0_i32_0 = arith.constant 0 : i32
    %c0_i32_1 = arith.constant 0 : i32
    return %c0_i32, %c0_i32_0 : i32, i32
  }
  func.func @transform_3(%arg0: i32) -> (i32, i32, i32) {
    %c0_i32 = arith.constant 0 : i32
    %c0_i32_0 = arith.constant 0 : i32
    %c0_i32_1 = arith.constant 0 : i32
    return %arg0, %c0_i32, %c0_i32_0 : i32, i32, i32
  }
}

module attributes {stable_mosaic.version = 11 : i64} {
  func.func @_conv_bn_shortcut_kernel(%arg0: i32, %arg1: memref<1x16x128xf32, #tpu.memory_space<vmem>>, %arg2: memref<1x16x128xf32, #tpu.memory_space<vmem>>, %arg3: memref<384x128xf32, #tpu.memory_space<vmem>>, %arg4: memref<1x128xf32, #tpu.memory_space<vmem>>, %arg5: memref<2x2x128xf32, #tpu.memory_space<vmem>>, %arg6: memref<1x128xf32, #tpu.memory_space<vmem>>, %arg7: memref<1x128xf32, #tpu.memory_space<vmem>>, %arg8: memref<128x128xf32, #tpu.memory_space<vmem>>, %arg9: memref<1x128xf32, #tpu.memory_space<vmem>>, %arg10: memref<1x16x128xf32, #tpu.memory_space<vmem>>) attributes {dimension_semantics = [#tpu.dimension_semantics<parallel>], iteration_bounds = array<i64: 2>, scalar_prefetch = 0 : i64, scratch_operands = 0 : i64, tpu.core_type = #tpu.core_type<tc>, window_params = [{transform_indices = @transform_0, window_bounds = array<i64: 1, 16, 128>}, {transform_indices = @transform_1, window_bounds = array<i64: 1, 16, 128>}, {pipeline_mode = #tpu.pipeline_mode<synchronous>, transform_indices = @transform_2, window_bounds = array<i64: 384, 128>}, {pipeline_mode = #tpu.pipeline_mode<synchronous>, transform_indices = @transform_3, window_bounds = array<i64: 1, 128>}, {pipeline_mode = #tpu.pipeline_mode<synchronous>, transform_indices = @transform_4, window_bounds = array<i64: 2, 2, 128>}, {pipeline_mode = #tpu.pipeline_mode<synchronous>, transform_indices = @transform_5, window_bounds = array<i64: 1, 128>}, {pipeline_mode = #tpu.pipeline_mode<synchronous>, transform_indices = @transform_6, window_bounds = array<i64: 1, 128>}, {pipeline_mode = #tpu.pipeline_mode<synchronous>, transform_indices = @transform_7, window_bounds = array<i64: 128, 128>}, {pipeline_mode = #tpu.pipeline_mode<synchronous>, transform_indices = @transform_8, window_bounds = array<i64: 1, 128>}, {transform_indices = @transform_9, window_bounds = array<i64: 1, 16, 128>}]} {
    %c0 = arith.constant 0 : index
    %c0_0 = arith.constant 0 : index
    %c0_1 = arith.constant 0 : index
    %0 = vector.load %arg1[%c0, %c0_0, %c0_1] : memref<1x16x128xf32, #tpu.memory_space<vmem>>, vector<1x16x128xf32>
    %1 = vector.shape_cast %0 : vector<1x16x128xf32> to vector<16x128xf32>
    %cst = arith.constant 0.000000e+00 : f32
    %2 = vector.broadcast %cst : f32 to vector<1x128xf32>
    %cst_2 = arith.constant 0.000000e+00 : f32
    %3 = vector.broadcast %cst_2 : f32 to vector<1x128xf32>
    %4 = tpu.concatenate %2, %1, %3 in 0 : vector<1x128xf32>, vector<16x128xf32>, vector<1x128xf32> -> vector<18x128xf32>
    %5 = vector.extract_strided_slice %4 {offsets = [0, 0], sizes = [16, 128], strides = [1, 1]} : vector<18x128xf32> to vector<16x128xf32>
    %6 = vector.extract_strided_slice %4 {offsets = [1, 0], sizes = [16, 128], strides = [1, 1]} : vector<18x128xf32> to vector<16x128xf32>
    %7 = vector.extract_strided_slice %4 {offsets = [2, 0], sizes = [16, 128], strides = [1, 1]} : vector<18x128xf32> to vector<16x128xf32>
    %8 = tpu.concatenate %5, %6, %7 in 1 : vector<16x128xf32>, vector<16x128xf32>, vector<16x128xf32> -> vector<16x384xf32>
    %c0_3 = arith.constant 0 : index
    %c0_4 = arith.constant 0 : index
    %9 = vector.load %arg3[%c0_3, %c0_4] : memref<384x128xf32, #tpu.memory_space<vmem>>, vector<384x128xf32>
    %cst_5 = arith.constant dense<0.000000e+00> : vector<16x128xf32>
    %10 = tpu.matmul %8, %9, %cst_5 {dimension_numbers = #tpu.dot_dimension_numbers<[1], [0], [0], [1], [0, 0, 1, 1], [], []>} : vector<16x384xf32>, vector<384x128xf32>, vector<16x128xf32> -> vector<16x128xf32>
    %c0_6 = arith.constant 0 : index
    %c0_7 = arith.constant 0 : index
    %11 = vector.load %arg4[%c0_6, %c0_7] : memref<1x128xf32, #tpu.memory_space<vmem>>, vector<1x128xf32>
    %12 = vector.broadcast %11 : vector<1x128xf32> to vector<16x128xf32>
    %13 = arith.addf %10, %12 : vector<16x128xf32>
    %c0_8 = arith.constant 0 : index
    %c0_9 = arith.constant 0 : index
    %c0_10 = arith.constant 0 : index
    %14 = vector.load %arg5[%c0_8, %c0_9, %c0_10] : memref<2x2x128xf32, #tpu.memory_space<vmem>>, vector<2x2x128xf32>
    %cst_11 = arith.constant dense<0.000000e+00> : vector<2x128xf32>
    %15 = vector.multi_reduction <add>, %14, %cst_11 [0] : vector<2x2x128xf32> to vector<2x128xf32>
    %16 = vector.extract_strided_slice %15 {offsets = [0, 0], sizes = [1, 128], strides = [1, 1]} : vector<2x128xf32> to vector<1x128xf32>
    %cst_12 = arith.constant 3.200000e+01 : f32
    %17 = vector.broadcast %cst_12 : f32 to vector<1x128xf32>
    %18 = arith.divf %16, %17 : vector<1x128xf32>
    %19 = vector.extract_strided_slice %15 {offsets = [1, 0], sizes = [1, 128], strides = [1, 1]} : vector<2x128xf32> to vector<1x128xf32>
    %cst_13 = arith.constant 3.200000e+01 : f32
    %20 = vector.broadcast %cst_13 : f32 to vector<1x128xf32>
    %21 = arith.divf %19, %20 : vector<1x128xf32>
    %22 = arith.mulf %18, %18 : vector<1x128xf32>
    %23 = arith.subf %21, %22 : vector<1x128xf32>
    %cst_14 = arith.constant 0.000000e+00 : f32
    %24 = vector.broadcast %cst_14 : f32 to vector<1x128xf32>
    %25 = arith.maximumf %23, %24 : vector<1x128xf32>
    %c0_15 = arith.constant 0 : index
    %c0_16 = arith.constant 0 : index
    %26 = vector.load %arg6[%c0_15, %c0_16] : memref<1x128xf32, #tpu.memory_space<vmem>>, vector<1x128xf32>
    %cst_17 = arith.constant 9.99999974E-6 : f32
    %27 = vector.broadcast %cst_17 : f32 to vector<1x128xf32>
    %28 = arith.addf %25, %27 : vector<1x128xf32>
    %29 = math.rsqrt %28 : vector<1x128xf32>
    %30 = arith.mulf %26, %29 : vector<1x128xf32>
    %c0_18 = arith.constant 0 : index
    %c0_19 = arith.constant 0 : index
    %31 = vector.load %arg7[%c0_18, %c0_19] : memref<1x128xf32, #tpu.memory_space<vmem>>, vector<1x128xf32>
    %32 = arith.mulf %18, %30 : vector<1x128xf32>
    %33 = arith.subf %31, %32 : vector<1x128xf32>
    %c0_20 = arith.constant 0 : index
    %c0_21 = arith.constant 0 : index
    %c0_22 = arith.constant 0 : index
    %34 = vector.load %arg2[%c0_20, %c0_21, %c0_22] : memref<1x16x128xf32, #tpu.memory_space<vmem>>, vector<1x16x128xf32>
    %35 = vector.shape_cast %34 : vector<1x16x128xf32> to vector<16x128xf32>
    %c0_23 = arith.constant 0 : index
    %c0_24 = arith.constant 0 : index
    %36 = vector.load %arg8[%c0_23, %c0_24] : memref<128x128xf32, #tpu.memory_space<vmem>>, vector<128x128xf32>
    %cst_25 = arith.constant dense<0.000000e+00> : vector<16x128xf32>
    %37 = tpu.matmul %35, %36, %cst_25 {dimension_numbers = #tpu.dot_dimension_numbers<[1], [0], [0], [1], [0, 0, 1, 1], [], []>} : vector<16x128xf32>, vector<128x128xf32>, vector<16x128xf32> -> vector<16x128xf32>
    %c0_26 = arith.constant 0 : index
    %c0_27 = arith.constant 0 : index
    %38 = vector.load %arg9[%c0_26, %c0_27] : memref<1x128xf32, #tpu.memory_space<vmem>>, vector<1x128xf32>
    %39 = vector.broadcast %38 : vector<1x128xf32> to vector<16x128xf32>
    %40 = arith.addf %37, %39 : vector<16x128xf32>
    %41 = vector.broadcast %30 : vector<1x128xf32> to vector<16x128xf32>
    %42 = arith.mulf %13, %41 : vector<16x128xf32>
    %43 = vector.broadcast %33 : vector<1x128xf32> to vector<16x128xf32>
    %44 = arith.addf %42, %43 : vector<16x128xf32>
    %45 = arith.addf %44, %40 : vector<16x128xf32>
    %cst_28 = arith.constant 0.000000e+00 : f32
    %46 = vector.broadcast %cst_28 : f32 to vector<16x128xf32>
    %47 = arith.maximumf %45, %46 : vector<16x128xf32>
    %c0_29 = arith.constant 0 : index
    %c0_30 = arith.constant 0 : index
    %c0_31 = arith.constant 0 : index
    %48 = vector.load %arg10[%c0_29, %c0_30, %c0_31] : memref<1x16x128xf32, #tpu.memory_space<vmem>>, vector<1x16x128xf32>
    %49 = vector.shape_cast %48 : vector<1x16x128xf32> to vector<16x128xf32>
    %50 = vector.shape_cast %47 : vector<16x128xf32> to vector<1x16x128xf32>
    tpu.vector_store %arg10[%c0_29, %c0_30, %c0_31], %50 {strides = array<i32>} : memref<1x16x128xf32, #tpu.memory_space<vmem>>, vector<1x16x128xf32>,
    return
  }
  func.func @transform_0(%arg0: i32) -> (i32, i32, i32) {
    %c0_i32 = arith.constant 0 : i32
    %c0_i32_0 = arith.constant 0 : i32
    %c0_i32_1 = arith.constant 0 : i32
    return %arg0, %c0_i32, %c0_i32_0 : i32, i32, i32
  }
  func.func @transform_1(%arg0: i32) -> (i32, i32, i32) {
    %c0_i32 = arith.constant 0 : i32
    %c0_i32_0 = arith.constant 0 : i32
    %c0_i32_1 = arith.constant 0 : i32
    return %arg0, %c0_i32, %c0_i32_0 : i32, i32, i32
  }
  func.func @transform_2(%arg0: i32) -> (i32, i32) {
    %c0_i32 = arith.constant 0 : i32
    %c0_i32_0 = arith.constant 0 : i32
    %c0_i32_1 = arith.constant 0 : i32
    return %c0_i32, %c0_i32_0 : i32, i32
  }
  func.func @transform_3(%arg0: i32) -> (i32, i32) {
    %c0_i32 = arith.constant 0 : i32
    %c0_i32_0 = arith.constant 0 : i32
    %c0_i32_1 = arith.constant 0 : i32
    return %c0_i32, %c0_i32_0 : i32, i32
  }
  func.func @transform_4(%arg0: i32) -> (i32, i32, i32) {
    %c0_i32 = arith.constant 0 : i32
    %c0_i32_0 = arith.constant 0 : i32
    %c0_i32_1 = arith.constant 0 : i32
    %c0_i32_2 = arith.constant 0 : i32
    return %c0_i32, %c0_i32_0, %c0_i32_1 : i32, i32, i32
  }
  func.func @transform_5(%arg0: i32) -> (i32, i32) {
    %c0_i32 = arith.constant 0 : i32
    %c0_i32_0 = arith.constant 0 : i32
    %c0_i32_1 = arith.constant 0 : i32
    return %c0_i32, %c0_i32_0 : i32, i32
  }
  func.func @transform_6(%arg0: i32) -> (i32, i32) {
    %c0_i32 = arith.constant 0 : i32
    %c0_i32_0 = arith.constant 0 : i32
    %c0_i32_1 = arith.constant 0 : i32
    return %c0_i32, %c0_i32_0 : i32, i32
  }
  func.func @transform_7(%arg0: i32) -> (i32, i32) {
    %c0_i32 = arith.constant 0 : i32
    %c0_i32_0 = arith.constant 0 : i32
    %c0_i32_1 = arith.constant 0 : i32
    return %c0_i32, %c0_i32_0 : i32, i32
  }
  func.func @transform_8(%arg0: i32) -> (i32, i32) {
    %c0_i32 = arith.constant 0 : i32
    %c0_i32_0 = arith.constant 0 : i32
    %c0_i32_1 = arith.constant 0 : i32
    return %c0_i32, %c0_i32_0 : i32, i32
  }
  func.func @transform_9(%arg0: i32) -> (i32, i32, i32) {
    %c0_i32 = arith.constant 0 : i32
    %c0_i32_0 = arith.constant 0 : i32
    %c0_i32_1 = arith.constant 0 : i32
    return %arg0, %c0_i32, %c0_i32_0 : i32, i32, i32
  }
}

</mosaic_0001>

<llo_original>
// kernel: residual_block_forward.8
$region0: #{residual_block_forward.8}
  #allocation0 [shape = 'u32[]', space=smem, size = 0x4, offset = 0x4, fixed_abs, tag = 'smem constant byte address 0x4 - core index']
  #allocation1 [shape = 'u32[72,128]{1,0:T(1,128)}', space=vmem, size = 0x9000, scoped, tag = 'internal scratch']
  %s0 = inlined_call_operand.vmem [shape: f32[2,16,128], index: 0, kind: input, shape index: {}]
  %s1 = inlined_call_operand.vmem [shape: f32[640,128], index: 1, kind: input, shape index: {}]
  %s2 = inlined_call_operand.vmem [shape: f32[1,128], index: 2, kind: input, shape index: {}]
  %s3 = inlined_call_operand.vmem [shape: f32[2,2,128], index: 3, kind: output, shape index: {}]
  %s4 = sld [smem:[#allocation0]]
  $region45: #{residual_block_forward.8} parent=0
    _
  %s6 = ssub.s32 1, %s4
  %s7 = scalar_select 0, %s6, %s4
  loop: start=0, step=1, limit=4
  $region2: #{residual_block_forward.8} parent=0 // loop_pre_header
    _
  $region3: #{residual_block_forward.8} parent=0 // loop_header
    %s9 = sphi 0, %s13
    %p10 = scmp.ge.s32.totalorder %s9, 4
    %s19 = sphi 0, %s21
    %s22 = sphi 0, %s19
    %s23 = sphi 0, %s22
    %s39 = sphi 0, %s23
    %s43 = sphi 0, %s43
    %s45 = sphi 0, %s43
    %s46 = sphi 0, %s45
    %s60 = sphi 0, %s46
    %s64 = sphi 0, %s64
    %s66 = sphi 0, %s64
    %s67 = sphi 0, %s66
    %s81 = sphi 0, %s67
    %s87 = sphi 0, %s89
    %s90 = sphi 0, %s87
    %s91 = sphi 0, %s90
    %s107 = sphi 0, %s91
  $region4: #{residual_block_forward.8} parent=0 // loop_header_branch
    %12 = sbr.rel (%p10) target = $region8
  $region5: #{residual_block_forward.8} parent=0 // loop_body
    %s14 = ssub.s32 %s9, 1
    %s15 = ssub.s32 %s9, 2
    %s16 = sadd.s32 %s9, 1
    %s17 = ssub.s32 %s9, %s16
    %p18 = scmp.eq.s32.totalorder %s17, 0
    %s20 = sadd.s32 %s19, 1
    %s21 = scalar_select %p18, %s19, %s20
    %p24 = pneg %p18
    %p25 = scmp.eq.s32.totalorder %s9, 1
    %p26 = por %p24, %p25
    %p27 = scmp.ne.s32.totalorder %s19, %s22
    %p28 = scmp.eq.s32.totalorder %s9, 0
    %p29 = por %p27, %p28
    %p30 = scmp.ne.s32.totalorder %s19, %s22
    %p31 = scmp.eq.s32.totalorder %s14, 1
    %p32 = por %p30, %p31
    %p33 = scmp.ne.s32.totalorder %s22, %s23
    %p34 = scmp.eq.s32.totalorder %s14, 0
    %p35 = por %p33, %p34
    %p36 = scmp.ne.s32.totalorder %s22, %s23
    %p37 = scmp.eq.s32.totalorder %s15, 1
    %p38 = por %p36, %p37
    %p40 = scmp.ne.s32.totalorder %s23, %s39
    %p41 = scmp.eq.s32.totalorder %s15, 0
    %p42 = por %p40, %p41
    %s44 = sadd.s32 %s43, 1
    %p47 = scmp.eq.s32.totalorder %s9, 1
    %p48 = scmp.ne.s32.totalorder %s43, %s45
    %p49 = scmp.eq.s32.totalorder %s9, 0
    %p50 = por %p48, %p49
    %p51 = scmp.ne.s32.totalorder %s43, %s45
    %p52 = scmp.eq.s32.totalorder %s14, 1
    %p53 = por %p51, %p52
    %p54 = scmp.ne.s32.totalorder %s45, %s46
    %p55 = scmp.eq.s32.totalorder %s14, 0
    %p56 = por %p54, %p55
    %p57 = scmp.ne.s32.totalorder %s45, %s46
    %p58 = scmp.eq.s32.totalorder %s15, 1
    %p59 = por %p57, %p58
    %p61 = scmp.ne.s32.totalorder %s46, %s60
    %p62 = scmp.eq.s32.totalorder %s15, 0
    %p63 = por %p61, %p62
    %s65 = sadd.s32 %s64, 1
    %p68 = scmp.eq.s32.totalorder %s9, 1
    %p69 = scmp.ne.s32.totalorder %s64, %s66
    %p70 = scmp.eq.s32.totalorder %s9, 0
    %p71 = por %p69, %p70
    %p72 = scmp.ne.s32.totalorder %s64, %s66
    %p73 = scmp.eq.s32.totalorder %s14, 1
    %p74 = por %p72, %p73
    %p75 = scmp.ne.s32.totalorder %s66, %s67
    %p76 = scmp.eq.s32.totalorder %s14, 0
    %p77 = por %p75, %p76
    %p78 = scmp.ne.s32.totalorder %s66, %s67
    %p79 = scmp.eq.s32.totalorder %s15, 1
    %p80 = por %p78, %p79
    %p82 = scmp.ne.s32.totalorder %s67, %s81
    %p83 = scmp.eq.s32.totalorder %s15, 0
    %p84 = por %p82, %p83
    %s85 = ssub.s32 %s9, %s16
    %p86 = scmp.eq.s32.totalorder %s85, 0
    %s88 = sadd.s32 %s87, 1
    %s89 = scalar_select %p86, %s87, %s88
    %p92 = pneg %p86
    %p93 = scmp.eq.s32.totalorder %s9, 1
    %p94 = por %p92, %p93
    %p95 = scmp.ne.s32.totalorder %s87, %s90
    %p96 = scmp.eq.s32.totalorder %s9, 0
    %p97 = por %p95, %p96
    %p98 = scmp.ne.s32.totalorder %s87, %s90
    %p99 = scmp.eq.s32.totalorder %s14, 1
    %p100 = por %p98, %p99
    %p101 = scmp.ne.s32.totalorder %s90, %s91
    %p102 = scmp.eq.s32.totalorder %s14, 0
    %p103 = por %p101, %p102
    %p104 = scmp.ne.s32.totalorder %s90, %s91
    %p105 = scmp.eq.s32.totalorder %s15, 1
    %p106 = por %p104, %p105
    %p108 = scmp.ne.s32.totalorder %s91, %s107
    %p109 = scmp.eq.s32.totalorder %s15, 0
    %p110 = por %p108, %p109
    %p111 = scmp.le.s32.totalorder 1, %s9
    %p112 = scmp.lt.s32.totalorder %s9, 3
    %p113 = pnand %p111, %p112
    %p114 = pneg %p113
    // Predicated region
    $region9: #{residual_block_forward.8} parent=5 // pred_check
      _
    $region10: #{residual_block_forward.8} parent=5 // pred_check_branch
      %116 = sbr.rel (%p113) target = $region12
    $region11: #{residual_block_forward.8} parent=5 // pred_region
      %s117 = ssub.s32 %s9, 1
      // Predicated region
      $region13: #{residual_block_forward.8} parent=11 // pred_check
        %p118 = pneg %p56
      $region14: #{residual_block_forward.8} parent=11 // pred_check_branch
        %120 = sbr.rel (%p118) target = $region16
      $region15: #{residual_block_forward.8} parent=11 // pred_region
        _
      $region16: #{residual_block_forward.8} parent=11 // pred_fallthru
        _
      // Predicated region
      $region17: #{residual_block_forward.8} parent=11 // pred_check
        %p121 = pneg %p77
      $region18: #{residual_block_forward.8} parent=11 // pred_check_branch
        %123 = sbr.rel (%p121) target = $region20
      $region19: #{residual_block_forward.8} parent=11 // pred_region
        _
      $region20: #{residual_block_forward.8} parent=11 // pred_fallthru
        _
    $region12: #{residual_block_forward.8} parent=5 // pred_fallthru
      _
    %p124 = scmp.lt.s32.totalorder %s9, 2
    // Predicated region
    $region21: #{residual_block_forward.8} parent=5 // pred_check
      %p125 = pneg %p124
    $region22: #{residual_block_forward.8} parent=5 // pred_check_branch
      %127 = sbr.rel (%p125) target = $region24
    $region23: #{residual_block_forward.8} parent=5 // pred_region
      // Predicated region
      $region25: #{residual_block_forward.8} parent=23 // pred_check
        %p128 = pneg %p29
      $region26: #{residual_block_forward.8} parent=23 // pred_check_branch
        %130 = sbr.rel (%p128) target = $region28
      $region27: #{residual_block_forward.8} parent=23 // pred_region
        %p131 = scmp.lt.s32.totalorder %s9, 1
        %s132 = scalar_select %p131, %s9, 1
        %s133 = smul.addr %s132, 2
        %s134 = smul.addr %s133, 8
        %s135 = scalar_lea.vmem %s0, %s134
      $region28: #{residual_block_forward.8} parent=23 // pred_fallthru
        _
    $region24: #{residual_block_forward.8} parent=5 // pred_fallthru
      _
    %p136 = scmp.le.s32.totalorder 1, %s9
    %p137 = scmp.lt.s32.totalorder %s9, 3
    %p138 = pnand %p136, %p137
    %p139 = pneg %p138
    // Predicated region
    $region29: #{residual_block_forward.8} parent=5 // pred_check
      _
    $region30: #{residual_block_forward.8} parent=5 // pred_check_branch
      %141 = sbr.rel (%p138) target = $region32
    $region31: #{residual_block_forward.8} parent=5 // pred_region
      %s142 = ssub.s32 %s9, 1
      %p143 = scmp.lt.s32.totalorder %s14, 1
      %s144 = scalar_select %p143, %s14, 1
      %s145 = smul.addr %s144, 2
      %s146 = smul.addr %s145, 8
      %s147 = scalar_lea.vmem %s0, %s146
      %p148 = pneg %p35
      %p149 = pneg %p32
      %p150 = pneg %p56
      %p151 = pneg %p53
      %p152 = pneg %p77
      %p153 = pneg %p74
      %p154 = pneg %p103
      %p155 = pneg %p100
      %p156 = scmp.lt.s32.totalorder %s14, 1
      %s157 = scalar_select %p156, %s14, 1
      %s158 = smul.addr %s157, 2
      %s159 = scalar_lea.vmem %s3, %s158
      %p160 = scmp.lt.s32.totalorder %s14, 1
      %s161 = scalar_select %p160, %s14, 1
      %s162 = smul.addr %s161, 2
      %s163 = smul.addr %s162, 8
      %s164 = scalar_lea.vmem %s0, %s163
      %p165 = scmp.lt.s32.totalorder %s14, 1
      %s166 = scalar_select %p165, %s14, 1
      %s167 = smul.addr %s166, 2
      %s168 = scalar_lea.vmem %s3, %s167
      %v169 = vld [vmem:[%s164] sm:$0xff]
      %v170 = vld [vmem:[%s164 + $0x8] sm:$0xff]
      %vm173 = vcmask 1041408
      %v174 = vrot.slane %v169, 6
      %v175 = vrot.slane %v170, 6
      %v176 = vsel %vm173, %v174, %v175
      %v180 = vsel %vm173, 0.0, %v174
      %v181 = vsel %vm173, %v175, 0.0
      %vm184 = vcmask 1046528
      %v185 = vrot.slane %v180, 1
      %v186 = vrot.slane %v176, 1
      %v187 = vsel %vm184, %v185, %v186
      %v188 = vrot.slane %v181, 1
      %v189 = vsel %vm184, %v186, %v188
      %vm192 = vcmask 1045504
      %v193 = vrot.slane %v180, 2
      %v194 = vrot.slane %v176, 2
      %v195 = vsel %vm192, %v193, %v194
      %v196 = vrot.slane %v181, 2
      %v197 = vsel %vm192, %v194, %v196
      %vm200 = vcmask 1044480
      %v201 = vrot.slane %v180, 3
      %v202 = vrot.slane %v176, 3
      %v203 = vsel %vm200, %v201, %v202
      %v204 = vrot.slane %v181, 3
      %v205 = vsel %vm200, %v202, %v204
      %vm208 = vcmask 1043456
      %v209 = vrot.slane %v180, 4
      %v210 = vrot.slane %v176, 4
      %v211 = vsel %vm208, %v209, %v210
      %v212 = vrot.slane %v181, 4
      %v213 = vsel %vm208, %v210, %v212
      %v216 = vld [vmem:[%s1] sm:$0xff]
      %v217 = vld [vmem:[%s1 + $0x8] sm:$0xff]
      %v218 = vld [vmem:[%s1 + $0x10] sm:$0xff]
      %v219 = vld [vmem:[%s1 + $0x18] sm:$0xff]
      %v220 = vld [vmem:[%s1 + $0x20] sm:$0xff]
      %v221 = vld [vmem:[%s1 + $0x28] sm:$0xff]
      %v222 = vld [vmem:[%s1 + $0x30] sm:$0xff]
      %v223 = vld [vmem:[%s1 + $0x38] sm:$0xff]
      %v224 = vld [vmem:[%s1 + $0x40] sm:$0xff]
      %v225 = vld [vmem:[%s1 + $0x48] sm:$0xff]
      %v226 = vld [vmem:[%s1 + $0x50] sm:$0xff]
      %v227 = vld [vmem:[%s1 + $0x58] sm:$0xff]
      %v228 = vld [vmem:[%s1 + $0x60] sm:$0xff]
      %v229 = vld [vmem:[%s1 + $0x68] sm:$0xff]
      %v230 = vld [vmem:[%s1 + $0x70] sm:$0xff]
      %v231 = vld [vmem:[%s1 + $0x78] sm:$0xff]
      %v232 = vld [vmem:[%s1 + $0x80] sm:$0xff]
      %v233 = vld [vmem:[%s1 + $0x88] sm:$0xff]
      %v234 = vld [vmem:[%s1 + $0x90] sm:$0xff]
      %v235 = vld [vmem:[%s1 + $0x98] sm:$0xff]
      %v236 = vld [vmem:[%s1 + $0xa0] sm:$0xff]
      %v237 = vld [vmem:[%s1 + $0xa8] sm:$0xff]
      %v238 = vld [vmem:[%s1 + $0xb0] sm:$0xff]
      %v239 = vld [vmem:[%s1 + $0xb8] sm:$0xff]
      %v240 = vld [vmem:[%s1 + $0xc0] sm:$0xff]
      %v241 = vld [vmem:[%s1 + $0xc8] sm:$0xff]
      %v242 = vld [vmem:[%s1 + $0xd0] sm:$0xff]
      %v243 = vld [vmem:[%s1 + $0xd8] sm:$0xff]
      %v244 = vld [vmem:[%s1 + $0xe0] sm:$0xff]
      %v245 = vld [vmem:[%s1 + $0xe8] sm:$0xff]
      %v246 = vld [vmem:[%s1 + $0xf0] sm:$0xff]
      %v247 = vld [vmem:[%s1 + $0xf8] sm:$0xff]
      %v248 = vld [vmem:[%s1 + $0x100] sm:$0xff]
      %v249 = vld [vmem:[%s1 + $0x108] sm:$0xff]
      %v250 = vld [vmem:[%s1 + $0x110] sm:$0xff]
      %v251 = vld [vmem:[%s1 + $0x118] sm:$0xff]
      %v252 = vld [vmem:[%s1 + $0x120] sm:$0xff]
      %v253 = vld [vmem:[%s1 + $0x128] sm:$0xff]
      %v254 = vld [vmem:[%s1 + $0x130] sm:$0xff]
      %v255 = vld [vmem:[%s1 + $0x138] sm:$0xff]
      %v256 = vld [vmem:[%s1 + $0x140] sm:$0xff]
      %v257 = vld [vmem:[%s1 + $0x148] sm:$0xff]
      %v258 = vld [vmem:[%s1 + $0x150] sm:$0xff]
      %v259 = vld [vmem:[%s1 + $0x158] sm:$0xff]
      %v260 = vld [vmem:[%s1 + $0x160] sm:$0xff]
      %v261 = vld [vmem:[%s1 + $0x168] sm:$0xff]
      %v262 = vld [vmem:[%s1 + $0x170] sm:$0xff]
      %v263 = vld [vmem:[%s1 + $0x178] sm:$0xff]
      %v264 = vld [vmem:[%s1 + $0x180] sm:$0xff]
      %v265 = vld [vmem:[%s1 + $0x188] sm:$0xff]
      %v266 = vld [vmem:[%s1 + $0x190] sm:$0xff]
      %v267 = vld [vmem:[%s1 + $0x198] sm:$0xff]
      %v268 = vld [vmem:[%s1 + $0x1a0] sm:$0xff]
      %v269 = vld [vmem:[%s1 + $0x1a8] sm:$0xff]
      %v270 = vld [vmem:[%s1 + $0x1b0] sm:$0xff]
      %v271 = vld [vmem:[%s1 + $0x1b8] sm:$0xff]
      %v272 = vld [vmem:[%s1 + $0x1c0] sm:$0xff]
      %v273 = vld [vmem:[%s1 + $0x1c8] sm:$0xff]
      %v274 = vld [vmem:[%s1 + $0x1d0] sm:$0xff]
      %v275 = vld [vmem:[%s1 + $0x1d8] sm:$0xff]
      %v276 = vld [vmem:[%s1 + $0x1e0] sm:$0xff]
      %v277 = vld [vmem:[%s1 + $0x1e8] sm:$0xff]
      %v278 = vld [vmem:[%s1 + $0x1f0] sm:$0xff]
      %v279 = vld [vmem:[%s1 + $0x1f8] sm:$0xff]
      %v280 = vld [vmem:[%s1 + $0x200] sm:$0xff]
      %v281 = vld [vmem:[%s1 + $0x208] sm:$0xff]
      %v282 = vld [vmem:[%s1 + $0x210] sm:$0xff]
      %v283 = vld [vmem:[%s1 + $0x218] sm:$0xff]
      %v284 = vld [vmem:[%s1 + $0x220] sm:$0xff]
      %v285 = vld [vmem:[%s1 + $0x228] sm:$0xff]
      %v286 = vld [vmem:[%s1 + $0x230] sm:$0xff]
      %v287 = vld [vmem:[%s1 + $0x238] sm:$0xff]
      %v288 = vld [vmem:[%s1 + $0x240] sm:$0xff]
      %v289 = vld [vmem:[%s1 + $0x248] sm:$0xff]
      %v290 = vld [vmem:[%s1 + $0x250] sm:$0xff]
      %v291 = vld [vmem:[%s1 + $0x258] sm:$0xff]
      %v292 = vld [vmem:[%s1 + $0x260] sm:$0xff]
      %v293 = vld [vmem:[%s1 + $0x268] sm:$0xff]
      %v294 = vld [vmem:[%s1 + $0x270] sm:$0xff]
      %v295 = vld [vmem:[%s1 + $0x278] sm:$0xff]
      %v296 = vld [vmem:[%s2] sm:$0x1]
      %v298 = vperm.slane %v296, 0
      %300 = vmatpush.msra.mxu0 %v231
      %301 = vmatpush.msra.mxu0 %v230
      %302 = vmatpush.msra.mxu0 %v229
      %303 = vmatpush.msra.mxu0 %v228
      %304 = vmatpush.msra.mxu0 %v227
      %305 = vmatpush.msra.mxu0 %v226
      %306 = vmatpush.msra.mxu0 %v225
      %307 = vmatpush.msra.mxu0 %v224
      %308 = vmatpush.msra.mxu0 %v223
      %309 = vmatpush.msra.mxu0 %v222
      %310 = vmatpush.msra.mxu0 %v221
      %311 = vmatpush.msra.mxu0 %v220
      %312 = vmatpush.msra.mxu0 %v219
      %313 = vmatpush.msra.mxu0 %v218
      %314 = vmatpush.msra.mxu0 %v217
      %315 = vmatpush.msra.mxu0 %v216
      %316 = vmatmul.f32.gmra.mxu0 %v180
      %v317 = vpop.f32.mrf.mxu0
      %v318 = vadd.f32 %v298, %v317
      %319 = vmatmul.f32.gmra.mxu0 %v176
      %v320 = vpop.f32.mrf.mxu0
      %v321 = vadd.f32 %v298, %v320
      %322 = vdwg.mxu0
      %323 = vmatpush.msra.mxu0 %v247
      %324 = vmatpush.msra.mxu0 %v246
      %325 = vmatpush.msra.mxu0 %v245
      %326 = vmatpush.msra.mxu0 %v244
      %327 = vmatpush.msra.mxu0 %v243
      %328 = vmatpush.msra.mxu0 %v242
      %329 = vmatpush.msra.mxu0 %v241
      %330 = vmatpush.msra.mxu0 %v240
      %331 = vmatpush.msra.mxu0 %v239
      %332 = vmatpush.msra.mxu0 %v238
      %333 = vmatpush.msra.mxu0 %v237
      %334 = vmatpush.msra.mxu0 %v236
      %335 = vmatpush.msra.mxu0 %v235
      %336 = vmatpush.msra.mxu0 %v234
      %337 = vmatpush.msra.mxu0 %v233
      %338 = vmatpush.msra.mxu0 %v232
      %339 = vmatmul.f32.gmra.mxu0 %v187
      %v340 = vpop.f32.mrf.mxu0
      %v341 = vadd.f32 %v318, %v340
      %342 = vmatmul.f32.gmra.mxu0 %v189
      %v343 = vpop.f32.mrf.mxu0
      %v344 = vadd.f32 %v321, %v343
      %345 = vdwg.mxu0
      %346 = vmatpush.msra.mxu0 %v263
      %347 = vmatpush.msra.mxu0 %v262
      %348 = vmatpush.msra.mxu0 %v261
      %349 = vmatpush.msra.mxu0 %v260
      %350 = vmatpush.msra.mxu0 %v259
      %351 = vmatpush.msra.mxu0 %v258
      %352 = vmatpush.msra.mxu0 %v257
      %353 = vmatpush.msra.mxu0 %v256
      %354 = vmatpush.msra.mxu0 %v255
      %355 = vmatpush.msra.mxu0 %v254
      %356 = vmatpush.msra.mxu0 %v253
      %357 = vmatpush.msra.mxu0 %v252
      %358 = vmatpush.msra.mxu0 %v251
      %359 = vmatpush.msra.mxu0 %v250
      %360 = vmatpush.msra.mxu0 %v249
      %361 = vmatpush.msra.mxu0 %v248
      %362 = vmatmul.f32.gmra.mxu0 %v195
      %v363 = vpop.f32.mrf.mxu0
      %v364 = vadd.f32 %v341, %v363
      %365 = vmatmul.f32.gmra.mxu0 %v197
      %v366 = vpop.f32.mrf.mxu0
      %v367 = vadd.f32 %v344, %v366
      %368 = vdwg.mxu0
      %369 = vmatpush.msra.mxu0 %v279
      %370 = vmatpush.msra.mxu0 %v278
      %371 = vmatpush.msra.mxu0 %v277
      %372 = vmatpush.msra.mxu0 %v276
      %373 = vmatpush.msra.mxu0 %v275
      %374 = vmatpush.msra.mxu0 %v274
      %375 = vmatpush.msra.mxu0 %v273
      %376 = vmatpush.msra.mxu0 %v272
      %377 = vmatpush.msra.mxu0 %v271
      %378 = vmatpush.msra.mxu0 %v270
      %379 = vmatpush.msra.mxu0 %v269
      %380 = vmatpush.msra.mxu0 %v268
      %381 = vmatpush.msra.mxu0 %v267
      %382 = vmatpush.msra.mxu0 %v266
      %383 = vmatpush.msra.mxu0 %v265
      %384 = vmatpush.msra.mxu0 %v264
      %385 = vmatmul.f32.gmra.mxu0 %v203
      %v386 = vpop.f32.mrf.mxu0
      %v387 = vadd.f32 %v364, %v386
      %388 = vmatmul.f32.gmra.mxu0 %v205
      %v389 = vpop.f32.mrf.mxu0
      %v390 = vadd.f32 %v367, %v389
      %391 = vdwg.mxu0
      %392 = vmatpush.msra.mxu0 %v295
      %393 = vmatpush.msra.mxu0 %v294
      %394 = vmatpush.msra.mxu0 %v293
      %395 = vmatpush.msra.mxu0 %v292
      %396 = vmatpush.msra.mxu0 %v291
      %397 = vmatpush.msra.mxu0 %v290
      %398 = vmatpush.msra.mxu0 %v289
      %399 = vmatpush.msra.mxu0 %v288
      %400 = vmatpush.msra.mxu0 %v287
      %401 = vmatpush.msra.mxu0 %v286
      %402 = vmatpush.msra.mxu0 %v285
      %403 = vmatpush.msra.mxu0 %v284
      %404 = vmatpush.msra.mxu0 %v283
      %405 = vmatpush.msra.mxu0 %v282
      %406 = vmatpush.msra.mxu0 %v281
      %407 = vmatpush.msra.mxu0 %v280
      %408 = vmatmul.f32.gmra.mxu0 %v211
      %v409 = vpop.f32.mrf.mxu0
      %v410 = vadd.f32 %v387, %v409
      %411 = vmatmul.f32.gmra.mxu0 %v213
      %v412 = vpop.f32.mrf.mxu0
      %v413 = vadd.f32 %v390, %v412
      %414 = vdwg.mxu0
      %v415 = vadd.f32 %v410, %v413
      %v416 = vrot.slane %v415, 4
      %v417 = vadd.f32 %v415, %v416
      %v418 = vrot.slane %v417, 2
      %v419 = vadd.f32 %v417, %v418
      %v420 = vrot.slane %v419, 1
      %v421 = vadd.f32 %v419, %v420
      %v422 = vmul.f32 %v410, %v410
      %v423 = vmul.f32 %v413, %v413
      %v424 = vadd.f32 %v422, %v423
      %v425 = vrot.slane %v424, 4
      %v426 = vadd.f32 %v424, %v425
      %v427 = vrot.slane %v426, 2
      %v428 = vadd.f32 %v426, %v427
      %v429 = vrot.slane %v428, 1
      %v430 = vadd.f32 %v428, %v429
      %vm431 = vcmask 1040384
      %v432 = vsel %vm431, %v421, %v430
      %433 = vst [vmem:[%s168] sm:$0x3] %v432
      %p434 = scmp.lt.s32.totalorder %s14, 1
      %s435 = scalar_select %p434, %s14, 1
      %s436 = smul.addr %s435, 2
      %s437 = scalar_lea.vmem %s3, %s436
      // Predicated region
      $region33: #{residual_block_forward.8} parent=31 // pred_check
        %p438 = pneg %p100
      $region34: #{residual_block_forward.8} parent=31 // pred_check_branch
        %440 = sbr.rel (%p438) target = $region36
      $region35: #{residual_block_forward.8} parent=31 // pred_region
        _
      $region36: #{residual_block_forward.8} parent=31 // pred_fallthru
        _
    $region32: #{residual_block_forward.8} parent=5 // pred_fallthru
      _
    %p441 = scmp.le.s32.totalorder 2, %s9
    // Predicated region
    $region37: #{residual_block_forward.8} parent=5 // pred_check
      %p442 = pneg %p441
    $region38: #{residual_block_forward.8} parent=5 // pred_check_branch
      %444 = sbr.rel (%p442) target = $region40
    $region39: #{residual_block_forward.8} parent=5 // pred_region
      %s445 = ssub.s32 %s9, 2
      // Predicated region
      $region41: #{residual_block_forward.8} parent=39 // pred_check
        %p446 = pneg %p106
      $region42: #{residual_block_forward.8} parent=39 // pred_check_branch
        %448 = sbr.rel (%p446) target = $region44
      $region43: #{residual_block_forward.8} parent=39 // pred_region
        %p449 = scmp.lt.s32.totalorder %s15, 1
        %s450 = scalar_select %p449, %s15, 1
        %s451 = smul.addr %s450, 2
        %s452 = scalar_lea.vmem %s3, %s451
      $region44: #{residual_block_forward.8} parent=39 // pred_fallthru
        _
    $region40: #{residual_block_forward.8} parent=5 // pred_fallthru
      _
  $region6: #{residual_block_forward.8} parent=0 // loop_footer
    %s13 = sadd.s32 1, %s9
  $region7: #{residual_block_forward.8} parent=0 // loop_footer_branch
    %8 = sbr.rel target = $region3
  $region8: #{residual_block_forward.8} parent=0 // loop_exit
    _

// kernel: residual_block_forward.7
$region0: #{residual_block_forward.7}
  #allocation0 [shape = 'u32[]', space=smem, size = 0x4, offset = 0x4, fixed_abs, tag = 'smem constant byte address 0x4 - core index']
  #allocation1 [shape = 'u32[72,128]{1,0:T(1,128)}', space=vmem, size = 0x9000, scoped, tag = 'internal scratch']
  %s0 = inlined_call_operand.vmem [shape: f32[2,16,128], index: 0, kind: input, shape index: {}]
  %s1 = inlined_call_operand.vmem [shape: f32[1024,128], index: 1, kind: input, shape index: {}]
  %s2 = inlined_call_operand.vmem [shape: f32[1,128], index: 2, kind: input, shape index: {}]
  %s3 = inlined_call_operand.vmem [shape: f32[2,2,128], index: 3, kind: input, shape index: {}]
  %s4 = inlined_call_operand.vmem [shape: f32[1,128], index: 4, kind: input, shape index: {}]
  %s5 = inlined_call_operand.vmem [shape: f32[1,128], index: 5, kind: input, shape index: {}]
  %s6 = inlined_call_operand.vmem [shape: f32[2,16,128], index: 6, kind: output, shape index: {}]
  %s7 = sld [smem:[#allocation0]]
  $region57: #{residual_block_forward.7} parent=0
    _
  %s9 = ssub.s32 1, %s7
  %s10 = scalar_select 0, %s9, %s7
  loop: start=0, step=1, limit=4
  $region2: #{residual_block_forward.7} parent=0 // loop_pre_header
    _
  $region3: #{residual_block_forward.7} parent=0 // loop_header
    %s12 = sphi 0, %s16
    %p13 = scmp.ge.s32.totalorder %s12, 4
    %s22 = sphi 0, %s24
    %s25 = sphi 0, %s22
    %s26 = sphi 0, %s25
    %s42 = sphi 0, %s26
    %s46 = sphi 0, %s46
    %s48 = sphi 0, %s46
    %s49 = sphi 0, %s48
    %s63 = sphi 0, %s49
    %s67 = sphi 0, %s67
    %s69 = sphi 0, %s67
    %s70 = sphi 0, %s69
    %s84 = sphi 0, %s70
    %s88 = sphi 0, %s88
    %s90 = sphi 0, %s88
    %s91 = sphi 0, %s90
    %s105 = sphi 0, %s91
    %s109 = sphi 0, %s109
    %s111 = sphi 0, %s109
    %s112 = sphi 0, %s111
    %s126 = sphi 0, %s112
    %s130 = sphi 0, %s130
    %s132 = sphi 0, %s130
    %s133 = sphi 0, %s132
    %s147 = sphi 0, %s133
    %s153 = sphi 0, %s155
    %s156 = sphi 0, %s153
    %s157 = sphi 0, %s156
    %s173 = sphi 0, %s157
  $region4: #{residual_block_forward.7} parent=0 // loop_header_branch
    %15 = sbr.rel (%p13) target = $region8
  $region5: #{residual_block_forward.7} parent=0 // loop_body
    %s17 = ssub.s32 %s12, 1
    %s18 = ssub.s32 %s12, 2
    %s19 = sadd.s32 %s12, 1
    %s20 = ssub.s32 %s12, %s19
    %p21 = scmp.eq.s32.totalorder %s20, 0
    %s23 = sadd.s32 %s22, 1
    %s24 = scalar_select %p21, %s22, %s23
    %p27 = pneg %p21
    %p28 = scmp.eq.s32.totalorder %s12, 1
    %p29 = por %p27, %p28
    %p30 = scmp.ne.s32.totalorder %s22, %s25
    %p31 = scmp.eq.s32.totalorder %s12, 0
    %p32 = por %p30, %p31
    %p33 = scmp.ne.s32.totalorder %s22, %s25
    %p34 = scmp.eq.s32.totalorder %s17, 1
    %p35 = por %p33, %p34
    %p36 = scmp.ne.s32.totalorder %s25, %s26
    %p37 = scmp.eq.s32.totalorder %s17, 0
    %p38 = por %p36, %p37
    %p39 = scmp.ne.s32.totalorder %s25, %s26
    %p40 = scmp.eq.s32.totalorder %s18, 1
    %p41 = por %p39, %p40
    %p43 = scmp.ne.s32.totalorder %s26, %s42
    %p44 = scmp.eq.s32.totalorder %s18, 0
    %p45 = por %p43, %p44
    %s47 = sadd.s32 %s46, 1
    %p50 = scmp.eq.s32.totalorder %s12, 1
    %p51 = scmp.ne.s32.totalorder %s46, %s48
    %p52 = scmp.eq.s32.totalorder %s12, 0
    %p53 = por %p51, %p52
    %p54 = scmp.ne.s32.totalorder %s46, %s48
    %p55 = scmp.eq.s32.totalorder %s17, 1
    %p56 = por %p54, %p55
    %p57 = scmp.ne.s32.totalorder %s48, %s49
    %p58 = scmp.eq.s32.totalorder %s17, 0
    %p59 = por %p57, %p58
    %p60 = scmp.ne.s32.totalorder %s48, %s49
    %p61 = scmp.eq.s32.totalorder %s18, 1
    %p62 = por %p60, %p61
    %p64 = scmp.ne.s32.totalorder %s49, %s63
    %p65 = scmp.eq.s32.totalorder %s18, 0
    %p66 = por %p64, %p65
    %s68 = sadd.s32 %s67, 1
    %p71 = scmp.eq.s32.totalorder %s12, 1
    %p72 = scmp.ne.s32.totalorder %s67, %s69
    %p73 = scmp.eq.s32.totalorder %s12, 0
    %p74 = por %p72, %p73
    %p75 = scmp.ne.s32.totalorder %s67, %s69
    %p76 = scmp.eq.s32.totalorder %s17, 1
    %p77 = por %p75, %p76
    %p78 = scmp.ne.s32.totalorder %s69, %s70
    %p79 = scmp.eq.s32.totalorder %s17, 0
    %p80 = por %p78, %p79
    %p81 = scmp.ne.s32.totalorder %s69, %s70
    %p82 = scmp.eq.s32.totalorder %s18, 1
    %p83 = por %p81, %p82
    %p85 = scmp.ne.s32.totalorder %s70, %s84
    %p86 = scmp.eq.s32.totalorder %s18, 0
    %p87 = por %p85, %p86
    %s89 = sadd.s32 %s88, 1
    %p92 = scmp.eq.s32.totalorder %s12, 1
    %p93 = scmp.ne.s32.totalorder %s88, %s90
    %p94 = scmp.eq.s32.totalorder %s12, 0
    %p95 = por %p93, %p94
    %p96 = scmp.ne.s32.totalorder %s88, %s90
    %p97 = scmp.eq.s32.totalorder %s17, 1
    %p98 = por %p96, %p97
    %p99 = scmp.ne.s32.totalorder %s90, %s91
    %p100 = scmp.eq.s32.totalorder %s17, 0
    %p101 = por %p99, %p100
    %p102 = scmp.ne.s32.totalorder %s90, %s91
    %p103 = scmp.eq.s32.totalorder %s18, 1
    %p104 = por %p102, %p103
    %p106 = scmp.ne.s32.totalorder %s91, %s105
    %p107 = scmp.eq.s32.totalorder %s18, 0
    %p108 = por %p106, %p107
    %s110 = sadd.s32 %s109, 1
    %p113 = scmp.eq.s32.totalorder %s12, 1
    %p114 = scmp.ne.s32.totalorder %s109, %s111
    %p115 = scmp.eq.s32.totalorder %s12, 0
    %p116 = por %p114, %p115
    %p117 = scmp.ne.s32.totalorder %s109, %s111
    %p118 = scmp.eq.s32.totalorder %s17, 1
    %p119 = por %p117, %p118
    %p120 = scmp.ne.s32.totalorder %s111, %s112
    %p121 = scmp.eq.s32.totalorder %s17, 0
    %p122 = por %p120, %p121
    %p123 = scmp.ne.s32.totalorder %s111, %s112
    %p124 = scmp.eq.s32.totalorder %s18, 1
    %p125 = por %p123, %p124
    %p127 = scmp.ne.s32.totalorder %s112, %s126
    %p128 = scmp.eq.s32.totalorder %s18, 0
    %p129 = por %p127, %p128
    %s131 = sadd.s32 %s130, 1
    %p134 = scmp.eq.s32.totalorder %s12, 1
    %p135 = scmp.ne.s32.totalorder %s130, %s132
    %p136 = scmp.eq.s32.totalorder %s12, 0
    %p137 = por %p135, %p136
    %p138 = scmp.ne.s32.totalorder %s130, %s132
    %p139 = scmp.eq.s32.totalorder %s17, 1
    %p140 = por %p138, %p139
    %p141 = scmp.ne.s32.totalorder %s132, %s133
    %p142 = scmp.eq.s32.totalorder %s17, 0
    %p143 = por %p141, %p142
    %p144 = scmp.ne.s32.totalorder %s132, %s133
    %p145 = scmp.eq.s32.totalorder %s18, 1
    %p146 = por %p144, %p145
    %p148 = scmp.ne.s32.totalorder %s133, %s147
    %p149 = scmp.eq.s32.totalorder %s18, 0
    %p150 = por %p148, %p149
    %s151 = ssub.s32 %s12, %s19
    %p152 = scmp.eq.s32.totalorder %s151, 0
    %s154 = sadd.s32 %s153, 1
    %s155 = scalar_select %p152, %s153, %s154
    %p158 = pneg %p152
    %p159 = scmp.eq.s32.totalorder %s12, 1
    %p160 = por %p158, %p159
    %p161 = scmp.ne.s32.totalorder %s153, %s156
    %p162 = scmp.eq.s32.totalorder %s12, 0
    %p163 = por %p161, %p162
    %p164 = scmp.ne.s32.totalorder %s153, %s156
    %p165 = scmp.eq.s32.totalorder %s17, 1
    %p166 = por %p164, %p165
    %p167 = scmp.ne.s32.totalorder %s156, %s157
    %p168 = scmp.eq.s32.totalorder %s17, 0
    %p169 = por %p167, %p168
    %p170 = scmp.ne.s32.totalorder %s156, %s157
    %p171 = scmp.eq.s32.totalorder %s18, 1
    %p172 = por %p170, %p171
    %p174 = scmp.ne.s32.totalorder %s157, %s173
    %p175 = scmp.eq.s32.totalorder %s18, 0
    %p176 = por %p174, %p175
    %p177 = scmp.le.s32.totalorder 1, %s12
    %p178 = scmp.lt.s32.totalorder %s12, 3
    %p179 = pnand %p177, %p178
    %p180 = pneg %p179
    // Predicated region
    $region9: #{residual_block_forward.7} parent=5 // pred_check
      _
    $region10: #{residual_block_forward.7} parent=5 // pred_check_branch
      %182 = sbr.rel (%p179) target = $region12
    $region11: #{residual_block_forward.7} parent=5 // pred_region
      %s183 = ssub.s32 %s12, 1
      // Predicated region
      $region13: #{residual_block_forward.7} parent=11 // pred_check
        %p184 = pneg %p59
      $region14: #{residual_block_forward.7} parent=11 // pred_check_branch
        %186 = sbr.rel (%p184) target = $region16
      $region15: #{residual_block_forward.7} parent=11 // pred_region
        _
      $region16: #{residual_block_forward.7} parent=11 // pred_fallthru
        _
      // Predicated region
      $region17: #{residual_block_forward.7} parent=11 // pred_check
        %p187 = pneg %p80
      $region18: #{residual_block_forward.7} parent=11 // pred_check_branch
        %189 = sbr.rel (%p187) target = $region20
      $region19: #{residual_block_forward.7} parent=11 // pred_region
        _
      $region20: #{residual_block_forward.7} parent=11 // pred_fallthru
        _
      // Predicated region
      $region21: #{residual_block_forward.7} parent=11 // pred_check
        %p190 = pneg %p101
      $region22: #{residual_block_forward.7} parent=11 // pred_check_branch
        %192 = sbr.rel (%p190) target = $region24
      $region23: #{residual_block_forward.7} parent=11 // pred_region
        _
      $region24: #{residual_block_forward.7} parent=11 // pred_fallthru
        _
      // Predicated region
      $region25: #{residual_block_forward.7} parent=11 // pred_check
        %p193 = pneg %p122
      $region26: #{residual_block_forward.7} parent=11 // pred_check_branch
        %195 = sbr.rel (%p193) target = $region28
      $region27: #{residual_block_forward.7} parent=11 // pred_region
        _
      $region28: #{residual_block_forward.7} parent=11 // pred_fallthru
        _
      // Predicated region
      $region29: #{residual_block_forward.7} parent=11 // pred_check
        %p196 = pneg %p143
      $region30: #{residual_block_forward.7} parent=11 // pred_check_branch
        %198 = sbr.rel (%p196) target = $region32
      $region31: #{residual_block_forward.7} parent=11 // pred_region
        _
      $region32: #{residual_block_forward.7} parent=11 // pred_fallthru
        _
    $region12: #{residual_block_forward.7} parent=5 // pred_fallthru
      _
    %p199 = scmp.lt.s32.totalorder %s12, 2
    // Predicated region
    $region33: #{residual_block_forward.7} parent=5 // pred_check
      %p200 = pneg %p199
    $region34: #{residual_block_forward.7} parent=5 // pred_check_branch
      %202 = sbr.rel (%p200) target = $region36
    $region35: #{residual_block_forward.7} parent=5 // pred_region
      // Predicated region
      $region37: #{residual_block_forward.7} parent=35 // pred_check
        %p203 = pneg %p32
      $region38: #{residual_block_forward.7} parent=35 // pred_check_branch
        %205 = sbr.rel (%p203) target = $region40
      $region39: #{residual_block_forward.7} parent=35 // pred_region
        %p206 = scmp.lt.s32.totalorder %s12, 1
        %s207 = scalar_select %p206, %s12, 1
        %s208 = smul.addr %s207, 2
        %s209 = smul.addr %s208, 8
        %s210 = scalar_lea.vmem %s0, %s209
      $region40: #{residual_block_forward.7} parent=35 // pred_fallthru
        _
    $region36: #{residual_block_forward.7} parent=5 // pred_fallthru
      _
    %p211 = scmp.le.s32.totalorder 1, %s12
    %p212 = scmp.lt.s32.totalorder %s12, 3
    %p213 = pnand %p211, %p212
    %p214 = pneg %p213
    // Predicated region
    $region41: #{residual_block_forward.7} parent=5 // pred_check
      _
    $region42: #{residual_block_forward.7} parent=5 // pred_check_branch
      %216 = sbr.rel (%p213) target = $region44
    $region43: #{residual_block_forward.7} parent=5 // pred_region
      %s217 = ssub.s32 %s12, 1
      %p218 = scmp.lt.s32.totalorder %s17, 1
      %s219 = scalar_select %p218, %s17, 1
      %s220 = smul.addr %s219, 2
      %s221 = smul.addr %s220, 8
      %s222 = scalar_lea.vmem %s0, %s221
      %p223 = pneg %p38
      %p224 = pneg %p35
      %p225 = pneg %p59
      %p226 = pneg %p56
      %p227 = pneg %p80
      %p228 = pneg %p77
      %p229 = pneg %p101
      %p230 = pneg %p98
      %p231 = pneg %p122
      %p232 = pneg %p119
      %p233 = pneg %p143
      %p234 = pneg %p140
      %p235 = pneg %p169
      %p236 = pneg %p166
      %p237 = scmp.lt.s32.totalorder %s17, 1
      %s238 = scalar_select %p237, %s17, 1
      %s239 = smul.addr %s238, 2
      %s240 = smul.addr %s239, 8
      %s241 = scalar_lea.vmem %s6, %s240
      %p242 = scmp.lt.s32.totalorder %s17, 1
      %s243 = scalar_select %p242, %s17, 1
      %s244 = smul.addr %s243, 2
      %s245 = smul.addr %s244, 8
      %s246 = scalar_lea.vmem %s0, %s245
      %p247 = scmp.lt.s32.totalorder %s17, 1
      %s248 = scalar_select %p247, %s17, 1
      %s249 = smul.addr %s248, 2
      %s250 = smul.addr %s249, 8
      %s251 = scalar_lea.vmem %s6, %s250
      %v252 = vld [vmem:[%s246] sm:$0xff]
      %v253 = vld [vmem:[%s246 + $0x8] sm:$0xff]
      %vm256 = vcmask 1042432
      %v257 = vrot.slane %v252, 5
      %v258 = vrot.slane %v253, 5
      %v259 = vsel %vm256, %v257, %v258
      %v263 = vsel %vm256, 0.0, %v257
      %v264 = vsel %vm256, %v258, 0.0
      %vm267 = vcmask 1046528
      %v268 = vrot.slane %v263, 1
      %v269 = vrot.slane %v259, 1
      %v270 = vsel %vm267, %v268, %v269
      %v271 = vrot.slane %v264, 1
      %v272 = vsel %vm267, %v269, %v271
      %vm275 = vcmask 1045504
      %v276 = vrot.slane %v263, 2
      %v277 = vrot.slane %v259, 2
      %v278 = vsel %vm275, %v276, %v277
      %v279 = vrot.slane %v264, 2
      %v280 = vsel %vm275, %v277, %v279
      %vm283 = vcmask 1044480
      %v284 = vrot.slane %v263, 3
      %v285 = vrot.slane %v259, 3
      %v286 = vsel %vm283, %v284, %v285
      %v287 = vrot.slane %v264, 3
      %v288 = vsel %vm283, %v285, %v287
      %vm291 = vcmask 1043456
      %v292 = vrot.slane %v263, 4
      %v293 = vrot.slane %v259, 4
      %v294 = vsel %vm291, %v292, %v293
      %v295 = vrot.slane %v264, 4
      %v296 = vsel %vm291, %v293, %v295
      %v299 = vrot.slane %v263, 5
      %v300 = vrot.slane %v259, 5
      %v301 = vsel %vm256, %v299, %v300
      %v302 = vrot.slane %v264, 5
      %v303 = vsel %vm256, %v300, %v302
      %vm306 = vcmask 1041408
      %v307 = vrot.slane %v263, 6
      %v308 = vrot.slane %v259, 6
      %v309 = vsel %vm306, %v307, %v308
      %v310 = vrot.slane %v264, 6
      %v311 = vsel %vm306, %v308, %v310
      %vm314 = vcmask 1040384
      %v315 = vrot.slane %v263, 7
      %v316 = vrot.slane %v259, 7
      %v317 = vsel %vm314, %v315, %v316
      %v318 = vrot.slane %v264, 7
      %v319 = vsel %vm314, %v316, %v318
      %v322 = vld [vmem:[%s1] sm:$0xff]
      %v323 = vld [vmem:[%s1 + $0x8] sm:$0xff]
      %v324 = vld [vmem:[%s1 + $0x10] sm:$0xff]
      %v325 = vld [vmem:[%s1 + $0x18] sm:$0xff]
      %v326 = vld [vmem:[%s1 + $0x20] sm:$0xff]
      %v327 = vld [vmem:[%s1 + $0x28] sm:$0xff]
      %v328 = vld [vmem:[%s1 + $0x30] sm:$0xff]
      %v329 = vld [vmem:[%s1 + $0x38] sm:$0xff]
      %v330 = vld [vmem:[%s1 + $0x40] sm:$0xff]
      %v331 = vld [vmem:[%s1 + $0x48] sm:$0xff]
      %v332 = vld [vmem:[%s1 + $0x50] sm:$0xff]
      %v333 = vld [vmem:[%s1 + $0x58] sm:$0xff]
      %v334 = vld [vmem:[%s1 + $0x60] sm:$0xff]
      %v335 = vld [vmem:[%s1 + $0x68] sm:$0xff]
      %v336 = vld [vmem:[%s1 + $0x70] sm:$0xff]
      %v337 = vld [vmem:[%s1 + $0x78] sm:$0xff]
      %v338 = vld [vmem:[%s1 + $0x80] sm:$0xff]
      %v339 = vld [vmem:[%s1 + $0x88] sm:$0xff]
      %v340 = vld [vmem:[%s1 + $0x90] sm:$0xff]
      %v341 = vld [vmem:[%s1 + $0x98] sm:$0xff]
      %v342 = vld [vmem:[%s1 + $0xa0] sm:$0xff]
      %v343 = vld [vmem:[%s1 + $0xa8] sm:$0xff]
      %v344 = vld [vmem:[%s1 + $0xb0] sm:$0xff]
      %v345 = vld [vmem:[%s1 + $0xb8] sm:$0xff]
      %v346 = vld [vmem:[%s1 + $0xc0] sm:$0xff]
      %v347 = vld [vmem:[%s1 + $0xc8] sm:$0xff]
      %v348 = vld [vmem:[%s1 + $0xd0] sm:$0xff]
      %v349 = vld [vmem:[%s1 + $0xd8] sm:$0xff]
      %v350 = vld [vmem:[%s1 + $0xe0] sm:$0xff]
      %v351 = vld [vmem:[%s1 + $0xe8] sm:$0xff]
      %v352 = vld [vmem:[%s1 + $0xf0] sm:$0xff]
      %v353 = vld [vmem:[%s1 + $0xf8] sm:$0xff]
      %v354 = vld [vmem:[%s1 + $0x100] sm:$0xff]
      %v355 = vld [vmem:[%s1 + $0x108] sm:$0xff]
      %v356 = vld [vmem:[%s1 + $0x110] sm:$0xff]
      %v357 = vld [vmem:[%s1 + $0x118] sm:$0xff]
      %v358 = vld [vmem:[%s1 + $0x120] sm:$0xff]
      %v359 = vld [vmem:[%s1 + $0x128] sm:$0xff]
      %v360 = vld [vmem:[%s1 + $0x130] sm:$0xff]
      %v361 = vld [vmem:[%s1 + $0x138] sm:$0xff]
      %v362 = vld [vmem:[%s1 + $0x140] sm:$0xff]
      %v363 = vld [vmem:[%s1 + $0x148] sm:$0xff]
      %v364 = vld [vmem:[%s1 + $0x150] sm:$0xff]
      %v365 = vld [vmem:[%s1 + $0x158] sm:$0xff]
      %v366 = vld [vmem:[%s1 + $0x160] sm:$0xff]
      %v367 = vld [vmem:[%s1 + $0x168] sm:$0xff]
      %v368 = vld [vmem:[%s1 + $0x170] sm:$0xff]
      %v369 = vld [vmem:[%s1 + $0x178] sm:$0xff]
      %v370 = vld [vmem:[%s1 + $0x180] sm:$0xff]
      %v371 = vld [vmem:[%s1 + $0x188] sm:$0xff]
      %v372 = vld [vmem:[%s1 + $0x190] sm:$0xff]
      %v373 = vld [vmem:[%s1 + $0x198] sm:$0xff]
      %v374 = vld [vmem:[%s1 + $0x1a0] sm:$0xff]
      %v375 = vld [vmem:[%s1 + $0x1a8] sm:$0xff]
      %v376 = vld [vmem:[%s1 + $0x1b0] sm:$0xff]
      %v377 = vld [vmem:[%s1 + $0x1b8] sm:$0xff]
      %v378 = vld [vmem:[%s1 + $0x1c0] sm:$0xff]
      %v379 = vld [vmem:[%s1 + $0x1c8] sm:$0xff]
      %v380 = vld [vmem:[%s1 + $0x1d0] sm:$0xff]
      %v381 = vld [vmem:[%s1 + $0x1d8] sm:$0xff]
      %v382 = vld [vmem:[%s1 + $0x1e0] sm:$0xff]
      %v383 = vld [vmem:[%s1 + $0x1e8] sm:$0xff]
      %v384 = vld [vmem:[%s1 + $0x1f0] sm:$0xff]
      %v385 = vld [vmem:[%s1 + $0x1f8] sm:$0xff]
      %v386 = vld [vmem:[%s1 + $0x200] sm:$0xff]
      %v387 = vld [vmem:[%s1 + $0x208] sm:$0xff]
      %v388 = vld [vmem:[%s1 + $0x210] sm:$0xff]
      %v389 = vld [vmem:[%s1 + $0x218] sm:$0xff]
      %v390 = vld [vmem:[%s1 + $0x220] sm:$0xff]
      %v391 = vld [vmem:[%s1 + $0x228] sm:$0xff]
      %v392 = vld [vmem:[%s1 + $0x230] sm:$0xff]
      %v393 = vld [vmem:[%s1 + $0x238] sm:$0xff]
      %v394 = vld [vmem:[%s1 + $0x240] sm:$0xff]
      %v395 = vld [vmem:[%s1 + $0x248] sm:$0xff]
      %v396 = vld [vmem:[%s1 + $0x250] sm:$0xff]
      %v397 = vld [vmem:[%s1 + $0x258] sm:$0xff]
      %v398 = vld [vmem:[%s1 + $0x260] sm:$0xff]
      %v399 = vld [vmem:[%s1 + $0x268] sm:$0xff]
      %v400 = vld [vmem:[%s1 + $0x270] sm:$0xff]
      %v401 = vld [vmem:[%s1 + $0x278] sm:$0xff]
      %v402 = vld [vmem:[%s1 + $0x280] sm:$0xff]
      %v403 = vld [vmem:[%s1 + $0x288] sm:$0xff]
      %v404 = vld [vmem:[%s1 + $0x290] sm:$0xff]
      %v405 = vld [vmem:[%s1 + $0x298] sm:$0xff]
      %v406 = vld [vmem:[%s1 + $0x2a0] sm:$0xff]
      %v407 = vld [vmem:[%s1 + $0x2a8] sm:$0xff]
      %v408 = vld [vmem:[%s1 + $0x2b0] sm:$0xff]
      %v409 = vld [vmem:[%s1 + $0x2b8] sm:$0xff]
      %v410 = vld [vmem:[%s1 + $0x2c0] sm:$0xff]
      %v411 = vld [vmem:[%s1 + $0x2c8] sm:$0xff]
      %v412 = vld [vmem:[%s1 + $0x2d0] sm:$0xff]
      %v413 = vld [vmem:[%s1 + $0x2d8] sm:$0xff]
      %v414 = vld [vmem:[%s1 + $0x2e0] sm:$0xff]
      %v415 = vld [vmem:[%s1 + $0x2e8] sm:$0xff]
      %v416 = vld [vmem:[%s1 + $0x2f0] sm:$0xff]
      %v417 = vld [vmem:[%s1 + $0x2f8] sm:$0xff]
      %v418 = vld [vmem:[%s1 + $0x300] sm:$0xff]
      %v419 = vld [vmem:[%s1 + $0x308] sm:$0xff]
      %v420 = vld [vmem:[%s1 + $0x310] sm:$0xff]
      %v421 = vld [vmem:[%s1 + $0x318] sm:$0xff]
      %v422 = vld [vmem:[%s1 + $0x320] sm:$0xff]
      %v423 = vld [vmem:[%s1 + $0x328] sm:$0xff]
      %v424 = vld [vmem:[%s1 + $0x330] sm:$0xff]
      %v425 = vld [vmem:[%s1 + $0x338] sm:$0xff]
      %v426 = vld [vmem:[%s1 + $0x340] sm:$0xff]
      %v427 = vld [vmem:[%s1 + $0x348] sm:$0xff]
      %v428 = vld [vmem:[%s1 + $0x350] sm:$0xff]
      %v429 = vld [vmem:[%s1 + $0x358] sm:$0xff]
      %v430 = vld [vmem:[%s1 + $0x360] sm:$0xff]
      %v431 = vld [vmem:[%s1 + $0x368] sm:$0xff]
      %v432 = vld [vmem:[%s1 + $0x370] sm:$0xff]
      %v433 = vld [vmem:[%s1 + $0x378] sm:$0xff]
      %v434 = vld [vmem:[%s1 + $0x380] sm:$0xff]
      %v435 = vld [vmem:[%s1 + $0x388] sm:$0xff]
      %v436 = vld [vmem:[%s1 + $0x390] sm:$0xff]
      %v437 = vld [vmem:[%s1 + $0x398] sm:$0xff]
      %v438 = vld [vmem:[%s1 + $0x3a0] sm:$0xff]
      %v439 = vld [vmem:[%s1 + $0x3a8] sm:$0xff]
      %v440 = vld [vmem:[%s1 + $0x3b0] sm:$0xff]
      %v441 = vld [vmem:[%s1 + $0x3b8] sm:$0xff]
      %v442 = vld [vmem:[%s1 + $0x3c0] sm:$0xff]
      %v443 = vld [vmem:[%s1 + $0x3c8] sm:$0xff]
      %v444 = vld [vmem:[%s1 + $0x3d0] sm:$0xff]
      %v445 = vld [vmem:[%s1 + $0x3d8] sm:$0xff]
      %v446 = vld [vmem:[%s1 + $0x3e0] sm:$0xff]
      %v447 = vld [vmem:[%s1 + $0x3e8] sm:$0xff]
      %v448 = vld [vmem:[%s1 + $0x3f0] sm:$0xff]
      %v449 = vld [vmem:[%s1 + $0x3f8] sm:$0xff]
      %v450 = vld [vmem:[%s2] sm:$0x1]
      %v452 = vperm.slane %v450, 0
      %454 = vmatpush.msra.mxu0 %v337
      %455 = vmatpush.msra.mxu0 %v336
      %456 = vmatpush.msra.mxu0 %v335
      %457 = vmatpush.msra.mxu0 %v334
      %458 = vmatpush.msra.mxu0 %v333
      %459 = vmatpush.msra.mxu0 %v332
      %460 = vmatpush.msra.mxu0 %v331
      %461 = vmatpush.msra.mxu0 %v330
      %462 = vmatpush.msra.mxu0 %v329
      %463 = vmatpush.msra.mxu0 %v328
      %464 = vmatpush.msra.mxu0 %v327
      %465 = vmatpush.msra.mxu0 %v326
      %466 = vmatpush.msra.mxu0 %v325
      %467 = vmatpush.msra.mxu0 %v324
      %468 = vmatpush.msra.mxu0 %v323
      %469 = vmatpush.msra.mxu0 %v322
      %470 = vmatmul.f32.gmra.mxu0 %v263
      %v471 = vpop.f32.mrf.mxu0
      %v472 = vadd.f32 %v452, %v471
      %473 = vmatmul.f32.gmra.mxu0 %v259
      %v474 = vpop.f32.mrf.mxu0
      %v475 = vadd.f32 %v452, %v474
      %476 = vdwg.mxu0
      %477 = vmatpush.msra.mxu0 %v353
      %478 = vmatpush.msra.mxu0 %v352
      %479 = vmatpush.msra.mxu0 %v351
      %480 = vmatpush.msra.mxu0 %v350
      %481 = vmatpush.msra.mxu0 %v349
      %482 = vmatpush.msra.mxu0 %v348
      %483 = vmatpush.msra.mxu0 %v347
      %484 = vmatpush.msra.mxu0 %v346
      %485 = vmatpush.msra.mxu0 %v345
      %486 = vmatpush.msra.mxu0 %v344
      %487 = vmatpush.msra.mxu0 %v343
      %488 = vmatpush.msra.mxu0 %v342
      %489 = vmatpush.msra.mxu0 %v341
      %490 = vmatpush.msra.mxu0 %v340
      %491 = vmatpush.msra.mxu0 %v339
      %492 = vmatpush.msra.mxu0 %v338
      %493 = vmatmul.f32.gmra.mxu0 %v270
      %v494 = vpop.f32.mrf.mxu0
      %v495 = vadd.f32 %v472, %v494
      %496 = vmatmul.f32.gmra.mxu0 %v272
      %v497 = vpop.f32.mrf.mxu0
      %v498 = vadd.f32 %v475, %v497
      %499 = vdwg.mxu0
      %500 = vmatpush.msra.mxu0 %v369
      %501 = vmatpush.msra.mxu0 %v368
      %502 = vmatpush.msra.mxu0 %v367
      %503 = vmatpush.msra.mxu0 %v366
      %504 = vmatpush.msra.mxu0 %v365
      %505 = vmatpush.msra.mxu0 %v364
      %506 = vmatpush.msra.mxu0 %v363
      %507 = vmatpush.msra.mxu0 %v362
      %508 = vmatpush.msra.mxu0 %v361
      %509 = vmatpush.msra.mxu0 %v360
      %510 = vmatpush.msra.mxu0 %v359
      %511 = vmatpush.msra.mxu0 %v358
      %512 = vmatpush.msra.mxu0 %v357
      %513 = vmatpush.msra.mxu0 %v356
      %514 = vmatpush.msra.mxu0 %v355
      %515 = vmatpush.msra.mxu0 %v354
      %516 = vmatmul.f32.gmra.mxu0 %v278
      %v517 = vpop.f32.mrf.mxu0
      %v518 = vadd.f32 %v495, %v517
      %519 = vmatmul.f32.gmra.mxu0 %v280
      %v520 = vpop.f32.mrf.mxu0
      %v521 = vadd.f32 %v498, %v520
      %522 = vdwg.mxu0
      %523 = vmatpush.msra.mxu0 %v385
      %524 = vmatpush.msra.mxu0 %v384
      %525 = vmatpush.msra.mxu0 %v383
      %526 = vmatpush.msra.mxu0 %v382
      %527 = vmatpush.msra.mxu0 %v381
      %528 = vmatpush.msra.mxu0 %v380
      %529 = vmatpush.msra.mxu0 %v379
      %530 = vmatpush.msra.mxu0 %v378
      %531 = vmatpush.msra.mxu0 %v377
      %532 = vmatpush.msra.mxu0 %v376
      %533 = vmatpush.msra.mxu0 %v375
      %534 = vmatpush.msra.mxu0 %v374
      %535 = vmatpush.msra.mxu0 %v373
      %536 = vmatpush.msra.mxu0 %v372
      %537 = vmatpush.msra.mxu0 %v371
      %538 = vmatpush.msra.mxu0 %v370
      %539 = vmatmul.f32.gmra.mxu0 %v286
      %v540 = vpop.f32.mrf.mxu0
      %v541 = vadd.f32 %v518, %v540
      %542 = vmatmul.f32.gmra.mxu0 %v288
      %v543 = vpop.f32.mrf.mxu0
      %v544 = vadd.f32 %v521, %v543
      %545 = vdwg.mxu0
      %546 = vmatpush.msra.mxu0 %v401
      %547 = vmatpush.msra.mxu0 %v400
      %548 = vmatpush.msra.mxu0 %v399
      %549 = vmatpush.msra.mxu0 %v398
      %550 = vmatpush.msra.mxu0 %v397
      %551 = vmatpush.msra.mxu0 %v396
      %552 = vmatpush.msra.mxu0 %v395
      %553 = vmatpush.msra.mxu0 %v394
      %554 = vmatpush.msra.mxu0 %v393
      %555 = vmatpush.msra.mxu0 %v392
      %556 = vmatpush.msra.mxu0 %v391
      %557 = vmatpush.msra.mxu0 %v390
      %558 = vmatpush.msra.mxu0 %v389
      %559 = vmatpush.msra.mxu0 %v388
      %560 = vmatpush.msra.mxu0 %v387
      %561 = vmatpush.msra.mxu0 %v386
      %562 = vmatmul.f32.gmra.mxu0 %v294
      %v563 = vpop.f32.mrf.mxu0
      %v564 = vadd.f32 %v541, %v563
      %565 = vmatmul.f32.gmra.mxu0 %v296
      %v566 = vpop.f32.mrf.mxu0
      %v567 = vadd.f32 %v544, %v566
      %568 = vdwg.mxu0
      %569 = vmatpush.msra.mxu0 %v417
      %570 = vmatpush.msra.mxu0 %v416
      %571 = vmatpush.msra.mxu0 %v415
      %572 = vmatpush.msra.mxu0 %v414
      %573 = vmatpush.msra.mxu0 %v413
      %574 = vmatpush.msra.mxu0 %v412
      %575 = vmatpush.msra.mxu0 %v411
      %576 = vmatpush.msra.mxu0 %v410
      %577 = vmatpush.msra.mxu0 %v409
      %578 = vmatpush.msra.mxu0 %v408
      %579 = vmatpush.msra.mxu0 %v407
      %580 = vmatpush.msra.mxu0 %v406
      %581 = vmatpush.msra.mxu0 %v405
      %582 = vmatpush.msra.mxu0 %v404
      %583 = vmatpush.msra.mxu0 %v403
      %584 = vmatpush.msra.mxu0 %v402
      %585 = vmatmul.f32.gmra.mxu0 %v301
      %v586 = vpop.f32.mrf.mxu0
      %v587 = vadd.f32 %v564, %v586
      %588 = vmatmul.f32.gmra.mxu0 %v303
      %v589 = vpop.f32.mrf.mxu0
      %v590 = vadd.f32 %v567, %v589
      %591 = vdwg.mxu0
      %592 = vmatpush.msra.mxu0 %v433
      %593 = vmatpush.msra.mxu0 %v432
      %594 = vmatpush.msra.mxu0 %v431
      %595 = vmatpush.msra.mxu0 %v430
      %596 = vmatpush.msra.mxu0 %v429
      %597 = vmatpush.msra.mxu0 %v428
      %598 = vmatpush.msra.mxu0 %v427
      %599 = vmatpush.msra.mxu0 %v426
      %600 = vmatpush.msra.mxu0 %v425
      %601 = vmatpush.msra.mxu0 %v424
      %602 = vmatpush.msra.mxu0 %v423
      %603 = vmatpush.msra.mxu0 %v422
      %604 = vmatpush.msra.mxu0 %v421
      %605 = vmatpush.msra.mxu0 %v420
      %606 = vmatpush.msra.mxu0 %v419
      %607 = vmatpush.msra.mxu0 %v418
      %608 = vmatmul.f32.gmra.mxu0 %v309
      %v609 = vpop.f32.mrf.mxu0
      %v610 = vadd.f32 %v587, %v609
      %611 = vmatmul.f32.gmra.mxu0 %v311
      %v612 = vpop.f32.mrf.mxu0
      %v613 = vadd.f32 %v590, %v612
      %614 = vdwg.mxu0
      %615 = vmatpush.msra.mxu0 %v449
      %616 = vmatpush.msra.mxu0 %v448
      %617 = vmatpush.msra.mxu0 %v447
      %618 = vmatpush.msra.mxu0 %v446
      %619 = vmatpush.msra.mxu0 %v445
      %620 = vmatpush.msra.mxu0 %v444
      %621 = vmatpush.msra.mxu0 %v443
      %622 = vmatpush.msra.mxu0 %v442
      %623 = vmatpush.msra.mxu0 %v441
      %624 = vmatpush.msra.mxu0 %v440
      %625 = vmatpush.msra.mxu0 %v439
      %626 = vmatpush.msra.mxu0 %v438
      %627 = vmatpush.msra.mxu0 %v437
      %628 = vmatpush.msra.mxu0 %v436
      %629 = vmatpush.msra.mxu0 %v435
      %630 = vmatpush.msra.mxu0 %v434
      %631 = vmatmul.f32.gmra.mxu0 %v317
      %v632 = vpop.f32.mrf.mxu0
      %v633 = vadd.f32 %v610, %v632
      %634 = vmatmul.f32.gmra.mxu0 %v319
      %v635 = vpop.f32.mrf.mxu0
      %v636 = vadd.f32 %v613, %v635
      %637 = vdwg.mxu0
      %v638 = vld [vmem:[%s3] sm:$0x3]
      %v639 = vld [vmem:[%s3 + $0x2] sm:$0x3]
      %v640 = vsel %vm306, %v638, 0.0
      %v641 = vsel %vm306, %v639, 0.0
      %v642 = vadd.f32 %v640, %v641
      %v643 = vrcp.pop 32.0
      %v644 = vmul.f32 32.0, %v643
      %v645 = vsub.f32 1.0, %v644
      %v646 = vmul.f32 %v643, %v645
      %v647 = vadd.f32 %v643, %v646
      %vm648 = vweird.f32 %v643
      %v649 = vsel %vm648, %v643, %v647
      %v650 = vmul.f32 %v642, %v649
      %v651 = vmul.f32 %v650, %v650
      %v653 = vrot.slane %v651, 7
      %v655 = vsub.f32 %v650, %v653
      %v656 = vmax.f32 %v655, 0.0
      %v657 = vld [vmem:[%s4] sm:$0x1]
      %v658 = vadd.f32 %v656, 1e-05
      %v659 = vrsqrt.pop %v658
      %v660 = vmul.f32 %v659, %v658
      %v661 = vmul.f32 %v660, %v659
      %v662 = vmul.f32 0.5, %v661
      %v663 = vsub.f32 1.5, %v662
      %v664 = vmul.f32 %v659, %v663
      %vm665 = vweird.f32 %v658
      %vm666 = vweird.f32 %v659
      %vm667 = vmor %vm665, %vm666
      %v668 = vsel %vm667, %v659, %v664
      %670 = vst [vmem:[#allocation1] sm:$0xff] %v668
      %s671 = scalar_lea.vmem [#allocation1], 1
      %v672 = vld [vmem:[%s671] ss:$9 sm:$0xff]
      %v674 = vmul.f32 %v657, %v672
      %v675 = vld [vmem:[%s5] sm:$0x1]
      %v676 = vmul.f32 %v650, %v674
      %v677 = vsub.f32 %v675, %v676
      %v679 = vperm.slane %v674, 0
      %v681 = vmul.f32 %v633, %v679
      %v682 = vmul.f32 %v636, %v679
      %v684 = vperm.slane %v677, 0
      %v686 = vadd.f32 %v681, %v684
      %v687 = vadd.f32 %v682, %v684
      %v688 = vmax.f32 %v686, 0.0
      %v689 = vmax.f32 %v687, 0.0
      %690 = vst [vmem:[%s251] sm:$0xff] %v688
      %691 = vst [vmem:[%s251 + $0x8] sm:$0xff] %v689
      %p692 = scmp.lt.s32.totalorder %s17, 1
      %s693 = scalar_select %p692, %s17, 1
      %s694 = smul.addr %s693, 2
      %s695 = smul.addr %s694, 8
      %s696 = scalar_lea.vmem %s6, %s695
      // Predicated region
      $region45: #{residual_block_forward.7} parent=43 // pred_check
        %p697 = pneg %p166
      $region46: #{residual_block_forward.7} parent=43 // pred_check_branch
        %699 = sbr.rel (%p697) target = $region48
      $region47: #{residual_block_forward.7} parent=43 // pred_region
        _
      $region48: #{residual_block_forward.7} parent=43 // pred_fallthru
        _
    $region44: #{residual_block_forward.7} parent=5 // pred_fallthru
      _
    %p700 = scmp.le.s32.totalorder 2, %s12
    // Predicated region
    $region49: #{residual_block_forward.7} parent=5 // pred_check
      %p701 = pneg %p700
    $region50: #{residual_block_forward.7} parent=5 // pred_check_branch
      %703 = sbr.rel (%p701) target = $region52
    $region51: #{residual_block_forward.7} parent=5 // pred_region
      %s704 = ssub.s32 %s12, 2
      // Predicated region
      $region53: #{residual_block_forward.7} parent=51 // pred_check
        %p705 = pneg %p172
      $region54: #{residual_block_forward.7} parent=51 // pred_check_branch
        %707 = sbr.rel (%p705) target = $region56
      $region55: #{residual_block_forward.7} parent=51 // pred_region
        %p708 = scmp.lt.s32.totalorder %s18, 1
        %s709 = scalar_select %p708, %s18, 1
        %s710 = smul.addr %s709, 2
        %s711 = smul.addr %s710, 8
        %s712 = scalar_lea.vmem %s6, %s711
      $region56: #{residual_block_forward.7} parent=51 // pred_fallthru
        _
    $region52: #{residual_block_forward.7} parent=5 // pred_fallthru
      _
  $region6: #{residual_block_forward.7} parent=0 // loop_footer
    %s16 = sadd.s32 1, %s12
  $region7: #{residual_block_forward.7} parent=0 // loop_footer_branch
    %11 = sbr.rel target = $region3
  $region8: #{residual_block_forward.7} parent=0 // loop_exit
    _

// kernel: residual_block_forward.6
$region0: #{residual_block_forward.6}
  #allocation0 [shape = 'u32[]', space=smem, size = 0x4, offset = 0x4, fixed_abs, tag = 'smem constant byte address 0x4 - core index']
  #allocation1 [shape = 'u32[72,128]{1,0:T(1,128)}', space=vmem, size = 0x9000, scoped, tag = 'internal scratch']
  %s0 = inlined_call_operand.vmem [shape: f32[2,16,128], index: 0, kind: input, shape index: {}]
  %s1 = inlined_call_operand.vmem [shape: f32[1024,128], index: 1, kind: input, shape index: {}]
  %s2 = inlined_call_operand.vmem [shape: f32[1,128], index: 2, kind: input, shape index: {}]
  %s3 = inlined_call_operand.vmem [shape: f32[2,2,128], index: 3, kind: output, shape index: {}]
  %s4 = sld [smem:[#allocation0]]
  $region45: #{residual_block_forward.6} parent=0
    _
  %s6 = ssub.s32 1, %s4
  %s7 = scalar_select 0, %s6, %s4
  loop: start=0, step=1, limit=4
  $region2: #{residual_block_forward.6} parent=0 // loop_pre_header
    _
  $region3: #{residual_block_forward.6} parent=0 // loop_header
    %s9 = sphi 0, %s13
    %p10 = scmp.ge.s32.totalorder %s9, 4
    %s19 = sphi 0, %s21
    %s22 = sphi 0, %s19
    %s23 = sphi 0, %s22
    %s39 = sphi 0, %s23
    %s43 = sphi 0, %s43
    %s45 = sphi 0, %s43
    %s46 = sphi 0, %s45
    %s60 = sphi 0, %s46
    %s64 = sphi 0, %s64
    %s66 = sphi 0, %s64
    %s67 = sphi 0, %s66
    %s81 = sphi 0, %s67
    %s87 = sphi 0, %s89
    %s90 = sphi 0, %s87
    %s91 = sphi 0, %s90
    %s107 = sphi 0, %s91
  $region4: #{residual_block_forward.6} parent=0 // loop_header_branch
    %12 = sbr.rel (%p10) target = $region8
  $region5: #{residual_block_forward.6} parent=0 // loop_body
    %s14 = ssub.s32 %s9, 1
    %s15 = ssub.s32 %s9, 2
    %s16 = sadd.s32 %s9, 1
    %s17 = ssub.s32 %s9, %s16
    %p18 = scmp.eq.s32.totalorder %s17, 0
    %s20 = sadd.s32 %s19, 1
    %s21 = scalar_select %p18, %s19, %s20
    %p24 = pneg %p18
    %p25 = scmp.eq.s32.totalorder %s9, 1
    %p26 = por %p24, %p25
    %p27 = scmp.ne.s32.totalorder %s19, %s22
    %p28 = scmp.eq.s32.totalorder %s9, 0
    %p29 = por %p27, %p28
    %p30 = scmp.ne.s32.totalorder %s19, %s22
    %p31 = scmp.eq.s32.totalorder %s14, 1
    %p32 = por %p30, %p31
    %p33 = scmp.ne.s32.totalorder %s22, %s23
    %p34 = scmp.eq.s32.totalorder %s14, 0
    %p35 = por %p33, %p34
    %p36 = scmp.ne.s32.totalorder %s22, %s23
    %p37 = scmp.eq.s32.totalorder %s15, 1
    %p38 = por %p36, %p37
    %p40 = scmp.ne.s32.totalorder %s23, %s39
    %p41 = scmp.eq.s32.totalorder %s15, 0
    %p42 = por %p40, %p41
    %s44 = sadd.s32 %s43, 1
    %p47 = scmp.eq.s32.totalorder %s9, 1
    %p48 = scmp.ne.s32.totalorder %s43, %s45
    %p49 = scmp.eq.s32.totalorder %s9, 0
    %p50 = por %p48, %p49
    %p51 = scmp.ne.s32.totalorder %s43, %s45
    %p52 = scmp.eq.s32.totalorder %s14, 1
    %p53 = por %p51, %p52
    %p54 = scmp.ne.s32.totalorder %s45, %s46
    %p55 = scmp.eq.s32.totalorder %s14, 0
    %p56 = por %p54, %p55
    %p57 = scmp.ne.s32.totalorder %s45, %s46
    %p58 = scmp.eq.s32.totalorder %s15, 1
    %p59 = por %p57, %p58
    %p61 = scmp.ne.s32.totalorder %s46, %s60
    %p62 = scmp.eq.s32.totalorder %s15, 0
    %p63 = por %p61, %p62
    %s65 = sadd.s32 %s64, 1
    %p68 = scmp.eq.s32.totalorder %s9, 1
    %p69 = scmp.ne.s32.totalorder %s64, %s66
    %p70 = scmp.eq.s32.totalorder %s9, 0
    %p71 = por %p69, %p70
    %p72 = scmp.ne.s32.totalorder %s64, %s66
    %p73 = scmp.eq.s32.totalorder %s14, 1
    %p74 = por %p72, %p73
    %p75 = scmp.ne.s32.totalorder %s66, %s67
    %p76 = scmp.eq.s32.totalorder %s14, 0
    %p77 = por %p75, %p76
    %p78 = scmp.ne.s32.totalorder %s66, %s67
    %p79 = scmp.eq.s32.totalorder %s15, 1
    %p80 = por %p78, %p79
    %p82 = scmp.ne.s32.totalorder %s67, %s81
    %p83 = scmp.eq.s32.totalorder %s15, 0
    %p84 = por %p82, %p83
    %s85 = ssub.s32 %s9, %s16
    %p86 = scmp.eq.s32.totalorder %s85, 0
    %s88 = sadd.s32 %s87, 1
    %s89 = scalar_select %p86, %s87, %s88
    %p92 = pneg %p86
    %p93 = scmp.eq.s32.totalorder %s9, 1
    %p94 = por %p92, %p93
    %p95 = scmp.ne.s32.totalorder %s87, %s90
    %p96 = scmp.eq.s32.totalorder %s9, 0
    %p97 = por %p95, %p96
    %p98 = scmp.ne.s32.totalorder %s87, %s90
    %p99 = scmp.eq.s32.totalorder %s14, 1
    %p100 = por %p98, %p99
    %p101 = scmp.ne.s32.totalorder %s90, %s91
    %p102 = scmp.eq.s32.totalorder %s14, 0
    %p103 = por %p101, %p102
    %p104 = scmp.ne.s32.totalorder %s90, %s91
    %p105 = scmp.eq.s32.totalorder %s15, 1
    %p106 = por %p104, %p105
    %p108 = scmp.ne.s32.totalorder %s91, %s107
    %p109 = scmp.eq.s32.totalorder %s15, 0
    %p110 = por %p108, %p109
    %p111 = scmp.le.s32.totalorder 1, %s9
    %p112 = scmp.lt.s32.totalorder %s9, 3
    %p113 = pnand %p111, %p112
    %p114 = pneg %p113
    // Predicated region
    $region9: #{residual_block_forward.6} parent=5 // pred_check
      _
    $region10: #{residual_block_forward.6} parent=5 // pred_check_branch
      %116 = sbr.rel (%p113) target = $region12
    $region11: #{residual_block_forward.6} parent=5 // pred_region
      %s117 = ssub.s32 %s9, 1
      // Predicated region
      $region13: #{residual_block_forward.6} parent=11 // pred_check
        %p118 = pneg %p56
      $region14: #{residual_block_forward.6} parent=11 // pred_check_branch
        %120 = sbr.rel (%p118) target = $region16
      $region15: #{residual_block_forward.6} parent=11 // pred_region
        _
      $region16: #{residual_block_forward.6} parent=11 // pred_fallthru
        _
      // Predicated region
      $region17: #{residual_block_forward.6} parent=11 // pred_check
        %p121 = pneg %p77
      $region18: #{residual_block_forward.6} parent=11 // pred_check_branch
        %123 = sbr.rel (%p121) target = $region20
      $region19: #{residual_block_forward.6} parent=11 // pred_region
        _
      $region20: #{residual_block_forward.6} parent=11 // pred_fallthru
        _
    $region12: #{residual_block_forward.6} parent=5 // pred_fallthru
      _
    %p124 = scmp.lt.s32.totalorder %s9, 2
    // Predicated region
    $region21: #{residual_block_forward.6} parent=5 // pred_check
      %p125 = pneg %p124
    $region22: #{residual_block_forward.6} parent=5 // pred_check_branch
      %127 = sbr.rel (%p125) target = $region24
    $region23: #{residual_block_forward.6} parent=5 // pred_region
      // Predicated region
      $region25: #{residual_block_forward.6} parent=23 // pred_check
        %p128 = pneg %p29
      $region26: #{residual_block_forward.6} parent=23 // pred_check_branch
        %130 = sbr.rel (%p128) target = $region28
      $region27: #{residual_block_forward.6} parent=23 // pred_region
        %p131 = scmp.lt.s32.totalorder %s9, 1
        %s132 = scalar_select %p131, %s9, 1
        %s133 = smul.addr %s132, 2
        %s134 = smul.addr %s133, 8
        %s135 = scalar_lea.vmem %s0, %s134
      $region28: #{residual_block_forward.6} parent=23 // pred_fallthru
        _
    $region24: #{residual_block_forward.6} parent=5 // pred_fallthru
      _
    %p136 = scmp.le.s32.totalorder 1, %s9
    %p137 = scmp.lt.s32.totalorder %s9, 3
    %p138 = pnand %p136, %p137
    %p139 = pneg %p138
    // Predicated region
    $region29: #{residual_block_forward.6} parent=5 // pred_check
      _
    $region30: #{residual_block_forward.6} parent=5 // pred_check_branch
      %141 = sbr.rel (%p138) target = $region32
    $region31: #{residual_block_forward.6} parent=5 // pred_region
      %s142 = ssub.s32 %s9, 1
      %p143 = scmp.lt.s32.totalorder %s14, 1
      %s144 = scalar_select %p143, %s14, 1
      %s145 = smul.addr %s144, 2
      %s146 = smul.addr %s145, 8
      %s147 = scalar_lea.vmem %s0, %s146
      %p148 = pneg %p35
      %p149 = pneg %p32
      %p150 = pneg %p56
      %p151 = pneg %p53
      %p152 = pneg %p77
      %p153 = pneg %p74
      %p154 = pneg %p103
      %p155 = pneg %p100
      %p156 = scmp.lt.s32.totalorder %s14, 1
      %s157 = scalar_select %p156, %s14, 1
      %s158 = smul.addr %s157, 2
      %s159 = scalar_lea.vmem %s3, %s158
      %p160 = scmp.lt.s32.totalorder %s14, 1
      %s161 = scalar_select %p160, %s14, 1
      %s162 = smul.addr %s161, 2
      %s163 = smul.addr %s162, 8
      %s164 = scalar_lea.vmem %s0, %s163
      %p165 = scmp.lt.s32.totalorder %s14, 1
      %s166 = scalar_select %p165, %s14, 1
      %s167 = smul.addr %s166, 2
      %s168 = scalar_lea.vmem %s3, %s167
      %v169 = vld [vmem:[%s164] sm:$0xff]
      %v170 = vld [vmem:[%s164 + $0x8] sm:$0xff]
      %vm173 = vcmask 1042432
      %v174 = vrot.slane %v169, 5
      %v175 = vrot.slane %v170, 5
      %v176 = vsel %vm173, %v174, %v175
      %v180 = vsel %vm173, 0.0, %v174
      %v181 = vsel %vm173, %v175, 0.0
      %vm184 = vcmask 1046528
      %v185 = vrot.slane %v180, 1
      %v186 = vrot.slane %v176, 1
      %v187 = vsel %vm184, %v185, %v186
      %v188 = vrot.slane %v181, 1
      %v189 = vsel %vm184, %v186, %v188
      %vm192 = vcmask 1045504
      %v193 = vrot.slane %v180, 2
      %v194 = vrot.slane %v176, 2
      %v195 = vsel %vm192, %v193, %v194
      %v196 = vrot.slane %v181, 2
      %v197 = vsel %vm192, %v194, %v196
      %vm200 = vcmask 1044480
      %v201 = vrot.slane %v180, 3
      %v202 = vrot.slane %v176, 3
      %v203 = vsel %vm200, %v201, %v202
      %v204 = vrot.slane %v181, 3
      %v205 = vsel %vm200, %v202, %v204
      %vm208 = vcmask 1043456
      %v209 = vrot.slane %v180, 4
      %v210 = vrot.slane %v176, 4
      %v211 = vsel %vm208, %v209, %v210
      %v212 = vrot.slane %v181, 4
      %v213 = vsel %vm208, %v210, %v212
      %v216 = vrot.slane %v180, 5
      %v217 = vrot.slane %v176, 5
      %v218 = vsel %vm173, %v216, %v217
      %v219 = vrot.slane %v181, 5
      %v220 = vsel %vm173, %v217, %v219
      %vm223 = vcmask 1041408
      %v224 = vrot.slane %v180, 6
      %v225 = vrot.slane %v176, 6
      %v226 = vsel %vm223, %v224, %v225
      %v227 = vrot.slane %v181, 6
      %v228 = vsel %vm223, %v225, %v227
      %vm231 = vcmask 1040384
      %v232 = vrot.slane %v180, 7
      %v233 = vrot.slane %v176, 7
      %v234 = vsel %vm231, %v232, %v233
      %v235 = vrot.slane %v181, 7
      %v236 = vsel %vm231, %v233, %v235
      %v239 = vld [vmem:[%s1] sm:$0xff]
      %v240 = vld [vmem:[%s1 + $0x8] sm:$0xff]
      %v241 = vld [vmem:[%s1 + $0x10] sm:$0xff]
      %v242 = vld [vmem:[%s1 + $0x18] sm:$0xff]
      %v243 = vld [vmem:[%s1 + $0x20] sm:$0xff]
      %v244 = vld [vmem:[%s1 + $0x28] sm:$0xff]
      %v245 = vld [vmem:[%s1 + $0x30] sm:$0xff]
      %v246 = vld [vmem:[%s1 + $0x38] sm:$0xff]
      %v247 = vld [vmem:[%s1 + $0x40] sm:$0xff]
      %v248 = vld [vmem:[%s1 + $0x48] sm:$0xff]
      %v249 = vld [vmem:[%s1 + $0x50] sm:$0xff]
      %v250 = vld [vmem:[%s1 + $0x58] sm:$0xff]
      %v251 = vld [vmem:[%s1 + $0x60] sm:$0xff]
      %v252 = vld [vmem:[%s1 + $0x68] sm:$0xff]
      %v253 = vld [vmem:[%s1 + $0x70] sm:$0xff]
      %v254 = vld [vmem:[%s1 + $0x78] sm:$0xff]
      %v255 = vld [vmem:[%s1 + $0x80] sm:$0xff]
      %v256 = vld [vmem:[%s1 + $0x88] sm:$0xff]
      %v257 = vld [vmem:[%s1 + $0x90] sm:$0xff]
      %v258 = vld [vmem:[%s1 + $0x98] sm:$0xff]
      %v259 = vld [vmem:[%s1 + $0xa0] sm:$0xff]
      %v260 = vld [vmem:[%s1 + $0xa8] sm:$0xff]
      %v261 = vld [vmem:[%s1 + $0xb0] sm:$0xff]
      %v262 = vld [vmem:[%s1 + $0xb8] sm:$0xff]
      %v263 = vld [vmem:[%s1 + $0xc0] sm:$0xff]
      %v264 = vld [vmem:[%s1 + $0xc8] sm:$0xff]
      %v265 = vld [vmem:[%s1 + $0xd0] sm:$0xff]
      %v266 = vld [vmem:[%s1 + $0xd8] sm:$0xff]
      %v267 = vld [vmem:[%s1 + $0xe0] sm:$0xff]
      %v268 = vld [vmem:[%s1 + $0xe8] sm:$0xff]
      %v269 = vld [vmem:[%s1 + $0xf0] sm:$0xff]
      %v270 = vld [vmem:[%s1 + $0xf8] sm:$0xff]
      %v271 = vld [vmem:[%s1 + $0x100] sm:$0xff]
      %v272 = vld [vmem:[%s1 + $0x108] sm:$0xff]
      %v273 = vld [vmem:[%s1 + $0x110] sm:$0xff]
      %v274 = vld [vmem:[%s1 + $0x118] sm:$0xff]
      %v275 = vld [vmem:[%s1 + $0x120] sm:$0xff]
      %v276 = vld [vmem:[%s1 + $0x128] sm:$0xff]
      %v277 = vld [vmem:[%s1 + $0x130] sm:$0xff]
      %v278 = vld [vmem:[%s1 + $0x138] sm:$0xff]
      %v279 = vld [vmem:[%s1 + $0x140] sm:$0xff]
      %v280 = vld [vmem:[%s1 + $0x148] sm:$0xff]
      %v281 = vld [vmem:[%s1 + $0x150] sm:$0xff]
      %v282 = vld [vmem:[%s1 + $0x158] sm:$0xff]
      %v283 = vld [vmem:[%s1 + $0x160] sm:$0xff]
      %v284 = vld [vmem:[%s1 + $0x168] sm:$0xff]
      %v285 = vld [vmem:[%s1 + $0x170] sm:$0xff]
      %v286 = vld [vmem:[%s1 + $0x178] sm:$0xff]
      %v287 = vld [vmem:[%s1 + $0x180] sm:$0xff]
      %v288 = vld [vmem:[%s1 + $0x188] sm:$0xff]
      %v289 = vld [vmem:[%s1 + $0x190] sm:$0xff]
      %v290 = vld [vmem:[%s1 + $0x198] sm:$0xff]
      %v291 = vld [vmem:[%s1 + $0x1a0] sm:$0xff]
      %v292 = vld [vmem:[%s1 + $0x1a8] sm:$0xff]
      %v293 = vld [vmem:[%s1 + $0x1b0] sm:$0xff]
      %v294 = vld [vmem:[%s1 + $0x1b8] sm:$0xff]
      %v295 = vld [vmem:[%s1 + $0x1c0] sm:$0xff]
      %v296 = vld [vmem:[%s1 + $0x1c8] sm:$0xff]
      %v297 = vld [vmem:[%s1 + $0x1d0] sm:$0xff]
      %v298 = vld [vmem:[%s1 + $0x1d8] sm:$0xff]
      %v299 = vld [vmem:[%s1 + $0x1e0] sm:$0xff]
      %v300 = vld [vmem:[%s1 + $0x1e8] sm:$0xff]
      %v301 = vld [vmem:[%s1 + $0x1f0] sm:$0xff]
      %v302 = vld [vmem:[%s1 + $0x1f8] sm:$0xff]
      %v303 = vld [vmem:[%s1 + $0x200] sm:$0xff]
      %v304 = vld [vmem:[%s1 + $0x208] sm:$0xff]
      %v305 = vld [vmem:[%s1 + $0x210] sm:$0xff]
      %v306 = vld [vmem:[%s1 + $0x218] sm:$0xff]
      %v307 = vld [vmem:[%s1 + $0x220] sm:$0xff]
      %v308 = vld [vmem:[%s1 + $0x228] sm:$0xff]
      %v309 = vld [vmem:[%s1 + $0x230] sm:$0xff]
      %v310 = vld [vmem:[%s1 + $0x238] sm:$0xff]
      %v311 = vld [vmem:[%s1 + $0x240] sm:$0xff]
      %v312 = vld [vmem:[%s1 + $0x248] sm:$0xff]
      %v313 = vld [vmem:[%s1 + $0x250] sm:$0xff]
      %v314 = vld [vmem:[%s1 + $0x258] sm:$0xff]
      %v315 = vld [vmem:[%s1 + $0x260] sm:$0xff]
      %v316 = vld [vmem:[%s1 + $0x268] sm:$0xff]
      %v317 = vld [vmem:[%s1 + $0x270] sm:$0xff]
      %v318 = vld [vmem:[%s1 + $0x278] sm:$0xff]
      %v319 = vld [vmem:[%s1 + $0x280] sm:$0xff]
      %v320 = vld [vmem:[%s1 + $0x288] sm:$0xff]
      %v321 = vld [vmem:[%s1 + $0x290] sm:$0xff]
      %v322 = vld [vmem:[%s1 + $0x298] sm:$0xff]
      %v323 = vld [vmem:[%s1 + $0x2a0] sm:$0xff]
      %v324 = vld [vmem:[%s1 + $0x2a8] sm:$0xff]
      %v325 = vld [vmem:[%s1 + $0x2b0] sm:$0xff]
      %v326 = vld [vmem:[%s1 + $0x2b8] sm:$0xff]
      %v327 = vld [vmem:[%s1 + $0x2c0] sm:$0xff]
      %v328 = vld [vmem:[%s1 + $0x2c8] sm:$0xff]
      %v329 = vld [vmem:[%s1 + $0x2d0] sm:$0xff]
      %v330 = vld [vmem:[%s1 + $0x2d8] sm:$0xff]
      %v331 = vld [vmem:[%s1 + $0x2e0] sm:$0xff]
      %v332 = vld [vmem:[%s1 + $0x2e8] sm:$0xff]
      %v333 = vld [vmem:[%s1 + $0x2f0] sm:$0xff]
      %v334 = vld [vmem:[%s1 + $0x2f8] sm:$0xff]
      %v335 = vld [vmem:[%s1 + $0x300] sm:$0xff]
      %v336 = vld [vmem:[%s1 + $0x308] sm:$0xff]
      %v337 = vld [vmem:[%s1 + $0x310] sm:$0xff]
      %v338 = vld [vmem:[%s1 + $0x318] sm:$0xff]
      %v339 = vld [vmem:[%s1 + $0x320] sm:$0xff]
      %v340 = vld [vmem:[%s1 + $0x328] sm:$0xff]
      %v341 = vld [vmem:[%s1 + $0x330] sm:$0xff]
      %v342 = vld [vmem:[%s1 + $0x338] sm:$0xff]
      %v343 = vld [vmem:[%s1 + $0x340] sm:$0xff]
      %v344 = vld [vmem:[%s1 + $0x348] sm:$0xff]
      %v345 = vld [vmem:[%s1 + $0x350] sm:$0xff]
      %v346 = vld [vmem:[%s1 + $0x358] sm:$0xff]
      %v347 = vld [vmem:[%s1 + $0x360] sm:$0xff]
      %v348 = vld [vmem:[%s1 + $0x368] sm:$0xff]
      %v349 = vld [vmem:[%s1 + $0x370] sm:$0xff]
      %v350 = vld [vmem:[%s1 + $0x378] sm:$0xff]
      %v351 = vld [vmem:[%s1 + $0x380] sm:$0xff]
      %v352 = vld [vmem:[%s1 + $0x388] sm:$0xff]
      %v353 = vld [vmem:[%s1 + $0x390] sm:$0xff]
      %v354 = vld [vmem:[%s1 + $0x398] sm:$0xff]
      %v355 = vld [vmem:[%s1 + $0x3a0] sm:$0xff]
      %v356 = vld [vmem:[%s1 + $0x3a8] sm:$0xff]
      %v357 = vld [vmem:[%s1 + $0x3b0] sm:$0xff]
      %v358 = vld [vmem:[%s1 + $0x3b8] sm:$0xff]
      %v359 = vld [vmem:[%s1 + $0x3c0] sm:$0xff]
      %v360 = vld [vmem:[%s1 + $0x3c8] sm:$0xff]
      %v361 = vld [vmem:[%s1 + $0x3d0] sm:$0xff]
      %v362 = vld [vmem:[%s1 + $0x3d8] sm:$0xff]
      %v363 = vld [vmem:[%s1 + $0x3e0] sm:$0xff]
      %v364 = vld [vmem:[%s1 + $0x3e8] sm:$0xff]
      %v365 = vld [vmem:[%s1 + $0x3f0] sm:$0xff]
      %v366 = vld [vmem:[%s1 + $0x3f8] sm:$0xff]
      %v367 = vld [vmem:[%s2] sm:$0x1]
      %v369 = vperm.slane %v367, 0
      %371 = vmatpush.msra.mxu0 %v254
      %372 = vmatpush.msra.mxu0 %v253
      %373 = vmatpush.msra.mxu0 %v252
      %374 = vmatpush.msra.mxu0 %v251
      %375 = vmatpush.msra.mxu0 %v250
      %376 = vmatpush.msra.mxu0 %v249
      %377 = vmatpush.msra.mxu0 %v248
      %378 = vmatpush.msra.mxu0 %v247
      %379 = vmatpush.msra.mxu0 %v246
      %380 = vmatpush.msra.mxu0 %v245
      %381 = vmatpush.msra.mxu0 %v244
      %382 = vmatpush.msra.mxu0 %v243
      %383 = vmatpush.msra.mxu0 %v242
      %384 = vmatpush.msra.mxu0 %v241
      %385 = vmatpush.msra.mxu0 %v240
      %386 = vmatpush.msra.mxu0 %v239
      %387 = vmatmul.f32.gmra.mxu0 %v180
      %v388 = vpop.f32.mrf.mxu0
      %v389 = vadd.f32 %v369, %v388
      %390 = vmatmul.f32.gmra.mxu0 %v176
      %v391 = vpop.f32.mrf.mxu0
      %v392 = vadd.f32 %v369, %v391
      %393 = vdwg.mxu0
      %394 = vmatpush.msra.mxu0 %v270
      %395 = vmatpush.msra.mxu0 %v269
      %396 = vmatpush.msra.mxu0 %v268
      %397 = vmatpush.msra.mxu0 %v267
      %398 = vmatpush.msra.mxu0 %v266
      %399 = vmatpush.msra.mxu0 %v265
      %400 = vmatpush.msra.mxu0 %v264
      %401 = vmatpush.msra.mxu0 %v263
      %402 = vmatpush.msra.mxu0 %v262
      %403 = vmatpush.msra.mxu0 %v261
      %404 = vmatpush.msra.mxu0 %v260
      %405 = vmatpush.msra.mxu0 %v259
      %406 = vmatpush.msra.mxu0 %v258
      %407 = vmatpush.msra.mxu0 %v257
      %408 = vmatpush.msra.mxu0 %v256
      %409 = vmatpush.msra.mxu0 %v255
      %410 = vmatmul.f32.gmra.mxu0 %v187
      %v411 = vpop.f32.mrf.mxu0
      %v412 = vadd.f32 %v389, %v411
      %413 = vmatmul.f32.gmra.mxu0 %v189
      %v414 = vpop.f32.mrf.mxu0
      %v415 = vadd.f32 %v392, %v414
      %416 = vdwg.mxu0
      %417 = vmatpush.msra.mxu0 %v286
      %418 = vmatpush.msra.mxu0 %v285
      %419 = vmatpush.msra.mxu0 %v284
      %420 = vmatpush.msra.mxu0 %v283
      %421 = vmatpush.msra.mxu0 %v282
      %422 = vmatpush.msra.mxu0 %v281
      %423 = vmatpush.msra.mxu0 %v280
      %424 = vmatpush.msra.mxu0 %v279
      %425 = vmatpush.msra.mxu0 %v278
      %426 = vmatpush.msra.mxu0 %v277
      %427 = vmatpush.msra.mxu0 %v276
      %428 = vmatpush.msra.mxu0 %v275
      %429 = vmatpush.msra.mxu0 %v274
      %430 = vmatpush.msra.mxu0 %v273
      %431 = vmatpush.msra.mxu0 %v272
      %432 = vmatpush.msra.mxu0 %v271
      %433 = vmatmul.f32.gmra.mxu0 %v195
      %v434 = vpop.f32.mrf.mxu0
      %v435 = vadd.f32 %v412, %v434
      %436 = vmatmul.f32.gmra.mxu0 %v197
      %v437 = vpop.f32.mrf.mxu0
      %v438 = vadd.f32 %v415, %v437
      %439 = vdwg.mxu0
      %440 = vmatpush.msra.mxu0 %v302
      %441 = vmatpush.msra.mxu0 %v301
      %442 = vmatpush.msra.mxu0 %v300
      %443 = vmatpush.msra.mxu0 %v299
      %444 = vmatpush.msra.mxu0 %v298
      %445 = vmatpush.msra.mxu0 %v297
      %446 = vmatpush.msra.mxu0 %v296
      %447 = vmatpush.msra.mxu0 %v295
      %448 = vmatpush.msra.mxu0 %v294
      %449 = vmatpush.msra.mxu0 %v293
      %450 = vmatpush.msra.mxu0 %v292
      %451 = vmatpush.msra.mxu0 %v291
      %452 = vmatpush.msra.mxu0 %v290
      %453 = vmatpush.msra.mxu0 %v289
      %454 = vmatpush.msra.mxu0 %v288
      %455 = vmatpush.msra.mxu0 %v287
      %456 = vmatmul.f32.gmra.mxu0 %v203
      %v457 = vpop.f32.mrf.mxu0
      %v458 = vadd.f32 %v435, %v457
      %459 = vmatmul.f32.gmra.mxu0 %v205
      %v460 = vpop.f32.mrf.mxu0
      %v461 = vadd.f32 %v438, %v460
      %462 = vdwg.mxu0
      %463 = vmatpush.msra.mxu0 %v318
      %464 = vmatpush.msra.mxu0 %v317
      %465 = vmatpush.msra.mxu0 %v316
      %466 = vmatpush.msra.mxu0 %v315
      %467 = vmatpush.msra.mxu0 %v314
      %468 = vmatpush.msra.mxu0 %v313
      %469 = vmatpush.msra.mxu0 %v312
      %470 = vmatpush.msra.mxu0 %v311
      %471 = vmatpush.msra.mxu0 %v310
      %472 = vmatpush.msra.mxu0 %v309
      %473 = vmatpush.msra.mxu0 %v308
      %474 = vmatpush.msra.mxu0 %v307
      %475 = vmatpush.msra.mxu0 %v306
      %476 = vmatpush.msra.mxu0 %v305
      %477 = vmatpush.msra.mxu0 %v304
      %478 = vmatpush.msra.mxu0 %v303
      %479 = vmatmul.f32.gmra.mxu0 %v211
      %v480 = vpop.f32.mrf.mxu0
      %v481 = vadd.f32 %v458, %v480
      %482 = vmatmul.f32.gmra.mxu0 %v213
      %v483 = vpop.f32.mrf.mxu0
      %v484 = vadd.f32 %v461, %v483
      %485 = vdwg.mxu0
      %486 = vmatpush.msra.mxu0 %v334
      %487 = vmatpush.msra.mxu0 %v333
      %488 = vmatpush.msra.mxu0 %v332
      %489 = vmatpush.msra.mxu0 %v331
      %490 = vmatpush.msra.mxu0 %v330
      %491 = vmatpush.msra.mxu0 %v329
      %492 = vmatpush.msra.mxu0 %v328
      %493 = vmatpush.msra.mxu0 %v327
      %494 = vmatpush.msra.mxu0 %v326
      %495 = vmatpush.msra.mxu0 %v325
      %496 = vmatpush.msra.mxu0 %v324
      %497 = vmatpush.msra.mxu0 %v323
      %498 = vmatpush.msra.mxu0 %v322
      %499 = vmatpush.msra.mxu0 %v321
      %500 = vmatpush.msra.mxu0 %v320
      %501 = vmatpush.msra.mxu0 %v319
      %502 = vmatmul.f32.gmra.mxu0 %v218
      %v503 = vpop.f32.mrf.mxu0
      %v504 = vadd.f32 %v481, %v503
      %505 = vmatmul.f32.gmra.mxu0 %v220
      %v506 = vpop.f32.mrf.mxu0
      %v507 = vadd.f32 %v484, %v506
      %508 = vdwg.mxu0
      %509 = vmatpush.msra.mxu0 %v350
      %510 = vmatpush.msra.mxu0 %v349
      %511 = vmatpush.msra.mxu0 %v348
      %512 = vmatpush.msra.mxu0 %v347
      %513 = vmatpush.msra.mxu0 %v346
      %514 = vmatpush.msra.mxu0 %v345
      %515 = vmatpush.msra.mxu0 %v344
      %516 = vmatpush.msra.mxu0 %v343
      %517 = vmatpush.msra.mxu0 %v342
      %518 = vmatpush.msra.mxu0 %v341
      %519 = vmatpush.msra.mxu0 %v340
      %520 = vmatpush.msra.mxu0 %v339
      %521 = vmatpush.msra.mxu0 %v338
      %522 = vmatpush.msra.mxu0 %v337
      %523 = vmatpush.msra.mxu0 %v336
      %524 = vmatpush.msra.mxu0 %v335
      %525 = vmatmul.f32.gmra.mxu0 %v226
      %v526 = vpop.f32.mrf.mxu0
      %v527 = vadd.f32 %v504, %v526
      %528 = vmatmul.f32.gmra.mxu0 %v228
      %v529 = vpop.f32.mrf.mxu0
      %v530 = vadd.f32 %v507, %v529
      %531 = vdwg.mxu0
      %532 = vmatpush.msra.mxu0 %v366
      %533 = vmatpush.msra.mxu0 %v365
      %534 = vmatpush.msra.mxu0 %v364
      %535 = vmatpush.msra.mxu0 %v363
      %536 = vmatpush.msra.mxu0 %v362
      %537 = vmatpush.msra.mxu0 %v361
      %538 = vmatpush.msra.mxu0 %v360
      %539 = vmatpush.msra.mxu0 %v359
      %540 = vmatpush.msra.mxu0 %v358
      %541 = vmatpush.msra.mxu0 %v357
      %542 = vmatpush.msra.mxu0 %v356
      %543 = vmatpush.msra.mxu0 %v355
      %544 = vmatpush.msra.mxu0 %v354
      %545 = vmatpush.msra.mxu0 %v353
      %546 = vmatpush.msra.mxu0 %v352
      %547 = vmatpush.msra.mxu0 %v351
      %548 = vmatmul.f32.gmra.mxu0 %v234
      %v549 = vpop.f32.mrf.mxu0
      %v550 = vadd.f32 %v527, %v549
      %551 = vmatmul.f32.gmra.mxu0 %v236
      %v552 = vpop.f32.mrf.mxu0
      %v553 = vadd.f32 %v530, %v552
      %554 = vdwg.mxu0
      %v555 = vadd.f32 %v550, %v553
      %v556 = vrot.slane %v555, 4
      %v557 = vadd.f32 %v555, %v556
      %v558 = vrot.slane %v557, 2
      %v559 = vadd.f32 %v557, %v558
      %v560 = vrot.slane %v559, 1
      %v561 = vadd.f32 %v559, %v560
      %v562 = vmul.f32 %v550, %v550
      %v563 = vmul.f32 %v553, %v553
      %v564 = vadd.f32 %v562, %v563
      %v565 = vrot.slane %v564, 4
      %v566 = vadd.f32 %v564, %v565
      %v567 = vrot.slane %v566, 2
      %v568 = vadd.f32 %v566, %v567
      %v569 = vrot.slane %v568, 1
      %v570 = vadd.f32 %v568, %v569
      %v571 = vsel %vm231, %v561, %v570
      %572 = vst [vmem:[%s168] sm:$0x3] %v571
      %p573 = scmp.lt.s32.totalorder %s14, 1
      %s574 = scalar_select %p573, %s14, 1
      %s575 = smul.addr %s574, 2
      %s576 = scalar_lea.vmem %s3, %s575
      // Predicated region
      $region33: #{residual_block_forward.6} parent=31 // pred_check
        %p577 = pneg %p100
      $region34: #{residual_block_forward.6} parent=31 // pred_check_branch
        %579 = sbr.rel (%p577) target = $region36
      $region35: #{residual_block_forward.6} parent=31 // pred_region
        _
      $region36: #{residual_block_forward.6} parent=31 // pred_fallthru
        _
    $region32: #{residual_block_forward.6} parent=5 // pred_fallthru
      _
    %p580 = scmp.le.s32.totalorder 2, %s9
    // Predicated region
    $region37: #{residual_block_forward.6} parent=5 // pred_check
      %p581 = pneg %p580
    $region38: #{residual_block_forward.6} parent=5 // pred_check_branch
      %583 = sbr.rel (%p581) target = $region40
    $region39: #{residual_block_forward.6} parent=5 // pred_region
      %s584 = ssub.s32 %s9, 2
      // Predicated region
      $region41: #{residual_block_forward.6} parent=39 // pred_check
        %p585 = pneg %p106
      $region42: #{residual_block_forward.6} parent=39 // pred_check_branch
        %587 = sbr.rel (%p585) target = $region44
      $region43: #{residual_block_forward.6} parent=39 // pred_region
        %p588 = scmp.lt.s32.totalorder %s15, 1
        %s589 = scalar_select %p588, %s15, 1
        %s590 = smul.addr %s589, 2
        %s591 = scalar_lea.vmem %s3, %s590
      $region44: #{residual_block_forward.6} parent=39 // pred_fallthru
        _
    $region40: #{residual_block_forward.6} parent=5 // pred_fallthru
      _
  $region6: #{residual_block_forward.6} parent=0 // loop_footer
    %s13 = sadd.s32 1, %s9
  $region7: #{residual_block_forward.6} parent=0 // loop_footer_branch
    %8 = sbr.rel target = $region3
  $region8: #{residual_block_forward.6} parent=0 // loop_exit
    _

// kernel: residual_block_forward.9
$region0: #{residual_block_forward.9}
  #allocation0 [shape = 'u32[]', space=smem, size = 0x4, offset = 0x4, fixed_abs, tag = 'smem constant byte address 0x4 - core index']
  #allocation1 [shape = 'u32[72,128]{1,0:T(1,128)}', space=vmem, size = 0x9000, scoped, tag = 'internal scratch']
  %s0 = inlined_call_operand.vmem [shape: f32[2,16,128], index: 0, kind: input, shape index: {}]
  %s1 = inlined_call_operand.vmem [shape: f32[640,128], index: 1, kind: input, shape index: {}]
  %s2 = inlined_call_operand.vmem [shape: f32[1,128], index: 2, kind: input, shape index: {}]
  %s3 = inlined_call_operand.vmem [shape: f32[2,2,128], index: 3, kind: input, shape index: {}]
  %s4 = inlined_call_operand.vmem [shape: f32[1,128], index: 4, kind: input, shape index: {}]
  %s5 = inlined_call_operand.vmem [shape: f32[1,128], index: 5, kind: input, shape index: {}]
  %s6 = inlined_call_operand.vmem [shape: f32[2,16,128], index: 6, kind: output, shape index: {}]
  %s7 = sld [smem:[#allocation0]]
  $region57: #{residual_block_forward.9} parent=0
    _
  %s9 = ssub.s32 1, %s7
  %s10 = scalar_select 0, %s9, %s7
  loop: start=0, step=1, limit=4
  $region2: #{residual_block_forward.9} parent=0 // loop_pre_header
    _
  $region3: #{residual_block_forward.9} parent=0 // loop_header
    %s12 = sphi 0, %s16
    %p13 = scmp.ge.s32.totalorder %s12, 4
    %s22 = sphi 0, %s24
    %s25 = sphi 0, %s22
    %s26 = sphi 0, %s25
    %s42 = sphi 0, %s26
    %s46 = sphi 0, %s46
    %s48 = sphi 0, %s46
    %s49 = sphi 0, %s48
    %s63 = sphi 0, %s49
    %s67 = sphi 0, %s67
    %s69 = sphi 0, %s67
    %s70 = sphi 0, %s69
    %s84 = sphi 0, %s70
    %s88 = sphi 0, %s88
    %s90 = sphi 0, %s88
    %s91 = sphi 0, %s90
    %s105 = sphi 0, %s91
    %s109 = sphi 0, %s109
    %s111 = sphi 0, %s109
    %s112 = sphi 0, %s111
    %s126 = sphi 0, %s112
    %s130 = sphi 0, %s130
    %s132 = sphi 0, %s130
    %s133 = sphi 0, %s132
    %s147 = sphi 0, %s133
    %s153 = sphi 0, %s155
    %s156 = sphi 0, %s153
    %s157 = sphi 0, %s156
    %s173 = sphi 0, %s157
  $region4: #{residual_block_forward.9} parent=0 // loop_header_branch
    %15 = sbr.rel (%p13) target = $region8
  $region5: #{residual_block_forward.9} parent=0 // loop_body
    %s17 = ssub.s32 %s12, 1
    %s18 = ssub.s32 %s12, 2
    %s19 = sadd.s32 %s12, 1
    %s20 = ssub.s32 %s12, %s19
    %p21 = scmp.eq.s32.totalorder %s20, 0
    %s23 = sadd.s32 %s22, 1
    %s24 = scalar_select %p21, %s22, %s23
    %p27 = pneg %p21
    %p28 = scmp.eq.s32.totalorder %s12, 1
    %p29 = por %p27, %p28
    %p30 = scmp.ne.s32.totalorder %s22, %s25
    %p31 = scmp.eq.s32.totalorder %s12, 0
    %p32 = por %p30, %p31
    %p33 = scmp.ne.s32.totalorder %s22, %s25
    %p34 = scmp.eq.s32.totalorder %s17, 1
    %p35 = por %p33, %p34
    %p36 = scmp.ne.s32.totalorder %s25, %s26
    %p37 = scmp.eq.s32.totalorder %s17, 0
    %p38 = por %p36, %p37
    %p39 = scmp.ne.s32.totalorder %s25, %s26
    %p40 = scmp.eq.s32.totalorder %s18, 1
    %p41 = por %p39, %p40
    %p43 = scmp.ne.s32.totalorder %s26, %s42
    %p44 = scmp.eq.s32.totalorder %s18, 0
    %p45 = por %p43, %p44
    %s47 = sadd.s32 %s46, 1
    %p50 = scmp.eq.s32.totalorder %s12, 1
    %p51 = scmp.ne.s32.totalorder %s46, %s48
    %p52 = scmp.eq.s32.totalorder %s12, 0
    %p53 = por %p51, %p52
    %p54 = scmp.ne.s32.totalorder %s46, %s48
    %p55 = scmp.eq.s32.totalorder %s17, 1
    %p56 = por %p54, %p55
    %p57 = scmp.ne.s32.totalorder %s48, %s49
    %p58 = scmp.eq.s32.totalorder %s17, 0
    %p59 = por %p57, %p58
    %p60 = scmp.ne.s32.totalorder %s48, %s49
    %p61 = scmp.eq.s32.totalorder %s18, 1
    %p62 = por %p60, %p61
    %p64 = scmp.ne.s32.totalorder %s49, %s63
    %p65 = scmp.eq.s32.totalorder %s18, 0
    %p66 = por %p64, %p65
    %s68 = sadd.s32 %s67, 1
    %p71 = scmp.eq.s32.totalorder %s12, 1
    %p72 = scmp.ne.s32.totalorder %s67, %s69
    %p73 = scmp.eq.s32.totalorder %s12, 0
    %p74 = por %p72, %p73
    %p75 = scmp.ne.s32.totalorder %s67, %s69
    %p76 = scmp.eq.s32.totalorder %s17, 1
    %p77 = por %p75, %p76
    %p78 = scmp.ne.s32.totalorder %s69, %s70
    %p79 = scmp.eq.s32.totalorder %s17, 0
    %p80 = por %p78, %p79
    %p81 = scmp.ne.s32.totalorder %s69, %s70
    %p82 = scmp.eq.s32.totalorder %s18, 1
    %p83 = por %p81, %p82
    %p85 = scmp.ne.s32.totalorder %s70, %s84
    %p86 = scmp.eq.s32.totalorder %s18, 0
    %p87 = por %p85, %p86
    %s89 = sadd.s32 %s88, 1
    %p92 = scmp.eq.s32.totalorder %s12, 1
    %p93 = scmp.ne.s32.totalorder %s88, %s90
    %p94 = scmp.eq.s32.totalorder %s12, 0
    %p95 = por %p93, %p94
    %p96 = scmp.ne.s32.totalorder %s88, %s90
    %p97 = scmp.eq.s32.totalorder %s17, 1
    %p98 = por %p96, %p97
    %p99 = scmp.ne.s32.totalorder %s90, %s91
    %p100 = scmp.eq.s32.totalorder %s17, 0
    %p101 = por %p99, %p100
    %p102 = scmp.ne.s32.totalorder %s90, %s91
    %p103 = scmp.eq.s32.totalorder %s18, 1
    %p104 = por %p102, %p103
    %p106 = scmp.ne.s32.totalorder %s91, %s105
    %p107 = scmp.eq.s32.totalorder %s18, 0
    %p108 = por %p106, %p107
    %s110 = sadd.s32 %s109, 1
    %p113 = scmp.eq.s32.totalorder %s12, 1
    %p114 = scmp.ne.s32.totalorder %s109, %s111
    %p115 = scmp.eq.s32.totalorder %s12, 0
    %p116 = por %p114, %p115
    %p117 = scmp.ne.s32.totalorder %s109, %s111
    %p118 = scmp.eq.s32.totalorder %s17, 1
    %p119 = por %p117, %p118
    %p120 = scmp.ne.s32.totalorder %s111, %s112
    %p121 = scmp.eq.s32.totalorder %s17, 0
    %p122 = por %p120, %p121
    %p123 = scmp.ne.s32.totalorder %s111, %s112
    %p124 = scmp.eq.s32.totalorder %s18, 1
    %p125 = por %p123, %p124
    %p127 = scmp.ne.s32.totalorder %s112, %s126
    %p128 = scmp.eq.s32.totalorder %s18, 0
    %p129 = por %p127, %p128
    %s131 = sadd.s32 %s130, 1
    %p134 = scmp.eq.s32.totalorder %s12, 1
    %p135 = scmp.ne.s32.totalorder %s130, %s132
    %p136 = scmp.eq.s32.totalorder %s12, 0
    %p137 = por %p135, %p136
    %p138 = scmp.ne.s32.totalorder %s130, %s132
    %p139 = scmp.eq.s32.totalorder %s17, 1
    %p140 = por %p138, %p139
    %p141 = scmp.ne.s32.totalorder %s132, %s133
    %p142 = scmp.eq.s32.totalorder %s17, 0
    %p143 = por %p141, %p142
    %p144 = scmp.ne.s32.totalorder %s132, %s133
    %p145 = scmp.eq.s32.totalorder %s18, 1
    %p146 = por %p144, %p145
    %p148 = scmp.ne.s32.totalorder %s133, %s147
    %p149 = scmp.eq.s32.totalorder %s18, 0
    %p150 = por %p148, %p149
    %s151 = ssub.s32 %s12, %s19
    %p152 = scmp.eq.s32.totalorder %s151, 0
    %s154 = sadd.s32 %s153, 1
    %s155 = scalar_select %p152, %s153, %s154
    %p158 = pneg %p152
    %p159 = scmp.eq.s32.totalorder %s12, 1
    %p160 = por %p158, %p159
    %p161 = scmp.ne.s32.totalorder %s153, %s156
    %p162 = scmp.eq.s32.totalorder %s12, 0
    %p163 = por %p161, %p162
    %p164 = scmp.ne.s32.totalorder %s153, %s156
    %p165 = scmp.eq.s32.totalorder %s17, 1
    %p166 = por %p164, %p165
    %p167 = scmp.ne.s32.totalorder %s156, %s157
    %p168 = scmp.eq.s32.totalorder %s17, 0
    %p169 = por %p167, %p168
    %p170 = scmp.ne.s32.totalorder %s156, %s157
    %p171 = scmp.eq.s32.totalorder %s18, 1
    %p172 = por %p170, %p171
    %p174 = scmp.ne.s32.totalorder %s157, %s173
    %p175 = scmp.eq.s32.totalorder %s18, 0
    %p176 = por %p174, %p175
    %p177 = scmp.le.s32.totalorder 1, %s12
    %p178 = scmp.lt.s32.totalorder %s12, 3
    %p179 = pnand %p177, %p178
    %p180 = pneg %p179
    // Predicated region
    $region9: #{residual_block_forward.9} parent=5 // pred_check
      _
    $region10: #{residual_block_forward.9} parent=5 // pred_check_branch
      %182 = sbr.rel (%p179) target = $region12
    $region11: #{residual_block_forward.9} parent=5 // pred_region
      %s183 = ssub.s32 %s12, 1
      // Predicated region
      $region13: #{residual_block_forward.9} parent=11 // pred_check
        %p184 = pneg %p59
      $region14: #{residual_block_forward.9} parent=11 // pred_check_branch
        %186 = sbr.rel (%p184) target = $region16
      $region15: #{residual_block_forward.9} parent=11 // pred_region
        _
      $region16: #{residual_block_forward.9} parent=11 // pred_fallthru
        _
      // Predicated region
      $region17: #{residual_block_forward.9} parent=11 // pred_check
        %p187 = pneg %p80
      $region18: #{residual_block_forward.9} parent=11 // pred_check_branch
        %189 = sbr.rel (%p187) target = $region20
      $region19: #{residual_block_forward.9} parent=11 // pred_region
        _
      $region20: #{residual_block_forward.9} parent=11 // pred_fallthru
        _
      // Predicated region
      $region21: #{residual_block_forward.9} parent=11 // pred_check
        %p190 = pneg %p101
      $region22: #{residual_block_forward.9} parent=11 // pred_check_branch
        %192 = sbr.rel (%p190) target = $region24
      $region23: #{residual_block_forward.9} parent=11 // pred_region
        _
      $region24: #{residual_block_forward.9} parent=11 // pred_fallthru
        _
      // Predicated region
      $region25: #{residual_block_forward.9} parent=11 // pred_check
        %p193 = pneg %p122
      $region26: #{residual_block_forward.9} parent=11 // pred_check_branch
        %195 = sbr.rel (%p193) target = $region28
      $region27: #{residual_block_forward.9} parent=11 // pred_region
        _
      $region28: #{residual_block_forward.9} parent=11 // pred_fallthru
        _
      // Predicated region
      $region29: #{residual_block_forward.9} parent=11 // pred_check
        %p196 = pneg %p143
      $region30: #{residual_block_forward.9} parent=11 // pred_check_branch
        %198 = sbr.rel (%p196) target = $region32
      $region31: #{residual_block_forward.9} parent=11 // pred_region
        _
      $region32: #{residual_block_forward.9} parent=11 // pred_fallthru
        _
    $region12: #{residual_block_forward.9} parent=5 // pred_fallthru
      _
    %p199 = scmp.lt.s32.totalorder %s12, 2
    // Predicated region
    $region33: #{residual_block_forward.9} parent=5 // pred_check
      %p200 = pneg %p199
    $region34: #{residual_block_forward.9} parent=5 // pred_check_branch
      %202 = sbr.rel (%p200) target = $region36
    $region35: #{residual_block_forward.9} parent=5 // pred_region
      // Predicated region
      $region37: #{residual_block_forward.9} parent=35 // pred_check
        %p203 = pneg %p32
      $region38: #{residual_block_forward.9} parent=35 // pred_check_branch
        %205 = sbr.rel (%p203) target = $region40
      $region39: #{residual_block_forward.9} parent=35 // pred_region
        %p206 = scmp.lt.s32.totalorder %s12, 1
        %s207 = scalar_select %p206, %s12, 1
        %s208 = smul.addr %s207, 2
        %s209 = smul.addr %s208, 8
        %s210 = scalar_lea.vmem %s0, %s209
      $region40: #{residual_block_forward.9} parent=35 // pred_fallthru
        _
    $region36: #{residual_block_forward.9} parent=5 // pred_fallthru
      _
    %p211 = scmp.le.s32.totalorder 1, %s12
    %p212 = scmp.lt.s32.totalorder %s12, 3
    %p213 = pnand %p211, %p212
    %p214 = pneg %p213
    // Predicated region
    $region41: #{residual_block_forward.9} parent=5 // pred_check
      _
    $region42: #{residual_block_forward.9} parent=5 // pred_check_branch
      %216 = sbr.rel (%p213) target = $region44
    $region43: #{residual_block_forward.9} parent=5 // pred_region
      %s217 = ssub.s32 %s12, 1
      %p218 = scmp.lt.s32.totalorder %s17, 1
      %s219 = scalar_select %p218, %s17, 1
      %s220 = smul.addr %s219, 2
      %s221 = smul.addr %s220, 8
      %s222 = scalar_lea.vmem %s0, %s221
      %p223 = pneg %p38
      %p224 = pneg %p35
      %p225 = pneg %p59
      %p226 = pneg %p56
      %p227 = pneg %p80
      %p228 = pneg %p77
      %p229 = pneg %p101
      %p230 = pneg %p98
      %p231 = pneg %p122
      %p232 = pneg %p119
      %p233 = pneg %p143
      %p234 = pneg %p140
      %p235 = pneg %p169
      %p236 = pneg %p166
      %p237 = scmp.lt.s32.totalorder %s17, 1
      %s238 = scalar_select %p237, %s17, 1
      %s239 = smul.addr %s238, 2
      %s240 = smul.addr %s239, 8
      %s241 = scalar_lea.vmem %s6, %s240
      %p242 = scmp.lt.s32.totalorder %s17, 1
      %s243 = scalar_select %p242, %s17, 1
      %s244 = smul.addr %s243, 2
      %s245 = smul.addr %s244, 8
      %s246 = scalar_lea.vmem %s0, %s245
      %p247 = scmp.lt.s32.totalorder %s17, 1
      %s248 = scalar_select %p247, %s17, 1
      %s249 = smul.addr %s248, 2
      %s250 = smul.addr %s249, 8
      %s251 = scalar_lea.vmem %s6, %s250
      %v252 = vld [vmem:[%s246] sm:$0xff]
      %v253 = vld [vmem:[%s246 + $0x8] sm:$0xff]
      %vm256 = vcmask 1041408
      %v257 = vrot.slane %v252, 6
      %v258 = vrot.slane %v253, 6
      %v259 = vsel %vm256, %v257, %v258
      %v263 = vsel %vm256, 0.0, %v257
      %v264 = vsel %vm256, %v258, 0.0
      %vm267 = vcmask 1046528
      %v268 = vrot.slane %v263, 1
      %v269 = vrot.slane %v259, 1
      %v270 = vsel %vm267, %v268, %v269
      %v271 = vrot.slane %v264, 1
      %v272 = vsel %vm267, %v269, %v271
      %vm275 = vcmask 1045504
      %v276 = vrot.slane %v263, 2
      %v277 = vrot.slane %v259, 2
      %v278 = vsel %vm275, %v276, %v277
      %v279 = vrot.slane %v264, 2
      %v280 = vsel %vm275, %v277, %v279
      %vm283 = vcmask 1044480
      %v284 = vrot.slane %v263, 3
      %v285 = vrot.slane %v259, 3
      %v286 = vsel %vm283, %v284, %v285
      %v287 = vrot.slane %v264, 3
      %v288 = vsel %vm283, %v285, %v287
      %vm291 = vcmask 1043456
      %v292 = vrot.slane %v263, 4
      %v293 = vrot.slane %v259, 4
      %v294 = vsel %vm291, %v292, %v293
      %v295 = vrot.slane %v264, 4
      %v296 = vsel %vm291, %v293, %v295
      %v299 = vld [vmem:[%s1] sm:$0xff]
      %v300 = vld [vmem:[%s1 + $0x8] sm:$0xff]
      %v301 = vld [vmem:[%s1 + $0x10] sm:$0xff]
      %v302 = vld [vmem:[%s1 + $0x18] sm:$0xff]
      %v303 = vld [vmem:[%s1 + $0x20] sm:$0xff]
      %v304 = vld [vmem:[%s1 + $0x28] sm:$0xff]
      %v305 = vld [vmem:[%s1 + $0x30] sm:$0xff]
      %v306 = vld [vmem:[%s1 + $0x38] sm:$0xff]
      %v307 = vld [vmem:[%s1 + $0x40] sm:$0xff]
      %v308 = vld [vmem:[%s1 + $0x48] sm:$0xff]
      %v309 = vld [vmem:[%s1 + $0x50] sm:$0xff]
      %v310 = vld [vmem:[%s1 + $0x58] sm:$0xff]
      %v311 = vld [vmem:[%s1 + $0x60] sm:$0xff]
      %v312 = vld [vmem:[%s1 + $0x68] sm:$0xff]
      %v313 = vld [vmem:[%s1 + $0x70] sm:$0xff]
      %v314 = vld [vmem:[%s1 + $0x78] sm:$0xff]
      %v315 = vld [vmem:[%s1 + $0x80] sm:$0xff]
      %v316 = vld [vmem:[%s1 + $0x88] sm:$0xff]
      %v317 = vld [vmem:[%s1 + $0x90] sm:$0xff]
      %v318 = vld [vmem:[%s1 + $0x98] sm:$0xff]
      %v319 = vld [vmem:[%s1 + $0xa0] sm:$0xff]
      %v320 = vld [vmem:[%s1 + $0xa8] sm:$0xff]
      %v321 = vld [vmem:[%s1 + $0xb0] sm:$0xff]
      %v322 = vld [vmem:[%s1 + $0xb8] sm:$0xff]
      %v323 = vld [vmem:[%s1 + $0xc0] sm:$0xff]
      %v324 = vld [vmem:[%s1 + $0xc8] sm:$0xff]
      %v325 = vld [vmem:[%s1 + $0xd0] sm:$0xff]
      %v326 = vld [vmem:[%s1 + $0xd8] sm:$0xff]
      %v327 = vld [vmem:[%s1 + $0xe0] sm:$0xff]
      %v328 = vld [vmem:[%s1 + $0xe8] sm:$0xff]
      %v329 = vld [vmem:[%s1 + $0xf0] sm:$0xff]
      %v330 = vld [vmem:[%s1 + $0xf8] sm:$0xff]
      %v331 = vld [vmem:[%s1 + $0x100] sm:$0xff]
      %v332 = vld [vmem:[%s1 + $0x108] sm:$0xff]
      %v333 = vld [vmem:[%s1 + $0x110] sm:$0xff]
      %v334 = vld [vmem:[%s1 + $0x118] sm:$0xff]
      %v335 = vld [vmem:[%s1 + $0x120] sm:$0xff]
      %v336 = vld [vmem:[%s1 + $0x128] sm:$0xff]
      %v337 = vld [vmem:[%s1 + $0x130] sm:$0xff]
      %v338 = vld [vmem:[%s1 + $0x138] sm:$0xff]
      %v339 = vld [vmem:[%s1 + $0x140] sm:$0xff]
      %v340 = vld [vmem:[%s1 + $0x148] sm:$0xff]
      %v341 = vld [vmem:[%s1 + $0x150] sm:$0xff]
      %v342 = vld [vmem:[%s1 + $0x158] sm:$0xff]
      %v343 = vld [vmem:[%s1 + $0x160] sm:$0xff]
      %v344 = vld [vmem:[%s1 + $0x168] sm:$0xff]
      %v345 = vld [vmem:[%s1 + $0x170] sm:$0xff]
      %v346 = vld [vmem:[%s1 + $0x178] sm:$0xff]
      %v347 = vld [vmem:[%s1 + $0x180] sm:$0xff]
      %v348 = vld [vmem:[%s1 + $0x188] sm:$0xff]
      %v349 = vld [vmem:[%s1 + $0x190] sm:$0xff]
      %v350 = vld [vmem:[%s1 + $0x198] sm:$0xff]
      %v351 = vld [vmem:[%s1 + $0x1a0] sm:$0xff]
      %v352 = vld [vmem:[%s1 + $0x1a8] sm:$0xff]
      %v353 = vld [vmem:[%s1 + $0x1b0] sm:$0xff]
      %v354 = vld [vmem:[%s1 + $0x1b8] sm:$0xff]
      %v355 = vld [vmem:[%s1 + $0x1c0] sm:$0xff]
      %v356 = vld [vmem:[%s1 + $0x1c8] sm:$0xff]
      %v357 = vld [vmem:[%s1 + $0x1d0] sm:$0xff]
      %v358 = vld [vmem:[%s1 + $0x1d8] sm:$0xff]
      %v359 = vld [vmem:[%s1 + $0x1e0] sm:$0xff]
      %v360 = vld [vmem:[%s1 + $0x1e8] sm:$0xff]
      %v361 = vld [vmem:[%s1 + $0x1f0] sm:$0xff]
      %v362 = vld [vmem:[%s1 + $0x1f8] sm:$0xff]
      %v363 = vld [vmem:[%s1 + $0x200] sm:$0xff]
      %v364 = vld [vmem:[%s1 + $0x208] sm:$0xff]
      %v365 = vld [vmem:[%s1 + $0x210] sm:$0xff]
      %v366 = vld [vmem:[%s1 + $0x218] sm:$0xff]
      %v367 = vld [vmem:[%s1 + $0x220] sm:$0xff]
      %v368 = vld [vmem:[%s1 + $0x228] sm:$0xff]
      %v369 = vld [vmem:[%s1 + $0x230] sm:$0xff]
      %v370 = vld [vmem:[%s1 + $0x238] sm:$0xff]
      %v371 = vld [vmem:[%s1 + $0x240] sm:$0xff]
      %v372 = vld [vmem:[%s1 + $0x248] sm:$0xff]
      %v373 = vld [vmem:[%s1 + $0x250] sm:$0xff]
      %v374 = vld [vmem:[%s1 + $0x258] sm:$0xff]
      %v375 = vld [vmem:[%s1 + $0x260] sm:$0xff]
      %v376 = vld [vmem:[%s1 + $0x268] sm:$0xff]
      %v377 = vld [vmem:[%s1 + $0x270] sm:$0xff]
      %v378 = vld [vmem:[%s1 + $0x278] sm:$0xff]
      %v379 = vld [vmem:[%s2] sm:$0x1]
      %v381 = vperm.slane %v379, 0
      %383 = vmatpush.msra.mxu0 %v314
      %384 = vmatpush.msra.mxu0 %v313
      %385 = vmatpush.msra.mxu0 %v312
      %386 = vmatpush.msra.mxu0 %v311
      %387 = vmatpush.msra.mxu0 %v310
      %388 = vmatpush.msra.mxu0 %v309
      %389 = vmatpush.msra.mxu0 %v308
      %390 = vmatpush.msra.mxu0 %v307
      %391 = vmatpush.msra.mxu0 %v306
      %392 = vmatpush.msra.mxu0 %v305
      %393 = vmatpush.msra.mxu0 %v304
      %394 = vmatpush.msra.mxu0 %v303
      %395 = vmatpush.msra.mxu0 %v302
      %396 = vmatpush.msra.mxu0 %v301
      %397 = vmatpush.msra.mxu0 %v300
      %398 = vmatpush.msra.mxu0 %v299
      %399 = vmatmul.f32.gmra.mxu0 %v263
      %v400 = vpop.f32.mrf.mxu0
      %v401 = vadd.f32 %v381, %v400
      %402 = vmatmul.f32.gmra.mxu0 %v259
      %v403 = vpop.f32.mrf.mxu0
      %v404 = vadd.f32 %v381, %v403
      %405 = vdwg.mxu0
      %406 = vmatpush.msra.mxu0 %v330
      %407 = vmatpush.msra.mxu0 %v329
      %408 = vmatpush.msra.mxu0 %v328
      %409 = vmatpush.msra.mxu0 %v327
      %410 = vmatpush.msra.mxu0 %v326
      %411 = vmatpush.msra.mxu0 %v325
      %412 = vmatpush.msra.mxu0 %v324
      %413 = vmatpush.msra.mxu0 %v323
      %414 = vmatpush.msra.mxu0 %v322
      %415 = vmatpush.msra.mxu0 %v321
      %416 = vmatpush.msra.mxu0 %v320
      %417 = vmatpush.msra.mxu0 %v319
      %418 = vmatpush.msra.mxu0 %v318
      %419 = vmatpush.msra.mxu0 %v317
      %420 = vmatpush.msra.mxu0 %v316
      %421 = vmatpush.msra.mxu0 %v315
      %422 = vmatmul.f32.gmra.mxu0 %v270
      %v423 = vpop.f32.mrf.mxu0
      %v424 = vadd.f32 %v401, %v423
      %425 = vmatmul.f32.gmra.mxu0 %v272
      %v426 = vpop.f32.mrf.mxu0
      %v427 = vadd.f32 %v404, %v426
      %428 = vdwg.mxu0
      %429 = vmatpush.msra.mxu0 %v346
      %430 = vmatpush.msra.mxu0 %v345
      %431 = vmatpush.msra.mxu0 %v344
      %432 = vmatpush.msra.mxu0 %v343
      %433 = vmatpush.msra.mxu0 %v342
      %434 = vmatpush.msra.mxu0 %v341
      %435 = vmatpush.msra.mxu0 %v340
      %436 = vmatpush.msra.mxu0 %v339
      %437 = vmatpush.msra.mxu0 %v338
      %438 = vmatpush.msra.mxu0 %v337
      %439 = vmatpush.msra.mxu0 %v336
      %440 = vmatpush.msra.mxu0 %v335
      %441 = vmatpush.msra.mxu0 %v334
      %442 = vmatpush.msra.mxu0 %v333
      %443 = vmatpush.msra.mxu0 %v332
      %444 = vmatpush.msra.mxu0 %v331
      %445 = vmatmul.f32.gmra.mxu0 %v278
      %v446 = vpop.f32.mrf.mxu0
      %v447 = vadd.f32 %v424, %v446
      %448 = vmatmul.f32.gmra.mxu0 %v280
      %v449 = vpop.f32.mrf.mxu0
      %v450 = vadd.f32 %v427, %v449
      %451 = vdwg.mxu0
      %452 = vmatpush.msra.mxu0 %v362
      %453 = vmatpush.msra.mxu0 %v361
      %454 = vmatpush.msra.mxu0 %v360
      %455 = vmatpush.msra.mxu0 %v359
      %456 = vmatpush.msra.mxu0 %v358
      %457 = vmatpush.msra.mxu0 %v357
      %458 = vmatpush.msra.mxu0 %v356
      %459 = vmatpush.msra.mxu0 %v355
      %460 = vmatpush.msra.mxu0 %v354
      %461 = vmatpush.msra.mxu0 %v353
      %462 = vmatpush.msra.mxu0 %v352
      %463 = vmatpush.msra.mxu0 %v351
      %464 = vmatpush.msra.mxu0 %v350
      %465 = vmatpush.msra.mxu0 %v349
      %466 = vmatpush.msra.mxu0 %v348
      %467 = vmatpush.msra.mxu0 %v347
      %468 = vmatmul.f32.gmra.mxu0 %v286
      %v469 = vpop.f32.mrf.mxu0
      %v470 = vadd.f32 %v447, %v469
      %471 = vmatmul.f32.gmra.mxu0 %v288
      %v472 = vpop.f32.mrf.mxu0
      %v473 = vadd.f32 %v450, %v472
      %474 = vdwg.mxu0
      %475 = vmatpush.msra.mxu0 %v378
      %476 = vmatpush.msra.mxu0 %v377
      %477 = vmatpush.msra.mxu0 %v376
      %478 = vmatpush.msra.mxu0 %v375
      %479 = vmatpush.msra.mxu0 %v374
      %480 = vmatpush.msra.mxu0 %v373
      %481 = vmatpush.msra.mxu0 %v372
      %482 = vmatpush.msra.mxu0 %v371
      %483 = vmatpush.msra.mxu0 %v370
      %484 = vmatpush.msra.mxu0 %v369
      %485 = vmatpush.msra.mxu0 %v368
      %486 = vmatpush.msra.mxu0 %v367
      %487 = vmatpush.msra.mxu0 %v366
      %488 = vmatpush.msra.mxu0 %v365
      %489 = vmatpush.msra.mxu0 %v364
      %490 = vmatpush.msra.mxu0 %v363
      %491 = vmatmul.f32.gmra.mxu0 %v294
      %v492 = vpop.f32.mrf.mxu0
      %v493 = vadd.f32 %v470, %v492
      %494 = vmatmul.f32.gmra.mxu0 %v296
      %v495 = vpop.f32.mrf.mxu0
      %v496 = vadd.f32 %v473, %v495
      %497 = vdwg.mxu0
      %v498 = vld [vmem:[%s3] sm:$0x3]
      %v499 = vld [vmem:[%s3 + $0x2] sm:$0x3]
      %v500 = vsel %vm256, %v498, 0.0
      %v501 = vsel %vm256, %v499, 0.0
      %v502 = vadd.f32 %v500, %v501
      %v503 = vrcp.pop 32.0
      %v504 = vmul.f32 32.0, %v503
      %v505 = vsub.f32 1.0, %v504
      %v506 = vmul.f32 %v503, %v505
      %v507 = vadd.f32 %v503, %v506
      %vm508 = vweird.f32 %v503
      %v509 = vsel %vm508, %v503, %v507
      %v510 = vmul.f32 %v502, %v509
      %v511 = vmul.f32 %v510, %v510
      %v513 = vrot.slane %v511, 7
      %v515 = vsub.f32 %v510, %v513
      %v516 = vmax.f32 %v515, 0.0
      %v517 = vld [vmem:[%s4] sm:$0x1]
      %v518 = vadd.f32 %v516, 1e-05
      %v519 = vrsqrt.pop %v518
      %v520 = vmul.f32 %v519, %v518
      %v521 = vmul.f32 %v520, %v519
      %v522 = vmul.f32 0.5, %v521
      %v523 = vsub.f32 1.5, %v522
      %v524 = vmul.f32 %v519, %v523
      %vm525 = vweird.f32 %v518
      %vm526 = vweird.f32 %v519
      %vm527 = vmor %vm525, %vm526
      %v528 = vsel %vm527, %v519, %v524
      %530 = vst [vmem:[#allocation1] sm:$0xff] %v528
      %s531 = scalar_lea.vmem [#allocation1], 1
      %v532 = vld [vmem:[%s531] ss:$9 sm:$0xff]
      %v534 = vmul.f32 %v517, %v532
      %v535 = vld [vmem:[%s5] sm:$0x1]
      %v536 = vmul.f32 %v510, %v534
      %v537 = vsub.f32 %v535, %v536
      %v539 = vperm.slane %v534, 0
      %v541 = vmul.f32 %v493, %v539
      %v542 = vmul.f32 %v496, %v539
      %v544 = vperm.slane %v537, 0
      %v546 = vadd.f32 %v541, %v544
      %v547 = vadd.f32 %v542, %v544
      %v548 = vmax.f32 %v546, 0.0
      %v549 = vmax.f32 %v547, 0.0
      %550 = vst [vmem:[%s251] sm:$0xff] %v548
      %551 = vst [vmem:[%s251 + $0x8] sm:$0xff] %v549
      %p552 = scmp.lt.s32.totalorder %s17, 1
      %s553 = scalar_select %p552, %s17, 1
      %s554 = smul.addr %s553, 2
      %s555 = smul.addr %s554, 8
      %s556 = scalar_lea.vmem %s6, %s555
      // Predicated region
      $region45: #{residual_block_forward.9} parent=43 // pred_check
        %p557 = pneg %p166
      $region46: #{residual_block_forward.9} parent=43 // pred_check_branch
        %559 = sbr.rel (%p557) target = $region48
      $region47: #{residual_block_forward.9} parent=43 // pred_region
        _
      $region48: #{residual_block_forward.9} parent=43 // pred_fallthru
        _
    $region44: #{residual_block_forward.9} parent=5 // pred_fallthru
      _
    %p560 = scmp.le.s32.totalorder 2, %s12
    // Predicated region
    $region49: #{residual_block_forward.9} parent=5 // pred_check
      %p561 = pneg %p560
    $region50: #{residual_block_forward.9} parent=5 // pred_check_branch
      %563 = sbr.rel (%p561) target = $region52
    $region51: #{residual_block_forward.9} parent=5 // pred_region
      %s564 = ssub.s32 %s12, 2
      // Predicated region
      $region53: #{residual_block_forward.9} parent=51 // pred_check
        %p565 = pneg %p172
      $region54: #{residual_block_forward.9} parent=51 // pred_check_branch
        %567 = sbr.rel (%p565) target = $region56
      $region55: #{residual_block_forward.9} parent=51 // pred_region
        %p568 = scmp.lt.s32.totalorder %s18, 1
        %s569 = scalar_select %p568, %s18, 1
        %s570 = smul.addr %s569, 2
        %s571 = smul.addr %s570, 8
        %s572 = scalar_lea.vmem %s6, %s571
      $region56: #{residual_block_forward.9} parent=51 // pred_fallthru
        _
    $region52: #{residual_block_forward.9} parent=5 // pred_fallthru
      _
  $region6: #{residual_block_forward.9} parent=0 // loop_footer
    %s16 = sadd.s32 1, %s12
  $region7: #{residual_block_forward.9} parent=0 // loop_footer_branch
    %11 = sbr.rel target = $region3
  $region8: #{residual_block_forward.9} parent=0 // loop_exit
    _

// kernel: residual_block_forward.10
$region0: #{residual_block_forward.10}
  #allocation0 [shape = 'u32[]', space=smem, size = 0x4, offset = 0x4, fixed_abs, tag = 'smem constant byte address 0x4 - core index']
  #allocation1 [shape = 'u32[72,128]{1,0:T(1,128)}', space=vmem, size = 0x9000, scoped, tag = 'internal scratch']
  %s0 = inlined_call_operand.vmem [shape: f32[2,16,128], index: 0, kind: input, shape index: {}]
  %s1 = inlined_call_operand.vmem [shape: f32[384,128], index: 1, kind: input, shape index: {}]
  %s2 = inlined_call_operand.vmem [shape: f32[1,128], index: 2, kind: input, shape index: {}]
  %s3 = inlined_call_operand.vmem [shape: f32[2,2,128], index: 3, kind: output, shape index: {}]
  %s4 = sld [smem:[#allocation0]]
  $region45: #{residual_block_forward.10} parent=0
    _
  %s6 = ssub.s32 1, %s4
  %s7 = scalar_select 0, %s6, %s4
  loop: start=0, step=1, limit=4
  $region2: #{residual_block_forward.10} parent=0 // loop_pre_header
    _
  $region3: #{residual_block_forward.10} parent=0 // loop_header
    %s9 = sphi 0, %s13
    %p10 = scmp.ge.s32.totalorder %s9, 4
    %s19 = sphi 0, %s21
    %s22 = sphi 0, %s19
    %s23 = sphi 0, %s22
    %s39 = sphi 0, %s23
    %s43 = sphi 0, %s43
    %s45 = sphi 0, %s43
    %s46 = sphi 0, %s45
    %s60 = sphi 0, %s46
    %s64 = sphi 0, %s64
    %s66 = sphi 0, %s64
    %s67 = sphi 0, %s66
    %s81 = sphi 0, %s67
    %s87 = sphi 0, %s89
    %s90 = sphi 0, %s87
    %s91 = sphi 0, %s90
    %s107 = sphi 0, %s91
  $region4: #{residual_block_forward.10} parent=0 // loop_header_branch
    %12 = sbr.rel (%p10) target = $region8
  $region5: #{residual_block_forward.10} parent=0 // loop_body
    %s14 = ssub.s32 %s9, 1
    %s15 = ssub.s32 %s9, 2
    %s16 = sadd.s32 %s9, 1
    %s17 = ssub.s32 %s9, %s16
    %p18 = scmp.eq.s32.totalorder %s17, 0
    %s20 = sadd.s32 %s19, 1
    %s21 = scalar_select %p18, %s19, %s20
    %p24 = pneg %p18
    %p25 = scmp.eq.s32.totalorder %s9, 1
    %p26 = por %p24, %p25
    %p27 = scmp.ne.s32.totalorder %s19, %s22
    %p28 = scmp.eq.s32.totalorder %s9, 0
    %p29 = por %p27, %p28
    %p30 = scmp.ne.s32.totalorder %s19, %s22
    %p31 = scmp.eq.s32.totalorder %s14, 1
    %p32 = por %p30, %p31
    %p33 = scmp.ne.s32.totalorder %s22, %s23
    %p34 = scmp.eq.s32.totalorder %s14, 0
    %p35 = por %p33, %p34
    %p36 = scmp.ne.s32.totalorder %s22, %s23
    %p37 = scmp.eq.s32.totalorder %s15, 1
    %p38 = por %p36, %p37
    %p40 = scmp.ne.s32.totalorder %s23, %s39
    %p41 = scmp.eq.s32.totalorder %s15, 0
    %p42 = por %p40, %p41
    %s44 = sadd.s32 %s43, 1
    %p47 = scmp.eq.s32.totalorder %s9, 1
    %p48 = scmp.ne.s32.totalorder %s43, %s45
    %p49 = scmp.eq.s32.totalorder %s9, 0
    %p50 = por %p48, %p49
    %p51 = scmp.ne.s32.totalorder %s43, %s45
    %p52 = scmp.eq.s32.totalorder %s14, 1
    %p53 = por %p51, %p52
    %p54 = scmp.ne.s32.totalorder %s45, %s46
    %p55 = scmp.eq.s32.totalorder %s14, 0
    %p56 = por %p54, %p55
    %p57 = scmp.ne.s32.totalorder %s45, %s46
    %p58 = scmp.eq.s32.totalorder %s15, 1
    %p59 = por %p57, %p58
    %p61 = scmp.ne.s32.totalorder %s46, %s60
    %p62 = scmp.eq.s32.totalorder %s15, 0
    %p63 = por %p61, %p62
    %s65 = sadd.s32 %s64, 1
    %p68 = scmp.eq.s32.totalorder %s9, 1
    %p69 = scmp.ne.s32.totalorder %s64, %s66
    %p70 = scmp.eq.s32.totalorder %s9, 0
    %p71 = por %p69, %p70
    %p72 = scmp.ne.s32.totalorder %s64, %s66
    %p73 = scmp.eq.s32.totalorder %s14, 1
    %p74 = por %p72, %p73
    %p75 = scmp.ne.s32.totalorder %s66, %s67
    %p76 = scmp.eq.s32.totalorder %s14, 0
    %p77 = por %p75, %p76
    %p78 = scmp.ne.s32.totalorder %s66, %s67
    %p79 = scmp.eq.s32.totalorder %s15, 1
    %p80 = por %p78, %p79
    %p82 = scmp.ne.s32.totalorder %s67, %s81
    %p83 = scmp.eq.s32.totalorder %s15, 0
    %p84 = por %p82, %p83
    %s85 = ssub.s32 %s9, %s16
    %p86 = scmp.eq.s32.totalorder %s85, 0
    %s88 = sadd.s32 %s87, 1
    %s89 = scalar_select %p86, %s87, %s88
    %p92 = pneg %p86
    %p93 = scmp.eq.s32.totalorder %s9, 1
    %p94 = por %p92, %p93
    %p95 = scmp.ne.s32.totalorder %s87, %s90
    %p96 = scmp.eq.s32.totalorder %s9, 0
    %p97 = por %p95, %p96
    %p98 = scmp.ne.s32.totalorder %s87, %s90
    %p99 = scmp.eq.s32.totalorder %s14, 1
    %p100 = por %p98, %p99
    %p101 = scmp.ne.s32.totalorder %s90, %s91
    %p102 = scmp.eq.s32.totalorder %s14, 0
    %p103 = por %p101, %p102
    %p104 = scmp.ne.s32.totalorder %s90, %s91
    %p105 = scmp.eq.s32.totalorder %s15, 1
    %p106 = por %p104, %p105
    %p108 = scmp.ne.s32.totalorder %s91, %s107
    %p109 = scmp.eq.s32.totalorder %s15, 0
    %p110 = por %p108, %p109
    %p111 = scmp.le.s32.totalorder 1, %s9
    %p112 = scmp.lt.s32.totalorder %s9, 3
    %p113 = pnand %p111, %p112
    %p114 = pneg %p113
    // Predicated region
    $region9: #{residual_block_forward.10} parent=5 // pred_check
      _
    $region10: #{residual_block_forward.10} parent=5 // pred_check_branch
      %116 = sbr.rel (%p113) target = $region12
    $region11: #{residual_block_forward.10} parent=5 // pred_region
      %s117 = ssub.s32 %s9, 1
      // Predicated region
      $region13: #{residual_block_forward.10} parent=11 // pred_check
        %p118 = pneg %p56
      $region14: #{residual_block_forward.10} parent=11 // pred_check_branch
        %120 = sbr.rel (%p118) target = $region16
      $region15: #{residual_block_forward.10} parent=11 // pred_region
        _
      $region16: #{residual_block_forward.10} parent=11 // pred_fallthru
        _
      // Predicated region
      $region17: #{residual_block_forward.10} parent=11 // pred_check
        %p121 = pneg %p77
      $region18: #{residual_block_forward.10} parent=11 // pred_check_branch
        %123 = sbr.rel (%p121) target = $region20
      $region19: #{residual_block_forward.10} parent=11 // pred_region
        _
      $region20: #{residual_block_forward.10} parent=11 // pred_fallthru
        _
    $region12: #{residual_block_forward.10} parent=5 // pred_fallthru
      _
    %p124 = scmp.lt.s32.totalorder %s9, 2
    // Predicated region
    $region21: #{residual_block_forward.10} parent=5 // pred_check
      %p125 = pneg %p124
    $region22: #{residual_block_forward.10} parent=5 // pred_check_branch
      %127 = sbr.rel (%p125) target = $region24
    $region23: #{residual_block_forward.10} parent=5 // pred_region
      // Predicated region
      $region25: #{residual_block_forward.10} parent=23 // pred_check
        %p128 = pneg %p29
      $region26: #{residual_block_forward.10} parent=23 // pred_check_branch
        %130 = sbr.rel (%p128) target = $region28
      $region27: #{residual_block_forward.10} parent=23 // pred_region
        %p131 = scmp.lt.s32.totalorder %s9, 1
        %s132 = scalar_select %p131, %s9, 1
        %s133 = smul.addr %s132, 2
        %s134 = smul.addr %s133, 8
        %s135 = scalar_lea.vmem %s0, %s134
      $region28: #{residual_block_forward.10} parent=23 // pred_fallthru
        _
    $region24: #{residual_block_forward.10} parent=5 // pred_fallthru
      _
    %p136 = scmp.le.s32.totalorder 1, %s9
    %p137 = scmp.lt.s32.totalorder %s9, 3
    %p138 = pnand %p136, %p137
    %p139 = pneg %p138
    // Predicated region
    $region29: #{residual_block_forward.10} parent=5 // pred_check
      _
    $region30: #{residual_block_forward.10} parent=5 // pred_check_branch
      %141 = sbr.rel (%p138) target = $region32
    $region31: #{residual_block_forward.10} parent=5 // pred_region
      %s142 = ssub.s32 %s9, 1
      %p143 = scmp.lt.s32.totalorder %s14, 1
      %s144 = scalar_select %p143, %s14, 1
      %s145 = smul.addr %s144, 2
      %s146 = smul.addr %s145, 8
      %s147 = scalar_lea.vmem %s0, %s146
      %p148 = pneg %p35
      %p149 = pneg %p32
      %p150 = pneg %p56
      %p151 = pneg %p53
      %p152 = pneg %p77
      %p153 = pneg %p74
      %p154 = pneg %p103
      %p155 = pneg %p100
      %p156 = scmp.lt.s32.totalorder %s14, 1
      %s157 = scalar_select %p156, %s14, 1
      %s158 = smul.addr %s157, 2
      %s159 = scalar_lea.vmem %s3, %s158
      %p160 = scmp.lt.s32.totalorder %s14, 1
      %s161 = scalar_select %p160, %s14, 1
      %s162 = smul.addr %s161, 2
      %s163 = smul.addr %s162, 8
      %s164 = scalar_lea.vmem %s0, %s163
      %p165 = scmp.lt.s32.totalorder %s14, 1
      %s166 = scalar_select %p165, %s14, 1
      %s167 = smul.addr %s166, 2
      %s168 = scalar_lea.vmem %s3, %s167
      %v169 = vld [vmem:[%s164] sm:$0xff]
      %v170 = vld [vmem:[%s164 + $0x8] sm:$0xff]
      %vm173 = vcmask 1040384
      %v174 = vrot.slane %v169, 7
      %v175 = vrot.slane %v170, 7
      %v176 = vsel %vm173, %v174, %v175
      %v180 = vsel %vm173, 0.0, %v174
      %v181 = vsel %vm173, %v175, 0.0
      %vm184 = vcmask 1046528
      %v185 = vrot.slane %v180, 1
      %v186 = vrot.slane %v176, 1
      %v187 = vsel %vm184, %v185, %v186
      %v188 = vrot.slane %v181, 1
      %v189 = vsel %vm184, %v186, %v188
      %vm192 = vcmask 1045504
      %v193 = vrot.slane %v180, 2
      %v194 = vrot.slane %v176, 2
      %v195 = vsel %vm192, %v193, %v194
      %v196 = vrot.slane %v181, 2
      %v197 = vsel %vm192, %v194, %v196
      %v200 = vld [vmem:[%s1] sm:$0xff]
      %v201 = vld [vmem:[%s1 + $0x8] sm:$0xff]
      %v202 = vld [vmem:[%s1 + $0x10] sm:$0xff]
      %v203 = vld [vmem:[%s1 + $0x18] sm:$0xff]
      %v204 = vld [vmem:[%s1 + $0x20] sm:$0xff]
      %v205 = vld [vmem:[%s1 + $0x28] sm:$0xff]
      %v206 = vld [vmem:[%s1 + $0x30] sm:$0xff]
      %v207 = vld [vmem:[%s1 + $0x38] sm:$0xff]
      %v208 = vld [vmem:[%s1 + $0x40] sm:$0xff]
      %v209 = vld [vmem:[%s1 + $0x48] sm:$0xff]
      %v210 = vld [vmem:[%s1 + $0x50] sm:$0xff]
      %v211 = vld [vmem:[%s1 + $0x58] sm:$0xff]
      %v212 = vld [vmem:[%s1 + $0x60] sm:$0xff]
      %v213 = vld [vmem:[%s1 + $0x68] sm:$0xff]
      %v214 = vld [vmem:[%s1 + $0x70] sm:$0xff]
      %v215 = vld [vmem:[%s1 + $0x78] sm:$0xff]
      %v216 = vld [vmem:[%s1 + $0x80] sm:$0xff]
      %v217 = vld [vmem:[%s1 + $0x88] sm:$0xff]
      %v218 = vld [vmem:[%s1 + $0x90] sm:$0xff]
      %v219 = vld [vmem:[%s1 + $0x98] sm:$0xff]
      %v220 = vld [vmem:[%s1 + $0xa0] sm:$0xff]
      %v221 = vld [vmem:[%s1 + $0xa8] sm:$0xff]
      %v222 = vld [vmem:[%s1 + $0xb0] sm:$0xff]
      %v223 = vld [vmem:[%s1 + $0xb8] sm:$0xff]
      %v224 = vld [vmem:[%s1 + $0xc0] sm:$0xff]
      %v225 = vld [vmem:[%s1 + $0xc8] sm:$0xff]
      %v226 = vld [vmem:[%s1 + $0xd0] sm:$0xff]
      %v227 = vld [vmem:[%s1 + $0xd8] sm:$0xff]
      %v228 = vld [vmem:[%s1 + $0xe0] sm:$0xff]
      %v229 = vld [vmem:[%s1 + $0xe8] sm:$0xff]
      %v230 = vld [vmem:[%s1 + $0xf0] sm:$0xff]
      %v231 = vld [vmem:[%s1 + $0xf8] sm:$0xff]
      %v232 = vld [vmem:[%s1 + $0x100] sm:$0xff]
      %v233 = vld [vmem:[%s1 + $0x108] sm:$0xff]
      %v234 = vld [vmem:[%s1 + $0x110] sm:$0xff]
      %v235 = vld [vmem:[%s1 + $0x118] sm:$0xff]
      %v236 = vld [vmem:[%s1 + $0x120] sm:$0xff]
      %v237 = vld [vmem:[%s1 + $0x128] sm:$0xff]
      %v238 = vld [vmem:[%s1 + $0x130] sm:$0xff]
      %v239 = vld [vmem:[%s1 + $0x138] sm:$0xff]
      %v240 = vld [vmem:[%s1 + $0x140] sm:$0xff]
      %v241 = vld [vmem:[%s1 + $0x148] sm:$0xff]
      %v242 = vld [vmem:[%s1 + $0x150] sm:$0xff]
      %v243 = vld [vmem:[%s1 + $0x158] sm:$0xff]
      %v244 = vld [vmem:[%s1 + $0x160] sm:$0xff]
      %v245 = vld [vmem:[%s1 + $0x168] sm:$0xff]
      %v246 = vld [vmem:[%s1 + $0x170] sm:$0xff]
      %v247 = vld [vmem:[%s1 + $0x178] sm:$0xff]
      %v248 = vld [vmem:[%s2] sm:$0x1]
      %v250 = vperm.slane %v248, 0
      %252 = vmatpush.msra.mxu0 %v215
      %253 = vmatpush.msra.mxu0 %v214
      %254 = vmatpush.msra.mxu0 %v213
      %255 = vmatpush.msra.mxu0 %v212
      %256 = vmatpush.msra.mxu0 %v211
      %257 = vmatpush.msra.mxu0 %v210
      %258 = vmatpush.msra.mxu0 %v209
      %259 = vmatpush.msra.mxu0 %v208
      %260 = vmatpush.msra.mxu0 %v207
      %261 = vmatpush.msra.mxu0 %v206
      %262 = vmatpush.msra.mxu0 %v205
      %263 = vmatpush.msra.mxu0 %v204
      %264 = vmatpush.msra.mxu0 %v203
      %265 = vmatpush.msra.mxu0 %v202
      %266 = vmatpush.msra.mxu0 %v201
      %267 = vmatpush.msra.mxu0 %v200
      %268 = vmatmul.f32.gmra.mxu0 %v180
      %v269 = vpop.f32.mrf.mxu0
      %v270 = vadd.f32 %v250, %v269
      %271 = vmatmul.f32.gmra.mxu0 %v176
      %v272 = vpop.f32.mrf.mxu0
      %v273 = vadd.f32 %v250, %v272
      %274 = vdwg.mxu0
      %275 = vmatpush.msra.mxu0 %v231
      %276 = vmatpush.msra.mxu0 %v230
      %277 = vmatpush.msra.mxu0 %v229
      %278 = vmatpush.msra.mxu0 %v228
      %279 = vmatpush.msra.mxu0 %v227
      %280 = vmatpush.msra.mxu0 %v226
      %281 = vmatpush.msra.mxu0 %v225
      %282 = vmatpush.msra.mxu0 %v224
      %283 = vmatpush.msra.mxu0 %v223
      %284 = vmatpush.msra.mxu0 %v222
      %285 = vmatpush.msra.mxu0 %v221
      %286 = vmatpush.msra.mxu0 %v220
      %287 = vmatpush.msra.mxu0 %v219
      %288 = vmatpush.msra.mxu0 %v218
      %289 = vmatpush.msra.mxu0 %v217
      %290 = vmatpush.msra.mxu0 %v216
      %291 = vmatmul.f32.gmra.mxu0 %v187
      %v292 = vpop.f32.mrf.mxu0
      %v293 = vadd.f32 %v270, %v292
      %294 = vmatmul.f32.gmra.mxu0 %v189
      %v295 = vpop.f32.mrf.mxu0
      %v296 = vadd.f32 %v273, %v295
      %297 = vdwg.mxu0
      %298 = vmatpush.msra.mxu0 %v247
      %299 = vmatpush.msra.mxu0 %v246
      %300 = vmatpush.msra.mxu0 %v245
      %301 = vmatpush.msra.mxu0 %v244
      %302 = vmatpush.msra.mxu0 %v243
      %303 = vmatpush.msra.mxu0 %v242
      %304 = vmatpush.msra.mxu0 %v241
      %305 = vmatpush.msra.mxu0 %v240
      %306 = vmatpush.msra.mxu0 %v239
      %307 = vmatpush.msra.mxu0 %v238
      %308 = vmatpush.msra.mxu0 %v237
      %309 = vmatpush.msra.mxu0 %v236
      %310 = vmatpush.msra.mxu0 %v235
      %311 = vmatpush.msra.mxu0 %v234
      %312 = vmatpush.msra.mxu0 %v233
      %313 = vmatpush.msra.mxu0 %v232
      %314 = vmatmul.f32.gmra.mxu0 %v195
      %v315 = vpop.f32.mrf.mxu0
      %v316 = vadd.f32 %v293, %v315
      %317 = vmatmul.f32.gmra.mxu0 %v197
      %v318 = vpop.f32.mrf.mxu0
      %v319 = vadd.f32 %v296, %v318
      %320 = vdwg.mxu0
      %v321 = vadd.f32 %v316, %v319
      %v322 = vrot.slane %v321, 4
      %v323 = vadd.f32 %v321, %v322
      %v324 = vrot.slane %v323, 2
      %v325 = vadd.f32 %v323, %v324
      %v326 = vrot.slane %v325, 1
      %v327 = vadd.f32 %v325, %v326
      %v328 = vmul.f32 %v316, %v316
      %v329 = vmul.f32 %v319, %v319
      %v330 = vadd.f32 %v328, %v329
      %v331 = vrot.slane %v330, 4
      %v332 = vadd.f32 %v330, %v331
      %v333 = vrot.slane %v332, 2
      %v334 = vadd.f32 %v332, %v333
      %v335 = vrot.slane %v334, 1
      %v336 = vadd.f32 %v334, %v335
      %v337 = vsel %vm173, %v327, %v336
      %338 = vst [vmem:[%s168] sm:$0x3] %v337
      %p339 = scmp.lt.s32.totalorder %s14, 1
      %s340 = scalar_select %p339, %s14, 1
      %s341 = smul.addr %s340, 2
      %s342 = scalar_lea.vmem %s3, %s341
      // Predicated region
      $region33: #{residual_block_forward.10} parent=31 // pred_check
        %p343 = pneg %p100
      $region34: #{residual_block_forward.10} parent=31 // pred_check_branch
        %345 = sbr.rel (%p343) target = $region36
      $region35: #{residual_block_forward.10} parent=31 // pred_region
        _
      $region36: #{residual_block_forward.10} parent=31 // pred_fallthru
        _
    $region32: #{residual_block_forward.10} parent=5 // pred_fallthru
      _
    %p346 = scmp.le.s32.totalorder 2, %s9
    // Predicated region
    $region37: #{residual_block_forward.10} parent=5 // pred_check
      %p347 = pneg %p346
    $region38: #{residual_block_forward.10} parent=5 // pred_check_branch
      %349 = sbr.rel (%p347) target = $region40
    $region39: #{residual_block_forward.10} parent=5 // pred_region
      %s350 = ssub.s32 %s9, 2
      // Predicated region
      $region41: #{residual_block_forward.10} parent=39 // pred_check
        %p351 = pneg %p106
      $region42: #{residual_block_forward.10} parent=39 // pred_check_branch
        %353 = sbr.rel (%p351) target = $region44
      $region43: #{residual_block_forward.10} parent=39 // pred_region
        %p354 = scmp.lt.s32.totalorder %s15, 1
        %s355 = scalar_select %p354, %s15, 1
        %s356 = smul.addr %s355, 2
        %s357 = scalar_lea.vmem %s3, %s356
      $region44: #{residual_block_forward.10} parent=39 // pred_fallthru
        _
    $region40: #{residual_block_forward.10} parent=5 // pred_fallthru
      _
  $region6: #{residual_block_forward.10} parent=0 // loop_footer
    %s13 = sadd.s32 1, %s9
  $region7: #{residual_block_forward.10} parent=0 // loop_footer_branch
    %8 = sbr.rel target = $region3
  $region8: #{residual_block_forward.10} parent=0 // loop_exit
    _

// kernel: residual_block_forward.11
$region0: #{residual_block_forward.11}
  #allocation0 [shape = 'u32[]', space=smem, size = 0x4, offset = 0x4, fixed_abs, tag = 'smem constant byte address 0x4 - core index']
  #allocation1 [shape = 'u32[72,128]{1,0:T(1,128)}', space=vmem, size = 0x9000, scoped, tag = 'internal scratch']
  %s0 = inlined_call_operand.vmem [shape: f32[2,16,128], index: 0, kind: input, shape index: {}]
  %s1 = inlined_call_operand.vmem [shape: f32[2,16,128], index: 1, kind: input, shape index: {}]
  %s2 = inlined_call_operand.vmem [shape: f32[384,128], index: 2, kind: input, shape index: {}]
  %s3 = inlined_call_operand.vmem [shape: f32[1,128], index: 3, kind: input, shape index: {}]
  %s4 = inlined_call_operand.vmem [shape: f32[2,2,128], index: 4, kind: input, shape index: {}]
  %s5 = inlined_call_operand.vmem [shape: f32[1,128], index: 5, kind: input, shape index: {}]
  %s6 = inlined_call_operand.vmem [shape: f32[1,128], index: 6, kind: input, shape index: {}]
  %s7 = inlined_call_operand.vmem [shape: f32[128,128], index: 7, kind: input, shape index: {}]
  %s8 = inlined_call_operand.vmem [shape: f32[1,128], index: 8, kind: input, shape index: {}]
  %s9 = inlined_call_operand.vmem [shape: f32[2,16,128], index: 9, kind: output, shape index: {}]
  %s10 = sld [smem:[#allocation0]]
  $region69: #{residual_block_forward.11} parent=0
    _
  %s12 = ssub.s32 1, %s10
  %s13 = scalar_select 0, %s12, %s10
  loop: start=0, step=1, limit=4
  $region2: #{residual_block_forward.11} parent=0 // loop_pre_header
    _
  $region3: #{residual_block_forward.11} parent=0 // loop_header
    %s15 = sphi 0, %s19
    %p16 = scmp.ge.s32.totalorder %s15, 4
    %s25 = sphi 0, %s27
    %s28 = sphi 0, %s25
    %s29 = sphi 0, %s28
    %s45 = sphi 0, %s29
    %s51 = sphi 0, %s53
    %s54 = sphi 0, %s51
    %s55 = sphi 0, %s54
    %s71 = sphi 0, %s55
    %s75 = sphi 0, %s75
    %s77 = sphi 0, %s75
    %s78 = sphi 0, %s77
    %s92 = sphi 0, %s78
    %s96 = sphi 0, %s96
    %s98 = sphi 0, %s96
    %s99 = sphi 0, %s98
    %s113 = sphi 0, %s99
    %s117 = sphi 0, %s117
    %s119 = sphi 0, %s117
    %s120 = sphi 0, %s119
    %s134 = sphi 0, %s120
    %s138 = sphi 0, %s138
    %s140 = sphi 0, %s138
    %s141 = sphi 0, %s140
    %s155 = sphi 0, %s141
    %s159 = sphi 0, %s159
    %s161 = sphi 0, %s159
    %s162 = sphi 0, %s161
    %s176 = sphi 0, %s162
    %s180 = sphi 0, %s180
    %s182 = sphi 0, %s180
    %s183 = sphi 0, %s182
    %s197 = sphi 0, %s183
    %s201 = sphi 0, %s201
    %s203 = sphi 0, %s201
    %s204 = sphi 0, %s203
    %s218 = sphi 0, %s204
    %s224 = sphi 0, %s226
    %s227 = sphi 0, %s224
    %s228 = sphi 0, %s227
    %s244 = sphi 0, %s228
  $region4: #{residual_block_forward.11} parent=0 // loop_header_branch
    %18 = sbr.rel (%p16) target = $region8
  $region5: #{residual_block_forward.11} parent=0 // loop_body
    %s20 = ssub.s32 %s15, 1
    %s21 = ssub.s32 %s15, 2
    %s22 = sadd.s32 %s15, 1
    %s23 = ssub.s32 %s15, %s22
    %p24 = scmp.eq.s32.totalorder %s23, 0
    %s26 = sadd.s32 %s25, 1
    %s27 = scalar_select %p24, %s25, %s26
    %p30 = pneg %p24
    %p31 = scmp.eq.s32.totalorder %s15, 1
    %p32 = por %p30, %p31
    %p33 = scmp.ne.s32.totalorder %s25, %s28
    %p34 = scmp.eq.s32.totalorder %s15, 0
    %p35 = por %p33, %p34
    %p36 = scmp.ne.s32.totalorder %s25, %s28
    %p37 = scmp.eq.s32.totalorder %s20, 1
    %p38 = por %p36, %p37
    %p39 = scmp.ne.s32.totalorder %s28, %s29
    %p40 = scmp.eq.s32.totalorder %s20, 0
    %p41 = por %p39, %p40
    %p42 = scmp.ne.s32.totalorder %s28, %s29
    %p43 = scmp.eq.s32.totalorder %s21, 1
    %p44 = por %p42, %p43
    %p46 = scmp.ne.s32.totalorder %s29, %s45
    %p47 = scmp.eq.s32.totalorder %s21, 0
    %p48 = por %p46, %p47
    %s49 = ssub.s32 %s15, %s22
    %p50 = scmp.eq.s32.totalorder %s49, 0
    %s52 = sadd.s32 %s51, 1
    %s53 = scalar_select %p50, %s51, %s52
    %p56 = pneg %p50
    %p57 = scmp.eq.s32.totalorder %s15, 1
    %p58 = por %p56, %p57
    %p59 = scmp.ne.s32.totalorder %s51, %s54
    %p60 = scmp.eq.s32.totalorder %s15, 0
    %p61 = por %p59, %p60
    %p62 = scmp.ne.s32.totalorder %s51, %s54
    %p63 = scmp.eq.s32.totalorder %s20, 1
    %p64 = por %p62, %p63
    %p65 = scmp.ne.s32.totalorder %s54, %s55
    %p66 = scmp.eq.s32.totalorder %s20, 0
    %p67 = por %p65, %p66
    %p68 = scmp.ne.s32.totalorder %s54, %s55
    %p69 = scmp.eq.s32.totalorder %s21, 1
    %p70 = por %p68, %p69
    %p72 = scmp.ne.s32.totalorder %s55, %s71
    %p73 = scmp.eq.s32.totalorder %s21, 0
    %p74 = por %p72, %p73
    %s76 = sadd.s32 %s75, 1
    %p79 = scmp.eq.s32.totalorder %s15, 1
    %p80 = scmp.ne.s32.totalorder %s75, %s77
    %p81 = scmp.eq.s32.totalorder %s15, 0
    %p82 = por %p80, %p81
    %p83 = scmp.ne.s32.totalorder %s75, %s77
    %p84 = scmp.eq.s32.totalorder %s20, 1
    %p85 = por %p83, %p84
    %p86 = scmp.ne.s32.totalorder %s77, %s78
    %p87 = scmp.eq.s32.totalorder %s20, 0
    %p88 = por %p86, %p87
    %p89 = scmp.ne.s32.totalorder %s77, %s78
    %p90 = scmp.eq.s32.totalorder %s21, 1
    %p91 = por %p89, %p90
    %p93 = scmp.ne.s32.totalorder %s78, %s92
    %p94 = scmp.eq.s32.totalorder %s21, 0
    %p95 = por %p93, %p94
    %s97 = sadd.s32 %s96, 1
    %p100 = scmp.eq.s32.totalorder %s15, 1
    %p101 = scmp.ne.s32.totalorder %s96, %s98
    %p102 = scmp.eq.s32.totalorder %s15, 0
    %p103 = por %p101, %p102
    %p104 = scmp.ne.s32.totalorder %s96, %s98
    %p105 = scmp.eq.s32.totalorder %s20, 1
    %p106 = por %p104, %p105
    %p107 = scmp.ne.s32.totalorder %s98, %s99
    %p108 = scmp.eq.s32.totalorder %s20, 0
    %p109 = por %p107, %p108
    %p110 = scmp.ne.s32.totalorder %s98, %s99
    %p111 = scmp.eq.s32.totalorder %s21, 1
    %p112 = por %p110, %p111
    %p114 = scmp.ne.s32.totalorder %s99, %s113
    %p115 = scmp.eq.s32.totalorder %s21, 0
    %p116 = por %p114, %p115
    %s118 = sadd.s32 %s117, 1
    %p121 = scmp.eq.s32.totalorder %s15, 1
    %p122 = scmp.ne.s32.totalorder %s117, %s119
    %p123 = scmp.eq.s32.totalorder %s15, 0
    %p124 = por %p122, %p123
    %p125 = scmp.ne.s32.totalorder %s117, %s119
    %p126 = scmp.eq.s32.totalorder %s20, 1
    %p127 = por %p125, %p126
    %p128 = scmp.ne.s32.totalorder %s119, %s120
    %p129 = scmp.eq.s32.totalorder %s20, 0
    %p130 = por %p128, %p129
    %p131 = scmp.ne.s32.totalorder %s119, %s120
    %p132 = scmp.eq.s32.totalorder %s21, 1
    %p133 = por %p131, %p132
    %p135 = scmp.ne.s32.totalorder %s120, %s134
    %p136 = scmp.eq.s32.totalorder %s21, 0
    %p137 = por %p135, %p136
    %s139 = sadd.s32 %s138, 1
    %p142 = scmp.eq.s32.totalorder %s15, 1
    %p143 = scmp.ne.s32.totalorder %s138, %s140
    %p144 = scmp.eq.s32.totalorder %s15, 0
    %p145 = por %p143, %p144
    %p146 = scmp.ne.s32.totalorder %s138, %s140
    %p147 = scmp.eq.s32.totalorder %s20, 1
    %p148 = por %p146, %p147
    %p149 = scmp.ne.s32.totalorder %s140, %s141
    %p150 = scmp.eq.s32.totalorder %s20, 0
    %p151 = por %p149, %p150
    %p152 = scmp.ne.s32.totalorder %s140, %s141
    %p153 = scmp.eq.s32.totalorder %s21, 1
    %p154 = por %p152, %p153
    %p156 = scmp.ne.s32.totalorder %s141, %s155
    %p157 = scmp.eq.s32.totalorder %s21, 0
    %p158 = por %p156, %p157
    %s160 = sadd.s32 %s159, 1
    %p163 = scmp.eq.s32.totalorder %s15, 1
    %p164 = scmp.ne.s32.totalorder %s159, %s161
    %p165 = scmp.eq.s32.totalorder %s15, 0
    %p166 = por %p164, %p165
    %p167 = scmp.ne.s32.totalorder %s159, %s161
    %p168 = scmp.eq.s32.totalorder %s20, 1
    %p169 = por %p167, %p168
    %p170 = scmp.ne.s32.totalorder %s161, %s162
    %p171 = scmp.eq.s32.totalorder %s20, 0
    %p172 = por %p170, %p171
    %p173 = scmp.ne.s32.totalorder %s161, %s162
    %p174 = scmp.eq.s32.totalorder %s21, 1
    %p175 = por %p173, %p174
    %p177 = scmp.ne.s32.totalorder %s162, %s176
    %p178 = scmp.eq.s32.totalorder %s21, 0
    %p179 = por %p177, %p178
    %s181 = sadd.s32 %s180, 1
    %p184 = scmp.eq.s32.totalorder %s15, 1
    %p185 = scmp.ne.s32.totalorder %s180, %s182
    %p186 = scmp.eq.s32.totalorder %s15, 0
    %p187 = por %p185, %p186
    %p188 = scmp.ne.s32.totalorder %s180, %s182
    %p189 = scmp.eq.s32.totalorder %s20, 1
    %p190 = por %p188, %p189
    %p191 = scmp.ne.s32.totalorder %s182, %s183
    %p192 = scmp.eq.s32.totalorder %s20, 0
    %p193 = por %p191, %p192
    %p194 = scmp.ne.s32.totalorder %s182, %s183
    %p195 = scmp.eq.s32.totalorder %s21, 1
    %p196 = por %p194, %p195
    %p198 = scmp.ne.s32.totalorder %s183, %s197
    %p199 = scmp.eq.s32.totalorder %s21, 0
    %p200 = por %p198, %p199
    %s202 = sadd.s32 %s201, 1
    %p205 = scmp.eq.s32.totalorder %s15, 1
    %p206 = scmp.ne.s32.totalorder %s201, %s203
    %p207 = scmp.eq.s32.totalorder %s15, 0
    %p208 = por %p206, %p207
    %p209 = scmp.ne.s32.totalorder %s201, %s203
    %p210 = scmp.eq.s32.totalorder %s20, 1
    %p211 = por %p209, %p210
    %p212 = scmp.ne.s32.totalorder %s203, %s204
    %p213 = scmp.eq.s32.totalorder %s20, 0
    %p214 = por %p212, %p213
    %p215 = scmp.ne.s32.totalorder %s203, %s204
    %p216 = scmp.eq.s32.totalorder %s21, 1
    %p217 = por %p215, %p216
    %p219 = scmp.ne.s32.totalorder %s204, %s218
    %p220 = scmp.eq.s32.totalorder %s21, 0
    %p221 = por %p219, %p220
    %s222 = ssub.s32 %s15, %s22
    %p223 = scmp.eq.s32.totalorder %s222, 0
    %s225 = sadd.s32 %s224, 1
    %s226 = scalar_select %p223, %s224, %s225
    %p229 = pneg %p223
    %p230 = scmp.eq.s32.totalorder %s15, 1
    %p231 = por %p229, %p230
    %p232 = scmp.ne.s32.totalorder %s224, %s227
    %p233 = scmp.eq.s32.totalorder %s15, 0
    %p234 = por %p232, %p233
    %p235 = scmp.ne.s32.totalorder %s224, %s227
    %p236 = scmp.eq.s32.totalorder %s20, 1
    %p237 = por %p235, %p236
    %p238 = scmp.ne.s32.totalorder %s227, %s228
    %p239 = scmp.eq.s32.totalorder %s20, 0
    %p240 = por %p238, %p239
    %p241 = scmp.ne.s32.totalorder %s227, %s228
    %p242 = scmp.eq.s32.totalorder %s21, 1
    %p243 = por %p241, %p242
    %p245 = scmp.ne.s32.totalorder %s228, %s244
    %p246 = scmp.eq.s32.totalorder %s21, 0
    %p247 = por %p245, %p246
    %p248 = scmp.le.s32.totalorder 1, %s15
    %p249 = scmp.lt.s32.totalorder %s15, 3
    %p250 = pnand %p248, %p249
    %p251 = pneg %p250
    // Predicated region
    $region9: #{residual_block_forward.11} parent=5 // pred_check
      _
    $region10: #{residual_block_forward.11} parent=5 // pred_check_branch
      %253 = sbr.rel (%p250) target = $region12
    $region11: #{residual_block_forward.11} parent=5 // pred_region
      %s254 = ssub.s32 %s15, 1
      // Predicated region
      $region13: #{residual_block_forward.11} parent=11 // pred_check
        %p255 = pneg %p88
      $region14: #{residual_block_forward.11} parent=11 // pred_check_branch
        %257 = sbr.rel (%p255) target = $region16
      $region15: #{residual_block_forward.11} parent=11 // pred_region
        _
      $region16: #{residual_block_forward.11} parent=11 // pred_fallthru
        _
      // Predicated region
      $region17: #{residual_block_forward.11} parent=11 // pred_check
        %p258 = pneg %p109
      $region18: #{residual_block_forward.11} parent=11 // pred_check_branch
        %260 = sbr.rel (%p258) target = $region20
      $region19: #{residual_block_forward.11} parent=11 // pred_region
        _
      $region20: #{residual_block_forward.11} parent=11 // pred_fallthru
        _
      // Predicated region
      $region21: #{residual_block_forward.11} parent=11 // pred_check
        %p261 = pneg %p130
      $region22: #{residual_block_forward.11} parent=11 // pred_check_branch
        %263 = sbr.rel (%p261) target = $region24
      $region23: #{residual_block_forward.11} parent=11 // pred_region
        _
      $region24: #{residual_block_forward.11} parent=11 // pred_fallthru
        _
      // Predicated region
      $region25: #{residual_block_forward.11} parent=11 // pred_check
        %p264 = pneg %p151
      $region26: #{residual_block_forward.11} parent=11 // pred_check_branch
        %266 = sbr.rel (%p264) target = $region28
      $region27: #{residual_block_forward.11} parent=11 // pred_region
        _
      $region28: #{residual_block_forward.11} parent=11 // pred_fallthru
        _
      // Predicated region
      $region29: #{residual_block_forward.11} parent=11 // pred_check
        %p267 = pneg %p172
      $region30: #{residual_block_forward.11} parent=11 // pred_check_branch
        %269 = sbr.rel (%p267) target = $region32
      $region31: #{residual_block_forward.11} parent=11 // pred_region
        _
      $region32: #{residual_block_forward.11} parent=11 // pred_fallthru
        _
      // Predicated region
      $region33: #{residual_block_forward.11} parent=11 // pred_check
        %p270 = pneg %p193
      $region34: #{residual_block_forward.11} parent=11 // pred_check_branch
        %272 = sbr.rel (%p270) target = $region36
      $region35: #{residual_block_forward.11} parent=11 // pred_region
        _
      $region36: #{residual_block_forward.11} parent=11 // pred_fallthru
        _
      // Predicated region
      $region37: #{residual_block_forward.11} parent=11 // pred_check
        %p273 = pneg %p214
      $region38: #{residual_block_forward.11} parent=11 // pred_check_branch
        %275 = sbr.rel (%p273) target = $region40
      $region39: #{residual_block_forward.11} parent=11 // pred_region
        _
      $region40: #{residual_block_forward.11} parent=11 // pred_fallthru
        _
    $region12: #{residual_block_forward.11} parent=5 // pred_fallthru
      _
    %p276 = scmp.lt.s32.totalorder %s15, 2
    // Predicated region
    $region41: #{residual_block_forward.11} parent=5 // pred_check
      %p277 = pneg %p276
    $region42: #{residual_block_forward.11} parent=5 // pred_check_branch
      %279 = sbr.rel (%p277) target = $region44
    $region43: #{residual_block_forward.11} parent=5 // pred_region
      // Predicated region
      $region45: #{residual_block_forward.11} parent=43 // pred_check
        %p280 = pneg %p35
      $region46: #{residual_block_forward.11} parent=43 // pred_check_branch
        %282 = sbr.rel (%p280) target = $region48
      $region47: #{residual_block_forward.11} parent=43 // pred_region
        %p283 = scmp.lt.s32.totalorder %s15, 1
        %s284 = scalar_select %p283, %s15, 1
        %s285 = smul.addr %s284, 2
        %s286 = smul.addr %s285, 8
        %s287 = scalar_lea.vmem %s0, %s286
      $region48: #{residual_block_forward.11} parent=43 // pred_fallthru
        _
      // Predicated region
      $region49: #{residual_block_forward.11} parent=43 // pred_check
        %p288 = pneg %p61
      $region50: #{residual_block_forward.11} parent=43 // pred_check_branch
        %290 = sbr.rel (%p288) target = $region52
      $region51: #{residual_block_forward.11} parent=43 // pred_region
        %p291 = scmp.lt.s32.totalorder %s15, 1
        %s292 = scalar_select %p291, %s15, 1
        %s293 = smul.addr %s292, 2
        %s294 = smul.addr %s293, 8
        %s295 = scalar_lea.vmem %s1, %s294
      $region52: #{residual_block_forward.11} parent=43 // pred_fallthru
        _
    $region44: #{residual_block_forward.11} parent=5 // pred_fallthru
      _
    %p296 = scmp.le.s32.totalorder 1, %s15
    %p297 = scmp.lt.s32.totalorder %s15, 3
    %p298 = pnand %p296, %p297
    %p299 = pneg %p298
    // Predicated region
    $region53: #{residual_block_forward.11} parent=5 // pred_check
      _
    $region54: #{residual_block_forward.11} parent=5 // pred_check_branch
      %301 = sbr.rel (%p298) target = $region56
    $region55: #{residual_block_forward.11} parent=5 // pred_region
      %s302 = ssub.s32 %s15, 1
      %p303 = scmp.lt.s32.totalorder %s20, 1
      %s304 = scalar_select %p303, %s20, 1
      %s305 = smul.addr %s304, 2
      %s306 = smul.addr %s305, 8
      %s307 = scalar_lea.vmem %s0, %s306
      %p308 = pneg %p41
      %p309 = pneg %p38
      %p310 = scmp.lt.s32.totalorder %s20, 1
      %s311 = scalar_select %p310, %s20, 1
      %s312 = smul.addr %s311, 2
      %s313 = smul.addr %s312, 8
      %s314 = scalar_lea.vmem %s1, %s313
      %p315 = pneg %p67
      %p316 = pneg %p64
      %p317 = pneg %p88
      %p318 = pneg %p85
      %p319 = pneg %p109
      %p320 = pneg %p106
      %p321 = pneg %p130
      %p322 = pneg %p127
      %p323 = pneg %p151
      %p324 = pneg %p148
      %p325 = pneg %p172
      %p326 = pneg %p169
      %p327 = pneg %p193
      %p328 = pneg %p190
      %p329 = pneg %p214
      %p330 = pneg %p211
      %p331 = pneg %p240
      %p332 = pneg %p237
      %p333 = scmp.lt.s32.totalorder %s20, 1
      %s334 = scalar_select %p333, %s20, 1
      %s335 = smul.addr %s334, 2
      %s336 = smul.addr %s335, 8
      %s337 = scalar_lea.vmem %s9, %s336
      %p338 = scmp.lt.s32.totalorder %s20, 1
      %s339 = scalar_select %p338, %s20, 1
      %s340 = smul.addr %s339, 2
      %s341 = smul.addr %s340, 8
      %s342 = scalar_lea.vmem %s0, %s341
      %p343 = scmp.lt.s32.totalorder %s20, 1
      %s344 = scalar_select %p343, %s20, 1
      %s345 = smul.addr %s344, 2
      %s346 = smul.addr %s345, 8
      %s347 = scalar_lea.vmem %s1, %s346
      %p348 = scmp.lt.s32.totalorder %s20, 1
      %s349 = scalar_select %p348, %s20, 1
      %s350 = smul.addr %s349, 2
      %s351 = smul.addr %s350, 8
      %s352 = scalar_lea.vmem %s9, %s351
      %v353 = vld [vmem:[%s342] sm:$0xff]
      %v354 = vld [vmem:[%s342 + $0x8] sm:$0xff]
      %vm357 = vcmask 1040384
      %v358 = vrot.slane %v353, 7
      %v359 = vrot.slane %v354, 7
      %v360 = vsel %vm357, %v358, %v359
      %v364 = vsel %vm357, 0.0, %v358
      %v365 = vsel %vm357, %v359, 0.0
      %vm368 = vcmask 1046528
      %v369 = vrot.slane %v364, 1
      %v370 = vrot.slane %v360, 1
      %v371 = vsel %vm368, %v369, %v370
      %v372 = vrot.slane %v365, 1
      %v373 = vsel %vm368, %v370, %v372
      %vm376 = vcmask 1045504
      %v377 = vrot.slane %v364, 2
      %v378 = vrot.slane %v360, 2
      %v379 = vsel %vm376, %v377, %v378
      %v380 = vrot.slane %v365, 2
      %v381 = vsel %vm376, %v378, %v380
      %v384 = vld [vmem:[%s2] sm:$0xff]
      %v385 = vld [vmem:[%s2 + $0x8] sm:$0xff]
      %v386 = vld [vmem:[%s2 + $0x10] sm:$0xff]
      %v387 = vld [vmem:[%s2 + $0x18] sm:$0xff]
      %v388 = vld [vmem:[%s2 + $0x20] sm:$0xff]
      %v389 = vld [vmem:[%s2 + $0x28] sm:$0xff]
      %v390 = vld [vmem:[%s2 + $0x30] sm:$0xff]
      %v391 = vld [vmem:[%s2 + $0x38] sm:$0xff]
      %v392 = vld [vmem:[%s2 + $0x40] sm:$0xff]
      %v393 = vld [vmem:[%s2 + $0x48] sm:$0xff]
      %v394 = vld [vmem:[%s2 + $0x50] sm:$0xff]
      %v395 = vld [vmem:[%s2 + $0x58] sm:$0xff]
      %v396 = vld [vmem:[%s2 + $0x60] sm:$0xff]
      %v397 = vld [vmem:[%s2 + $0x68] sm:$0xff]
      %v398 = vld [vmem:[%s2 + $0x70] sm:$0xff]
      %v399 = vld [vmem:[%s2 + $0x78] sm:$0xff]
      %v400 = vld [vmem:[%s2 + $0x80] sm:$0xff]
      %v401 = vld [vmem:[%s2 + $0x88] sm:$0xff]
      %v402 = vld [vmem:[%s2 + $0x90] sm:$0xff]
      %v403 = vld [vmem:[%s2 + $0x98] sm:$0xff]
      %v404 = vld [vmem:[%s2 + $0xa0] sm:$0xff]
      %v405 = vld [vmem:[%s2 + $0xa8] sm:$0xff]
      %v406 = vld [vmem:[%s2 + $0xb0] sm:$0xff]
      %v407 = vld [vmem:[%s2 + $0xb8] sm:$0xff]
      %v408 = vld [vmem:[%s2 + $0xc0] sm:$0xff]
      %v409 = vld [vmem:[%s2 + $0xc8] sm:$0xff]
      %v410 = vld [vmem:[%s2 + $0xd0] sm:$0xff]
      %v411 = vld [vmem:[%s2 + $0xd8] sm:$0xff]
      %v412 = vld [vmem:[%s2 + $0xe0] sm:$0xff]
      %v413 = vld [vmem:[%s2 + $0xe8] sm:$0xff]
      %v414 = vld [vmem:[%s2 + $0xf0] sm:$0xff]
      %v415 = vld [vmem:[%s2 + $0xf8] sm:$0xff]
      %v416 = vld [vmem:[%s2 + $0x100] sm:$0xff]
      %v417 = vld [vmem:[%s2 + $0x108] sm:$0xff]
      %v418 = vld [vmem:[%s2 + $0x110] sm:$0xff]
      %v419 = vld [vmem:[%s2 + $0x118] sm:$0xff]
      %v420 = vld [vmem:[%s2 + $0x120] sm:$0xff]
      %v421 = vld [vmem:[%s2 + $0x128] sm:$0xff]
      %v422 = vld [vmem:[%s2 + $0x130] sm:$0xff]
      %v423 = vld [vmem:[%s2 + $0x138] sm:$0xff]
      %v424 = vld [vmem:[%s2 + $0x140] sm:$0xff]
      %v425 = vld [vmem:[%s2 + $0x148] sm:$0xff]
      %v426 = vld [vmem:[%s2 + $0x150] sm:$0xff]
      %v427 = vld [vmem:[%s2 + $0x158] sm:$0xff]
      %v428 = vld [vmem:[%s2 + $0x160] sm:$0xff]
      %v429 = vld [vmem:[%s2 + $0x168] sm:$0xff]
      %v430 = vld [vmem:[%s2 + $0x170] sm:$0xff]
      %v431 = vld [vmem:[%s2 + $0x178] sm:$0xff]
      %v432 = vld [vmem:[%s3] sm:$0x1]
      %v434 = vperm.slane %v432, 0
      %436 = vmatpush.msra.mxu0 %v399
      %437 = vmatpush.msra.mxu0 %v398
      %438 = vmatpush.msra.mxu0 %v397
      %439 = vmatpush.msra.mxu0 %v396
      %440 = vmatpush.msra.mxu0 %v395
      %441 = vmatpush.msra.mxu0 %v394
      %442 = vmatpush.msra.mxu0 %v393
      %443 = vmatpush.msra.mxu0 %v392
      %444 = vmatpush.msra.mxu0 %v391
      %445 = vmatpush.msra.mxu0 %v390
      %446 = vmatpush.msra.mxu0 %v389
      %447 = vmatpush.msra.mxu0 %v388
      %448 = vmatpush.msra.mxu0 %v387
      %449 = vmatpush.msra.mxu0 %v386
      %450 = vmatpush.msra.mxu0 %v385
      %451 = vmatpush.msra.mxu0 %v384
      %452 = vmatmul.f32.gmra.mxu0 %v364
      %v453 = vpop.f32.mrf.mxu0
      %v454 = vadd.f32 %v434, %v453
      %455 = vmatmul.f32.gmra.mxu0 %v360
      %v456 = vpop.f32.mrf.mxu0
      %v457 = vadd.f32 %v434, %v456
      %458 = vdwg.mxu0
      %459 = vmatpush.msra.mxu0 %v415
      %460 = vmatpush.msra.mxu0 %v414
      %461 = vmatpush.msra.mxu0 %v413
      %462 = vmatpush.msra.mxu0 %v412
      %463 = vmatpush.msra.mxu0 %v411
      %464 = vmatpush.msra.mxu0 %v410
      %465 = vmatpush.msra.mxu0 %v409
      %466 = vmatpush.msra.mxu0 %v408
      %467 = vmatpush.msra.mxu0 %v407
      %468 = vmatpush.msra.mxu0 %v406
      %469 = vmatpush.msra.mxu0 %v405
      %470 = vmatpush.msra.mxu0 %v404
      %471 = vmatpush.msra.mxu0 %v403
      %472 = vmatpush.msra.mxu0 %v402
      %473 = vmatpush.msra.mxu0 %v401
      %474 = vmatpush.msra.mxu0 %v400
      %475 = vmatmul.f32.gmra.mxu0 %v371
      %v476 = vpop.f32.mrf.mxu0
      %v477 = vadd.f32 %v454, %v476
      %478 = vmatmul.f32.gmra.mxu0 %v373
      %v479 = vpop.f32.mrf.mxu0
      %v480 = vadd.f32 %v457, %v479
      %481 = vdwg.mxu0
      %482 = vmatpush.msra.mxu0 %v431
      %483 = vmatpush.msra.mxu0 %v430
      %484 = vmatpush.msra.mxu0 %v429
      %485 = vmatpush.msra.mxu0 %v428
      %486 = vmatpush.msra.mxu0 %v427
      %487 = vmatpush.msra.mxu0 %v426
      %488 = vmatpush.msra.mxu0 %v425
      %489 = vmatpush.msra.mxu0 %v424
      %490 = vmatpush.msra.mxu0 %v423
      %491 = vmatpush.msra.mxu0 %v422
      %492 = vmatpush.msra.mxu0 %v421
      %493 = vmatpush.msra.mxu0 %v420
      %494 = vmatpush.msra.mxu0 %v419
      %495 = vmatpush.msra.mxu0 %v418
      %496 = vmatpush.msra.mxu0 %v417
      %497 = vmatpush.msra.mxu0 %v416
      %498 = vmatmul.f32.gmra.mxu0 %v379
      %v499 = vpop.f32.mrf.mxu0
      %v500 = vadd.f32 %v477, %v499
      %501 = vmatmul.f32.gmra.mxu0 %v381
      %v502 = vpop.f32.mrf.mxu0
      %v503 = vadd.f32 %v480, %v502
      %504 = vdwg.mxu0
      %v505 = vld [vmem:[%s4] sm:$0x3]
      %v506 = vld [vmem:[%s4 + $0x2] sm:$0x3]
      %vm507 = vcmask 1041408
      %v508 = vsel %vm507, %v505, 0.0
      %v509 = vsel %vm507, %v506, 0.0
      %v510 = vadd.f32 %v508, %v509
      %v511 = vrcp.pop 32.0
      %v512 = vmul.f32 32.0, %v511
      %v513 = vsub.f32 1.0, %v512
      %v514 = vmul.f32 %v511, %v513
      %v515 = vadd.f32 %v511, %v514
      %vm516 = vweird.f32 %v511
      %v517 = vsel %vm516, %v511, %v515
      %v518 = vmul.f32 %v510, %v517
      %v519 = vmul.f32 %v518, %v518
      %v521 = vrot.slane %v519, 7
      %v523 = vsub.f32 %v518, %v521
      %v524 = vmax.f32 %v523, 0.0
      %v525 = vld [vmem:[%s5] sm:$0x1]
      %v526 = vadd.f32 %v524, 1e-05
      %v527 = vrsqrt.pop %v526
      %v528 = vmul.f32 %v527, %v526
      %v529 = vmul.f32 %v528, %v527
      %v530 = vmul.f32 0.5, %v529
      %v531 = vsub.f32 1.5, %v530
      %v532 = vmul.f32 %v527, %v531
      %vm533 = vweird.f32 %v526
      %vm534 = vweird.f32 %v527
      %vm535 = vmor %vm533, %vm534
      %v536 = vsel %vm535, %v527, %v532
      %538 = vst [vmem:[#allocation1] sm:$0xff] %v536
      %s539 = scalar_lea.vmem [#allocation1], 1
      %v540 = vld [vmem:[%s539] ss:$9 sm:$0xff]
      %v542 = vmul.f32 %v525, %v540
      %v543 = vld [vmem:[%s6] sm:$0x1]
      %v544 = vmul.f32 %v518, %v542
      %v545 = vsub.f32 %v543, %v544
      %v546 = vld [vmem:[%s347] sm:$0xff]
      %v547 = vld [vmem:[%s347 + $0x8] sm:$0xff]
      %v548 = vld [vmem:[%s7] sm:$0xff]
      %v549 = vld [vmem:[%s7 + $0x8] sm:$0xff]
      %v550 = vld [vmem:[%s7 + $0x10] sm:$0xff]
      %v551 = vld [vmem:[%s7 + $0x18] sm:$0xff]
      %v552 = vld [vmem:[%s7 + $0x20] sm:$0xff]
      %v553 = vld [vmem:[%s7 + $0x28] sm:$0xff]
      %v554 = vld [vmem:[%s7 + $0x30] sm:$0xff]
      %v555 = vld [vmem:[%s7 + $0x38] sm:$0xff]
      %v556 = vld [vmem:[%s7 + $0x40] sm:$0xff]
      %v557 = vld [vmem:[%s7 + $0x48] sm:$0xff]
      %v558 = vld [vmem:[%s7 + $0x50] sm:$0xff]
      %v559 = vld [vmem:[%s7 + $0x58] sm:$0xff]
      %v560 = vld [vmem:[%s7 + $0x60] sm:$0xff]
      %v561 = vld [vmem:[%s7 + $0x68] sm:$0xff]
      %v562 = vld [vmem:[%s7 + $0x70] sm:$0xff]
      %v563 = vld [vmem:[%s7 + $0x78] sm:$0xff]
      %v564 = vld [vmem:[%s8] sm:$0x1]
      %v566 = vperm.slane %v564, 0
      %568 = vmatpush.msra.mxu0 %v563
      %569 = vmatpush.msra.mxu0 %v562
      %570 = vmatpush.msra.mxu0 %v561
      %571 = vmatpush.msra.mxu0 %v560
      %572 = vmatpush.msra.mxu0 %v559
      %573 = vmatpush.msra.mxu0 %v558
      %574 = vmatpush.msra.mxu0 %v557
      %575 = vmatpush.msra.mxu0 %v556
      %576 = vmatpush.msra.mxu0 %v555
      %577 = vmatpush.msra.mxu0 %v554
      %578 = vmatpush.msra.mxu0 %v553
      %579 = vmatpush.msra.mxu0 %v552
      %580 = vmatpush.msra.mxu0 %v551
      %581 = vmatpush.msra.mxu0 %v550
      %582 = vmatpush.msra.mxu0 %v549
      %583 = vmatpush.msra.mxu0 %v548
      %584 = vmatmul.f32.gmra.mxu0 %v546
      %v585 = vpop.f32.mrf.mxu0
      %v586 = vadd.f32 %v566, %v585
      %587 = vmatmul.f32.gmra.mxu0 %v547
      %v588 = vpop.f32.mrf.mxu0
      %v589 = vadd.f32 %v566, %v588
      %590 = vdwg.mxu0
      %v592 = vperm.slane %v542, 0
      %v594 = vmul.f32 %v500, %v592
      %v595 = vmul.f32 %v503, %v592
      %v597 = vperm.slane %v545, 0
      %v599 = vadd.f32 %v594, %v597
      %v600 = vadd.f32 %v595, %v597
      %v601 = vadd.f32 %v599, %v586
      %v602 = vadd.f32 %v600, %v589
      %v603 = vmax.f32 %v601, 0.0
      %v604 = vmax.f32 %v602, 0.0
      %605 = vst [vmem:[%s352] sm:$0xff] %v603
      %606 = vst [vmem:[%s352 + $0x8] sm:$0xff] %v604
      %p607 = scmp.lt.s32.totalorder %s20, 1
      %s608 = scalar_select %p607, %s20, 1
      %s609 = smul.addr %s608, 2
      %s610 = smul.addr %s609, 8
      %s611 = scalar_lea.vmem %s9, %s610
      // Predicated region
      $region57: #{residual_block_forward.11} parent=55 // pred_check
        %p612 = pneg %p237
      $region58: #{residual_block_forward.11} parent=55 // pred_check_branch
        %614 = sbr.rel (%p612) target = $region60
      $region59: #{residual_block_forward.11} parent=55 // pred_region
        _
      $region60: #{residual_block_forward.11} parent=55 // pred_fallthru
        _
    $region56: #{residual_block_forward.11} parent=5 // pred_fallthru
      _
    %p615 = scmp.le.s32.totalorder 2, %s15
    // Predicated region
    $region61: #{residual_block_forward.11} parent=5 // pred_check
      %p616 = pneg %p615
    $region62: #{residual_block_forward.11} parent=5 // pred_check_branch
      %618 = sbr.rel (%p616) target = $region64
    $region63: #{residual_block_forward.11} parent=5 // pred_region
      %s619 = ssub.s32 %s15, 2
      // Predicated region
      $region65: #{residual_block_forward.11} parent=63 // pred_check
        %p620 = pneg %p243
      $region66: #{residual_block_forward.11} parent=63 // pred_check_branch
        %622 = sbr.rel (%p620) target = $region68
      $region67: #{residual_block_forward.11} parent=63 // pred_region
        %p623 = scmp.lt.s32.totalorder %s21, 1
        %s624 = scalar_select %p623, %s21, 1
        %s625 = smul.addr %s624, 2
        %s626 = smul.addr %s625, 8
        %s627 = scalar_lea.vmem %s9, %s626
      $region68: #{residual_block_forward.11} parent=63 // pred_fallthru
        _
    $region64: #{residual_block_forward.11} parent=5 // pred_fallthru
      _
  $region6: #{residual_block_forward.11} parent=0 // loop_footer
    %s19 = sadd.s32 1, %s15
  $region7: #{residual_block_forward.11} parent=0 // loop_footer_branch
    %14 = sbr.rel target = $region3
  $region8: #{residual_block_forward.11} parent=0 // loop_exit
    _

</llo_original>
